<compile_context>
chip_gen: v7x
topology: tpu7x:2x2x1
jax: 0.10.0
libtpu: 0.0.40
codegen_flags: <defaults>
</compile_context>

<pallas_src>
import functools

import jax
import jax.numpy as jnp
from jax.experimental import pallas as pl
from jax.experimental.pallas import tpu as pltpu


def _upblock_kernel(style_ref, wsc_ref, bsc_ref, wsh_ref, bsh_ref,
                    wtap_ref, cbias_ref, mask_ref, x_ref, out_ref,
                    *, wp, slab, n_valid, eps, neg_slope):
    # ---- AdaIN affine params from this batch element's style row (f32) ----
    s = style_ref[0]                                                   # (1, S)
    scale = jnp.sum(wsc_ref[...] * s, axis=-1, keepdims=True) + bsc_ref[...]  # (TCO, 1)
    shift = jnp.sum(wsh_ref[...] * s, axis=-1, keepdims=True) + bsh_ref[...]  # (TCO, 1)

    x = x_ref[0]                                                       # (C_in, F) bf16
    tco = out_ref.shape[2]

    # 9 distinct lane-shifted operands of the original-resolution padded slab,
    # built once (jaxpr-level dedup) and shared by all four output phases.
    xsh = [[x[:, dr * wp + dc: dr * wp + dc + slab] for dc in range(3)]
           for dr in range(3)]

    # ---- 4-phase upsample-conv identity: each phase (a, b) is a 2x2 conv with
    # pre-folded (C_out, C_in) taps; bf16 operands, f32 accumulation on MXU ----
    ys = []
    for a in range(2):
        for b in range(2):
            acc = jnp.zeros((tco, slab), jnp.float32)
            for r in range(2):
                for c in range(2):
                    tap = ((a * 2 + b) * 2 + r) * 2 + c
                    acc = acc + jnp.dot(wtap_ref[tap], xsh[r + a][c + b],
                                        preferred_element_type=jnp.float32)
            ys.append(acc + cbias_ref[...])

    # ---- InstanceNorm2d (affine=False): stats over all four phases (= the
    # full 2H x 2W output plane); junk padded-width columns are masked out ----
    m = mask_ref[...]                                                  # (1, slab)
    inv_n = 1.0 / n_valid
    tot = jnp.zeros((tco, 1), jnp.float32)
    for y in ys:
        tot = tot + jnp.sum(y * m, axis=-1, keepdims=True)
    mean = tot * inv_n
    vtot = jnp.zeros((tco, 1), jnp.float32)
    for y in ys:                        # two-pass variance (numerically safe)
        d = (y - mean) * m
        vtot = vtot + jnp.sum(d * d, axis=-1, keepdims=True)
    g = scale * jax.lax.rsqrt(vtot * inv_n + eps)                      # (TCO, 1)

    # ---- AdaIN + LeakyReLU(0.2), lane-dense per-phase stores ----
    for p, y in enumerate(ys):
        o = (y - mean) * g + shift
        o = jnp.where(o >= 0, o, neg_slope * o)
        out_ref[0, p] = o.astype(out_ref.dtype)


# which 3x3 kh (or kw) taps fold into the 2x2 tap at (parity, offset)
_FOLD = {(0, 0): (0,), (0, 1): (1, 2), (1, 0): (0, 1), (1, 1): (2,)}


def _fold_upsample_conv_taps(conv_w):
    """Fold nearest-2x upsample into the 3x3 conv: per output phase (a, b) the
    effective kernel is 2x2, each tap a sum of the original 3x3 taps."""
    taps = []
    for a in range(2):
        for b in range(2):
            for r in range(2):
                for c in range(2):
                    taps.append(sum(conv_w[:, :, kh, kw]
                                    for kh in _FOLD[(a, r)]
                                    for kw in _FOLD[(b, c)]))
    return jnp.stack(taps, axis=0)                    # (16, C_out, C_in)


def _pick_cout_tile(c_out):
    for t in (256, 128):                              # MXU M dim: v6e/v7x, v5e
        if c_out % t == 0:
            return t
    return c_out


def _vmem_limit_bytes():
    try:
        cap = int(pltpu.get_tpu_info().vmem_capacity_bytes)
    except Exception:
        cap = 128 * 1024 * 1024
    # ~3/4 of physical capacity, leaving headroom for double buffers/scratch.
    return max(32 * 1024 * 1024, min(3 * cap // 4, 100 * 1024 * 1024))


@functools.partial(jax.jit, static_argnames=("eps", "neg_slope", "out_dtype"))
def up_block(x, style, conv_w, conv_b, w_scale, b_scale, w_shift, b_shift,
             *, eps=1e-5, neg_slope=0.2, out_dtype=None):
    B, C_in, H, W = x.shape
    C_out = conv_w.shape[0]
    S = style.shape[1]
    assert conv_w.shape[2] == conv_w.shape[3] == 3, "UpBlock uses a 3x3 conv"
    out_dtype = x.dtype if out_dtype is None else out_dtype

    Hp, Wp = H + 2, W + 2                 # zero pad 1 around the ORIGINAL plane
    slab = H * Wp                         # per-phase flattened output slab
    F = Hp * Wp + 2                       # flat input length (worst-case tap fits)

    # ---- host glue at original resolution only (the upsampled tensor is never
    # materialized): pad 1, flatten spatial, cast bf16 for the MXU ----
    xp = jnp.pad(x, ((0, 0), (0, 0), (1, 1), (1, 1)))
    xflat = jnp.pad(xp.reshape(B, C_in, Hp * Wp), ((0, 0), (0, 0), (0, 2)))
    xflat = xflat.astype(jnp.bfloat16)                               # (B, C_in, F)

    wtaps = _fold_upsample_conv_taps(conv_w).astype(jnp.bfloat16)    # (16, C_out, C_in)
    cbias = conv_b.reshape(C_out, 1)
    bsc = b_scale.reshape(C_out, 1)
    bsh = b_shift.reshape(C_out, 1)
    style3 = style.reshape(B, 1, S)

    # interior mask for the flattened (H, Wp) slab: column < W is a real pixel
    mask = jnp.tile((jnp.arange(Wp) < W).astype(jnp.float32), H).reshape(1, slab)

    tco = _pick_cout_tile(C_out)
    n_co = C_out // tco

    kernel = functools.partial(_upblock_kernel, wp=Wp, slab=slab,
                               n_valid=float(4 * H * W), eps=eps,
                               neg_slope=neg_slope)

    out_phases = pl.pallas_call(
        kernel,
        out_shape=jax.ShapeDtypeStruct((B, 4, C_out, slab), out_dtype),
        grid_spec=pltpu.PrefetchScalarGridSpec(
            num_scalar_prefetch=0,
            grid=(B, n_co),
            in_specs=[
                pl.BlockSpec((1, 1, S), lambda b, co: (b, 0, 0)),         # style row
                pl.BlockSpec((tco, S), lambda b, co: (co, 0)),            # AdaIN scale W
                pl.BlockSpec((tco, 1), lambda b, co: (co, 0)),            # AdaIN scale b
                pl.BlockSpec((tco, S), lambda b, co: (co, 0)),            # AdaIN shift W
                pl.BlockSpec((tco, 1), lambda b, co: (co, 0)),            # AdaIN shift b
                pl.BlockSpec((16, tco, C_in), lambda b, co: (0, co, 0)),  # folded taps
                pl.BlockSpec((tco, 1), lambda b, co: (co, 0)),            # conv bias
                pl.BlockSpec((1, slab), lambda b, co: (0, 0)),            # interior mask
                pl.BlockSpec((1, C_in, F), lambda b, co: (b, 0, 0)),      # input plane
            ],
            out_specs=pl.BlockSpec((1, 4, tco, slab), lambda b, co: (b, 0, co, 0)),
        ),
        compiler_params=pltpu.CompilerParams(
            dimension_semantics=("parallel", "parallel"),
            vmem_limit_bytes=_vmem_limit_bytes(),
        ),
    )(style3, w_scale, bsc, w_shift, bsh, wtaps, cbias, mask, xflat)

    # de-interleave the 4 phases (row/col parity) and crop the 2 junk columns.
    # TODO(synk): a downstream Pallas consumer could read the phase-major slab
    # directly and skip this extra HBM round trip over the output.
    o = out_phases.reshape(B, 2, 2, C_out, H, Wp)[..., :W]
    o = jnp.transpose(o, (0, 3, 4, 1, 5, 2))             # (B, C_out, H, 2, W, 2)
    return o.reshape(B, C_out, 2 * H, 2 * W)


def _reference(x, style, conv_w, conv_b, w_scale, b_scale, w_shift, b_shift,
               *, eps=1e-5, neg_slope=0.2):
    """Pure-JAX replica of the PyTorch UpBlock forward (explicit upsample +
    3x3 conv; activations quantized to bf16 like the kernel, weights f32)."""
    xu = jnp.repeat(jnp.repeat(x, 2, axis=2), 2, axis=3)
    xq = xu.astype(jnp.bfloat16).astype(jnp.float32)
    y = jax.lax.conv_general_dilated(
        xq, conv_w, window_strides=(1, 1), padding=[(1, 1), (1, 1)],
        dimension_numbers=("NCHW", "OIHW", "NCHW"),
        precision=jax.lax.Precision.HIGHEST,
        preferred_element_type=jnp.float32) + conv_b[None, :, None, None]
    mean = jnp.mean(y, axis=(2, 3), keepdims=True)
    var = jnp.mean((y - mean) ** 2, axis=(2, 3), keepdims=True)   # biased, like PyTorch
    y_norm = (y - mean) * jax.lax.rsqrt(var + eps)
    scale = (style @ w_scale.T + b_scale)[:, :, None, None]
    shift = (style @ w_shift.T + b_shift)[:, :, None, None]
    o = scale * y_norm + shift
    return jnp.where(o >= 0, o, neg_slope * o)


if __name__ == "__main__":
    B, C_in, C_out, S, H, W = 2, 4, 8, 16, 16, 16

    key = jax.random.PRNGKey(0)
    ks = jax.random.split(key, 8)
    # deterministic synthetic parameters (shapes from UpBlock.__init__)
    conv_w = jax.random.normal(ks[0], (C_out, C_in, 3, 3), jnp.float32) * 0.2
    conv_b = jax.random.normal(ks[1], (C_out,), jnp.float32) * 0.1
    w_scale = jax.random.normal(ks[2], (C_out, S), jnp.float32) * 0.1   # AdaIN scale Linear
    b_scale = jax.random.normal(ks[3], (C_out,), jnp.float32) * 0.1 + 1.0
    w_shift = jax.random.normal(ks[4], (C_out, S), jnp.float32) * 0.1   # AdaIN shift Linear
    b_shift = jax.random.normal(ks[5], (C_out,), jnp.float32) * 0.1
    # inputs
    x = jax.random.normal(ks[6], (B, C_in, H, W), jnp.float32)
    style = jax.random.normal(ks[7], (B, S), jnp.float32)

    out = up_block(x, style, conv_w, conv_b, w_scale, b_scale, w_shift, b_shift)
    out = jax.block_until_ready(out)

    ref = _reference(x, style, conv_w, conv_b, w_scale, b_scale, w_shift, b_shift)
    assert out.shape == (B, C_out, 2 * H, 2 * W), out.shape
    err = jnp.abs(out - ref)
    assert jnp.allclose(out, ref, atol=5e-2, rtol=5e-2), float(err.max())
    assert float(err.mean()) < 1e-2, float(err.mean())

    print("KERNEL_OK")
</pallas_src>

<mosaic_0001>
module attributes {stable_mosaic.version = 11 : i64} {
  func.func @_upblock_kernel(%arg0: i32, %arg1: i32, %arg2: memref<1x1x16xf32, #tpu.memory_space<vmem>>, %arg3: memref<8x16xf32, #tpu.memory_space<vmem>>, %arg4: memref<8x1xf32, #tpu.memory_space<vmem>>, %arg5: memref<8x16xf32, #tpu.memory_space<vmem>>, %arg6: memref<8x1xf32, #tpu.memory_space<vmem>>, %arg7: memref<16x8x4xbf16, #tpu.memory_space<vmem>>, %arg8: memref<8x1xf32, #tpu.memory_space<vmem>>, %arg9: memref<1x288xf32, #tpu.memory_space<vmem>>, %arg10: memref<1x4x326xbf16, #tpu.memory_space<vmem>>, %arg11: memref<1x4x8x288xf32, #tpu.memory_space<vmem>>) attributes {dimension_semantics = [#tpu.dimension_semantics<parallel>, #tpu.dimension_semantics<parallel>], iteration_bounds = array<i64: 2, 1>, scalar_prefetch = 0 : i64, scratch_operands = 0 : i64, tpu.core_type = #tpu.core_type<tc>, window_params = [{transform_indices = @transform_0, window_bounds = array<i64: 1, 1, 16>}, {transform_indices = @transform_1, window_bounds = array<i64: 8, 16>}, {transform_indices = @transform_2, window_bounds = array<i64: 8, 1>}, {transform_indices = @transform_3, window_bounds = array<i64: 8, 16>}, {transform_indices = @transform_4, window_bounds = array<i64: 8, 1>}, {transform_indices = @transform_5, window_bounds = array<i64: 16, 8, 4>}, {transform_indices = @transform_6, window_bounds = array<i64: 8, 1>}, {pipeline_mode = #tpu.pipeline_mode<synchronous>, transform_indices = @transform_7, window_bounds = array<i64: 1, 288>}, {transform_indices = @transform_8, window_bounds = array<i64: 1, 4, 326>}, {transform_indices = @transform_9, window_bounds = array<i64: 1, 4, 8, 288>}]} {
    %c0 = arith.constant 0 : index
    %c0_0 = arith.constant 0 : index
    %c0_1 = arith.constant 0 : index
    %0 = vector.load %arg2[%c0, %c0_0, %c0_1] : memref<1x1x16xf32, #tpu.memory_space<vmem>>, vector<1x1x16xf32>
    %1 = vector.shape_cast %0 : vector<1x1x16xf32> to vector<1x16xf32>
    %c0_2 = arith.constant 0 : index
    %c0_3 = arith.constant 0 : index
    %2 = vector.load %arg3[%c0_2, %c0_3] : memref<8x16xf32, #tpu.memory_space<vmem>>, vector<8x16xf32>
    %3 = vector.broadcast %1 : vector<1x16xf32> to vector<8x16xf32>
    %4 = arith.mulf %2, %3 : vector<8x16xf32>
    %cst = arith.constant dense<0.000000e+00> : vector<8xf32>
    %5 = vector.multi_reduction <add>, %4, %cst [1] : vector<8x16xf32> to vector<8xf32>
    %6 = vector.shape_cast %5 : vector<8xf32> to vector<8x1xf32>
    %c0_4 = arith.constant 0 : index
    %c0_5 = arith.constant 0 : index
    %7 = vector.load %arg4[%c0_4, %c0_5] : memref<8x1xf32, #tpu.memory_space<vmem>>, vector<8x1xf32>
    %8 = arith.addf %6, %7 : vector<8x1xf32>
    %c0_6 = arith.constant 0 : index
    %c0_7 = arith.constant 0 : index
    %9 = vector.load %arg5[%c0_6, %c0_7] : memref<8x16xf32, #tpu.memory_space<vmem>>, vector<8x16xf32>
    %10 = vector.broadcast %1 : vector<1x16xf32> to vector<8x16xf32>
    %11 = arith.mulf %9, %10 : vector<8x16xf32>
    %cst_8 = arith.constant dense<0.000000e+00> : vector<8xf32>
    %12 = vector.multi_reduction <add>, %11, %cst_8 [1] : vector<8x16xf32> to vector<8xf32>
    %13 = vector.shape_cast %12 : vector<8xf32> to vector<8x1xf32>
    %c0_9 = arith.constant 0 : index
    %c0_10 = arith.constant 0 : index
    %14 = vector.load %arg6[%c0_9, %c0_10] : memref<8x1xf32, #tpu.memory_space<vmem>>, vector<8x1xf32>
    %15 = arith.addf %13, %14 : vector<8x1xf32>
    %c0_11 = arith.constant 0 : index
    %c0_12 = arith.constant 0 : index
    %c0_13 = arith.constant 0 : index
    %16 = vector.load %arg10[%c0_11, %c0_12, %c0_13] : memref<1x4x326xbf16, #tpu.memory_space<vmem>>, vector<1x4x326xbf16>
    %17 = vector.shape_cast %16 : vector<1x4x326xbf16> to vector<4x326xbf16>
    %18 = vector.extract_strided_slice %17 {offsets = [0, 0], sizes = [4, 288], strides = [1, 1]} : vector<4x326xbf16> to vector<4x288xbf16>
    %19 = vector.extract_strided_slice %17 {offsets = [0, 1], sizes = [4, 288], strides = [1, 1]} : vector<4x326xbf16> to vector<4x288xbf16>
    %20 = vector.extract_strided_slice %17 {offsets = [0, 2], sizes = [4, 288], strides = [1, 1]} : vector<4x326xbf16> to vector<4x288xbf16>
    %21 = vector.extract_strided_slice %17 {offsets = [0, 18], sizes = [4, 288], strides = [1, 1]} : vector<4x326xbf16> to vector<4x288xbf16>
    %22 = vector.extract_strided_slice %17 {offsets = [0, 19], sizes = [4, 288], strides = [1, 1]} : vector<4x326xbf16> to vector<4x288xbf16>
    %23 = vector.extract_strided_slice %17 {offsets = [0, 20], sizes = [4, 288], strides = [1, 1]} : vector<4x326xbf16> to vector<4x288xbf16>
    %24 = vector.extract_strided_slice %17 {offsets = [0, 36], sizes = [4, 288], strides = [1, 1]} : vector<4x326xbf16> to vector<4x288xbf16>
    %25 = vector.extract_strided_slice %17 {offsets = [0, 37], sizes = [4, 288], strides = [1, 1]} : vector<4x326xbf16> to vector<4x288xbf16>
    %26 = vector.extract_strided_slice %17 {offsets = [0, 38], sizes = [4, 288], strides = [1, 1]} : vector<4x326xbf16> to vector<4x288xbf16>
    %cst_14 = arith.constant 0.000000e+00 : f32
    %27 = vector.broadcast %cst_14 : f32 to vector<8x288xf32>
    %c0_15 = arith.constant 0 : index
    %c0_16 = arith.constant 0 : index
    %c0_17 = arith.constant 0 : index
    %28 = vector.load %arg7[%c0_15, %c0_16, %c0_17] : memref<16x8x4xbf16, #tpu.memory_space<vmem>>, vector<1x8x4xbf16>
    %29 = vector.shape_cast %28 : vector<1x8x4xbf16> to vector<8x4xbf16>
    %cst_18 = arith.constant dense<0.000000e+00> : vector<8x288xf32>
    %30 = tpu.matmul %29, %18, %cst_18 {dimension_numbers = #tpu.dot_dimension_numbers<[1], [0], [0], [1], [0, 0, 1, 1], [], []>} : vector<8x4xbf16>, vector<4x288xbf16>, vector<8x288xf32> -> vector<8x288xf32>
    %31 = arith.addf %27, %30 : vector<8x288xf32>
    %c1 = arith.constant 1 : index
    %c0_19 = arith.constant 0 : index
    %c0_20 = arith.constant 0 : index
    %32 = vector.load %arg7[%c1, %c0_19, %c0_20] : memref<16x8x4xbf16, #tpu.memory_space<vmem>>, vector<1x8x4xbf16>
    %33 = vector.shape_cast %32 : vector<1x8x4xbf16> to vector<8x4xbf16>
    %cst_21 = arith.constant dense<0.000000e+00> : vector<8x288xf32>
    %34 = tpu.matmul %33, %19, %cst_21 {dimension_numbers = #tpu.dot_dimension_numbers<[1], [0], [0], [1], [0, 0, 1, 1], [], []>} : vector<8x4xbf16>, vector<4x288xbf16>, vector<8x288xf32> -> vector<8x288xf32>
    %35 = arith.addf %31, %34 : vector<8x288xf32>
    %c2 = arith.constant 2 : index
    %c0_22 = arith.constant 0 : index
    %c0_23 = arith.constant 0 : index
    %36 = vector.load %arg7[%c2, %c0_22, %c0_23] : memref<16x8x4xbf16, #tpu.memory_space<vmem>>, vector<1x8x4xbf16>
    %37 = vector.shape_cast %36 : vector<1x8x4xbf16> to vector<8x4xbf16>
    %cst_24 = arith.constant dense<0.000000e+00> : vector<8x288xf32>
    %38 = tpu.matmul %37, %21, %cst_24 {dimension_numbers = #tpu.dot_dimension_numbers<[1], [0], [0], [1], [0, 0, 1, 1], [], []>} : vector<8x4xbf16>, vector<4x288xbf16>, vector<8x288xf32> -> vector<8x288xf32>
    %39 = arith.addf %35, %38 : vector<8x288xf32>
    %c3 = arith.constant 3 : index
    %c0_25 = arith.constant 0 : index
    %c0_26 = arith.constant 0 : index
    %40 = vector.load %arg7[%c3, %c0_25, %c0_26] : memref<16x8x4xbf16, #tpu.memory_space<vmem>>, vector<1x8x4xbf16>
    %41 = vector.shape_cast %40 : vector<1x8x4xbf16> to vector<8x4xbf16>
    %cst_27 = arith.constant dense<0.000000e+00> : vector<8x288xf32>
    %42 = tpu.matmul %41, %22, %cst_27 {dimension_numbers = #tpu.dot_dimension_numbers<[1], [0], [0], [1], [0, 0, 1, 1], [], []>} : vector<8x4xbf16>, vector<4x288xbf16>, vector<8x288xf32> -> vector<8x288xf32>
    %43 = arith.addf %39, %42 : vector<8x288xf32>
    %c0_28 = arith.constant 0 : index
    %c0_29 = arith.constant 0 : index
    %44 = vector.load %arg8[%c0_28, %c0_29] : memref<8x1xf32, #tpu.memory_space<vmem>>, vector<8x1xf32>
    %45 = vector.broadcast %44 : vector<8x1xf32> to vector<8x288xf32>
    %46 = arith.addf %43, %45 : vector<8x288xf32>
    %cst_30 = arith.constant 0.000000e+00 : f32
    %47 = vector.broadcast %cst_30 : f32 to vector<8x288xf32>
    %c4 = arith.constant 4 : index
    %c0_31 = arith.constant 0 : index
    %c0_32 = arith.constant 0 : index
    %48 = vector.load %arg7[%c4, %c0_31, %c0_32] : memref<16x8x4xbf16, #tpu.memory_space<vmem>>, vector<1x8x4xbf16>
    %49 = vector.shape_cast %48 : vector<1x8x4xbf16> to vector<8x4xbf16>
    %cst_33 = arith.constant dense<0.000000e+00> : vector<8x288xf32>
    %50 = tpu.matmul %49, %19, %cst_33 {dimension_numbers = #tpu.dot_dimension_numbers<[1], [0], [0], [1], [0, 0, 1, 1], [], []>} : vector<8x4xbf16>, vector<4x288xbf16>, vector<8x288xf32> -> vector<8x288xf32>
    %51 = arith.addf %47, %50 : vector<8x288xf32>
    %c5 = arith.constant 5 : index
    %c0_34 = arith.constant 0 : index
    %c0_35 = arith.constant 0 : index
    %52 = vector.load %arg7[%c5, %c0_34, %c0_35] : memref<16x8x4xbf16, #tpu.memory_space<vmem>>, vector<1x8x4xbf16>
    %53 = vector.shape_cast %52 : vector<1x8x4xbf16> to vector<8x4xbf16>
    %cst_36 = arith.constant dense<0.000000e+00> : vector<8x288xf32>
    %54 = tpu.matmul %53, %20, %cst_36 {dimension_numbers = #tpu.dot_dimension_numbers<[1], [0], [0], [1], [0, 0, 1, 1], [], []>} : vector<8x4xbf16>, vector<4x288xbf16>, vector<8x288xf32> -> vector<8x288xf32>
    %55 = arith.addf %51, %54 : vector<8x288xf32>
    %c6 = arith.constant 6 : index
    %c0_37 = arith.constant 0 : index
    %c0_38 = arith.constant 0 : index
    %56 = vector.load %arg7[%c6, %c0_37, %c0_38] : memref<16x8x4xbf16, #tpu.memory_space<vmem>>, vector<1x8x4xbf16>
    %57 = vector.shape_cast %56 : vector<1x8x4xbf16> to vector<8x4xbf16>
    %cst_39 = arith.constant dense<0.000000e+00> : vector<8x288xf32>
    %58 = tpu.matmul %57, %22, %cst_39 {dimension_numbers = #tpu.dot_dimension_numbers<[1], [0], [0], [1], [0, 0, 1, 1], [], []>} : vector<8x4xbf16>, vector<4x288xbf16>, vector<8x288xf32> -> vector<8x288xf32>
    %59 = arith.addf %55, %58 : vector<8x288xf32>
    %c7 = arith.constant 7 : index
    %c0_40 = arith.constant 0 : index
    %c0_41 = arith.constant 0 : index
    %60 = vector.load %arg7[%c7, %c0_40, %c0_41] : memref<16x8x4xbf16, #tpu.memory_space<vmem>>, vector<1x8x4xbf16>
    %61 = vector.shape_cast %60 : vector<1x8x4xbf16> to vector<8x4xbf16>
    %cst_42 = arith.constant dense<0.000000e+00> : vector<8x288xf32>
    %62 = tpu.matmul %61, %23, %cst_42 {dimension_numbers = #tpu.dot_dimension_numbers<[1], [0], [0], [1], [0, 0, 1, 1], [], []>} : vector<8x4xbf16>, vector<4x288xbf16>, vector<8x288xf32> -> vector<8x288xf32>
    %63 = arith.addf %59, %62 : vector<8x288xf32>
    %c0_43 = arith.constant 0 : index
    %c0_44 = arith.constant 0 : index
    %64 = vector.load %arg8[%c0_43, %c0_44] : memref<8x1xf32, #tpu.memory_space<vmem>>, vector<8x1xf32>
    %65 = vector.broadcast %64 : vector<8x1xf32> to vector<8x288xf32>
    %66 = arith.addf %63, %65 : vector<8x288xf32>
    %cst_45 = arith.constant 0.000000e+00 : f32
    %67 = vector.broadcast %cst_45 : f32 to vector<8x288xf32>
    %c8 = arith.constant 8 : index
    %c0_46 = arith.constant 0 : index
    %c0_47 = arith.constant 0 : index
    %68 = vector.load %arg7[%c8, %c0_46, %c0_47] : memref<16x8x4xbf16, #tpu.memory_space<vmem>>, vector<1x8x4xbf16>
    %69 = vector.shape_cast %68 : vector<1x8x4xbf16> to vector<8x4xbf16>
    %cst_48 = arith.constant dense<0.000000e+00> : vector<8x288xf32>
    %70 = tpu.matmul %69, %21, %cst_48 {dimension_numbers = #tpu.dot_dimension_numbers<[1], [0], [0], [1], [0, 0, 1, 1], [], []>} : vector<8x4xbf16>, vector<4x288xbf16>, vector<8x288xf32> -> vector<8x288xf32>
    %71 = arith.addf %67, %70 : vector<8x288xf32>
    %c9 = arith.constant 9 : index
    %c0_49 = arith.constant 0 : index
    %c0_50 = arith.constant 0 : index
    %72 = vector.load %arg7[%c9, %c0_49, %c0_50] : memref<16x8x4xbf16, #tpu.memory_space<vmem>>, vector<1x8x4xbf16>
    %73 = vector.shape_cast %72 : vector<1x8x4xbf16> to vector<8x4xbf16>
    %cst_51 = arith.constant dense<0.000000e+00> : vector<8x288xf32>
    %74 = tpu.matmul %73, %22, %cst_51 {dimension_numbers = #tpu.dot_dimension_numbers<[1], [0], [0], [1], [0, 0, 1, 1], [], []>} : vector<8x4xbf16>, vector<4x288xbf16>, vector<8x288xf32> -> vector<8x288xf32>
    %75 = arith.addf %71, %74 : vector<8x288xf32>
    %c10 = arith.constant 10 : index
    %c0_52 = arith.constant 0 : index
    %c0_53 = arith.constant 0 : index
    %76 = vector.load %arg7[%c10, %c0_52, %c0_53] : memref<16x8x4xbf16, #tpu.memory_space<vmem>>, vector<1x8x4xbf16>
    %77 = vector.shape_cast %76 : vector<1x8x4xbf16> to vector<8x4xbf16>
    %cst_54 = arith.constant dense<0.000000e+00> : vector<8x288xf32>
    %78 = tpu.matmul %77, %24, %cst_54 {dimension_numbers = #tpu.dot_dimension_numbers<[1], [0], [0], [1], [0, 0, 1, 1], [], []>} : vector<8x4xbf16>, vector<4x288xbf16>, vector<8x288xf32> -> vector<8x288xf32>
    %79 = arith.addf %75, %78 : vector<8x288xf32>
    %c11 = arith.constant 11 : index
    %c0_55 = arith.constant 0 : index
    %c0_56 = arith.constant 0 : index
    %80 = vector.load %arg7[%c11, %c0_55, %c0_56] : memref<16x8x4xbf16, #tpu.memory_space<vmem>>, vector<1x8x4xbf16>
    %81 = vector.shape_cast %80 : vector<1x8x4xbf16> to vector<8x4xbf16>
    %cst_57 = arith.constant dense<0.000000e+00> : vector<8x288xf32>
    %82 = tpu.matmul %81, %25, %cst_57 {dimension_numbers = #tpu.dot_dimension_numbers<[1], [0], [0], [1], [0, 0, 1, 1], [], []>} : vector<8x4xbf16>, vector<4x288xbf16>, vector<8x288xf32> -> vector<8x288xf32>
    %83 = arith.addf %79, %82 : vector<8x288xf32>
    %c0_58 = arith.constant 0 : index
    %c0_59 = arith.constant 0 : index
    %84 = vector.load %arg8[%c0_58, %c0_59] : memref<8x1xf32, #tpu.memory_space<vmem>>, vector<8x1xf32>
    %85 = vector.broadcast %84 : vector<8x1xf32> to vector<8x288xf32>
    %86 = arith.addf %83, %85 : vector<8x288xf32>
    %cst_60 = arith.constant 0.000000e+00 : f32
    %87 = vector.broadcast %cst_60 : f32 to vector<8x288xf32>
    %c12 = arith.constant 12 : index
    %c0_61 = arith.constant 0 : index
    %c0_62 = arith.constant 0 : index
    %88 = vector.load %arg7[%c12, %c0_61, %c0_62] : memref<16x8x4xbf16, #tpu.memory_space<vmem>>, vector<1x8x4xbf16>
    %89 = vector.shape_cast %88 : vector<1x8x4xbf16> to vector<8x4xbf16>
    %cst_63 = arith.constant dense<0.000000e+00> : vector<8x288xf32>
    %90 = tpu.matmul %89, %22, %cst_63 {dimension_numbers = #tpu.dot_dimension_numbers<[1], [0], [0], [1], [0, 0, 1, 1], [], []>} : vector<8x4xbf16>, vector<4x288xbf16>, vector<8x288xf32> -> vector<8x288xf32>
    %91 = arith.addf %87, %90 : vector<8x288xf32>
    %c13 = arith.constant 13 : index
    %c0_64 = arith.constant 0 : index
    %c0_65 = arith.constant 0 : index
    %92 = vector.load %arg7[%c13, %c0_64, %c0_65] : memref<16x8x4xbf16, #tpu.memory_space<vmem>>, vector<1x8x4xbf16>
    %93 = vector.shape_cast %92 : vector<1x8x4xbf16> to vector<8x4xbf16>
    %cst_66 = arith.constant dense<0.000000e+00> : vector<8x288xf32>
    %94 = tpu.matmul %93, %23, %cst_66 {dimension_numbers = #tpu.dot_dimension_numbers<[1], [0], [0], [1], [0, 0, 1, 1], [], []>} : vector<8x4xbf16>, vector<4x288xbf16>, vector<8x288xf32> -> vector<8x288xf32>
    %95 = arith.addf %91, %94 : vector<8x288xf32>
    %c14 = arith.constant 14 : index
    %c0_67 = arith.constant 0 : index
    %c0_68 = arith.constant 0 : index
    %96 = vector.load %arg7[%c14, %c0_67, %c0_68] : memref<16x8x4xbf16, #tpu.memory_space<vmem>>, vector<1x8x4xbf16>
    %97 = vector.shape_cast %96 : vector<1x8x4xbf16> to vector<8x4xbf16>
    %cst_69 = arith.constant dense<0.000000e+00> : vector<8x288xf32>
    %98 = tpu.matmul %97, %25, %cst_69 {dimension_numbers = #tpu.dot_dimension_numbers<[1], [0], [0], [1], [0, 0, 1, 1], [], []>} : vector<8x4xbf16>, vector<4x288xbf16>, vector<8x288xf32> -> vector<8x288xf32>
    %99 = arith.addf %95, %98 : vector<8x288xf32>
    %c15 = arith.constant 15 : index
    %c0_70 = arith.constant 0 : index
    %c0_71 = arith.constant 0 : index
    %100 = vector.load %arg7[%c15, %c0_70, %c0_71] : memref<16x8x4xbf16, #tpu.memory_space<vmem>>, vector<1x8x4xbf16>
    %101 = vector.shape_cast %100 : vector<1x8x4xbf16> to vector<8x4xbf16>
    %cst_72 = arith.constant dense<0.000000e+00> : vector<8x288xf32>
    %102 = tpu.matmul %101, %26, %cst_72 {dimension_numbers = #tpu.dot_dimension_numbers<[1], [0], [0], [1], [0, 0, 1, 1], [], []>} : vector<8x4xbf16>, vector<4x288xbf16>, vector<8x288xf32> -> vector<8x288xf32>
    %103 = arith.addf %99, %102 : vector<8x288xf32>
    %c0_73 = arith.constant 0 : index
    %c0_74 = arith.constant 0 : index
    %104 = vector.load %arg8[%c0_73, %c0_74] : memref<8x1xf32, #tpu.memory_space<vmem>>, vector<8x1xf32>
    %105 = vector.broadcast %104 : vector<8x1xf32> to vector<8x288xf32>
    %106 = arith.addf %103, %105 : vector<8x288xf32>
    %c0_75 = arith.constant 0 : index
    %c0_76 = arith.constant 0 : index
    %107 = vector.load %arg9[%c0_75, %c0_76] : memref<1x288xf32, #tpu.memory_space<vmem>>, vector<1x288xf32>
    %cst_77 = arith.constant 0.000000e+00 : f32
    %108 = vector.broadcast %cst_77 : f32 to vector<8x1xf32>
    %109 = vector.broadcast %107 : vector<1x288xf32> to vector<8x288xf32>
    %110 = arith.mulf %46, %109 : vector<8x288xf32>
    %cst_78 = arith.constant dense<0.000000e+00> : vector<8xf32>
    %111 = vector.multi_reduction <add>, %110, %cst_78 [1] : vector<8x288xf32> to vector<8xf32>
    %112 = vector.shape_cast %111 : vector<8xf32> to vector<8x1xf32>
    %113 = arith.addf %108, %112 : vector<8x1xf32>
    %114 = vector.broadcast %107 : vector<1x288xf32> to vector<8x288xf32>
    %115 = arith.mulf %66, %114 : vector<8x288xf32>
    %cst_79 = arith.constant dense<0.000000e+00> : vector<8xf32>
    %116 = vector.multi_reduction <add>, %115, %cst_79 [1] : vector<8x288xf32> to vector<8xf32>
    %117 = vector.shape_cast %116 : vector<8xf32> to vector<8x1xf32>
    %118 = arith.addf %113, %117 : vector<8x1xf32>
    %119 = vector.broadcast %107 : vector<1x288xf32> to vector<8x288xf32>
    %120 = arith.mulf %86, %119 : vector<8x288xf32>
    %cst_80 = arith.constant dense<0.000000e+00> : vector<8xf32>
    %121 = vector.multi_reduction <add>, %120, %cst_80 [1] : vector<8x288xf32> to vector<8xf32>
    %122 = vector.shape_cast %121 : vector<8xf32> to vector<8x1xf32>
    %123 = arith.addf %118, %122 : vector<8x1xf32>
    %124 = vector.broadcast %107 : vector<1x288xf32> to vector<8x288xf32>
    %125 = arith.mulf %106, %124 : vector<8x288xf32>
    %cst_81 = arith.constant dense<0.000000e+00> : vector<8xf32>
    %126 = vector.multi_reduction <add>, %125, %cst_81 [1] : vector<8x288xf32> to vector<8xf32>
    %127 = vector.shape_cast %126 : vector<8xf32> to vector<8x1xf32>
    %128 = arith.addf %123, %127 : vector<8x1xf32>
    %cst_82 = arith.constant 9.765625E-4 : f32
    %129 = vector.broadcast %cst_82 : f32 to vector<8x1xf32>
    %130 = arith.mulf %128, %129 : vector<8x1xf32>
    %cst_83 = arith.constant 0.000000e+00 : f32
    %131 = vector.broadcast %cst_83 : f32 to vector<8x1xf32>
    %132 = vector.broadcast %130 : vector<8x1xf32> to vector<8x288xf32>
    %133 = arith.subf %46, %132 : vector<8x288xf32>
    %134 = vector.broadcast %107 : vector<1x288xf32> to vector<8x288xf32>
    %135 = arith.mulf %133, %134 : vector<8x288xf32>
    %136 = arith.mulf %135, %135 : vector<8x288xf32>
    %cst_84 = arith.constant dense<0.000000e+00> : vector<8xf32>
    %137 = vector.multi_reduction <add>, %136, %cst_84 [1] : vector<8x288xf32> to vector<8xf32>
    %138 = vector.shape_cast %137 : vector<8xf32> to vector<8x1xf32>
    %139 = arith.addf %131, %138 : vector<8x1xf32>
    %140 = vector.broadcast %130 : vector<8x1xf32> to vector<8x288xf32>
    %141 = arith.subf %66, %140 : vector<8x288xf32>
    %142 = vector.broadcast %107 : vector<1x288xf32> to vector<8x288xf32>
    %143 = arith.mulf %141, %142 : vector<8x288xf32>
    %144 = arith.mulf %143, %143 : vector<8x288xf32>
    %cst_85 = arith.constant dense<0.000000e+00> : vector<8xf32>
    %145 = vector.multi_reduction <add>, %144, %cst_85 [1] : vector<8x288xf32> to vector<8xf32>
    %146 = vector.shape_cast %145 : vector<8xf32> to vector<8x1xf32>
    %147 = arith.addf %139, %146 : vector<8x1xf32>
    %148 = vector.broadcast %130 : vector<8x1xf32> to vector<8x288xf32>
    %149 = arith.subf %86, %148 : vector<8x288xf32>
    %150 = vector.broadcast %107 : vector<1x288xf32> to vector<8x288xf32>
    %151 = arith.mulf %149, %150 : vector<8x288xf32>
    %152 = arith.mulf %151, %151 : vector<8x288xf32>
    %cst_86 = arith.constant dense<0.000000e+00> : vector<8xf32>
    %153 = vector.multi_reduction <add>, %152, %cst_86 [1] : vector<8x288xf32> to vector<8xf32>
    %154 = vector.shape_cast %153 : vector<8xf32> to vector<8x1xf32>
    %155 = arith.addf %147, %154 : vector<8x1xf32>
    %156 = vector.broadcast %130 : vector<8x1xf32> to vector<8x288xf32>
    %157 = arith.subf %106, %156 : vector<8x288xf32>
    %158 = vector.broadcast %107 : vector<1x288xf32> to vector<8x288xf32>
    %159 = arith.mulf %157, %158 : vector<8x288xf32>
    %160 = arith.mulf %159, %159 : vector<8x288xf32>
    %cst_87 = arith.constant dense<0.000000e+00> : vector<8xf32>
    %161 = vector.multi_reduction <add>, %160, %cst_87 [1] : vector<8x288xf32> to vector<8xf32>
    %162 = vector.shape_cast %161 : vector<8xf32> to vector<8x1xf32>
    %163 = arith.addf %155, %162 : vector<8x1xf32>
    %cst_88 = arith.constant 9.765625E-4 : f32
    %164 = vector.broadcast %cst_88 : f32 to vector<8x1xf32>
    %165 = arith.mulf %163, %164 : vector<8x1xf32>
    %cst_89 = arith.constant 9.99999974E-6 : f32
    %166 = vector.broadcast %cst_89 : f32 to vector<8x1xf32>
    %167 = arith.addf %165, %166 : vector<8x1xf32>
    %168 = math.rsqrt %167 : vector<8x1xf32>
    %169 = arith.mulf %8, %168 : vector<8x1xf32>
    %170 = vector.broadcast %130 : vector<8x1xf32> to vector<8x288xf32>
    %171 = arith.subf %46, %170 : vector<8x288xf32>
    %172 = vector.broadcast %169 : vector<8x1xf32> to vector<8x288xf32>
    %173 = arith.mulf %171, %172 : vector<8x288xf32>
    %174 = vector.broadcast %15 : vector<8x1xf32> to vector<8x288xf32>
    %175 = arith.addf %173, %174 : vector<8x288xf32>
    %cst_90 = arith.constant 0.000000e+00 : f32
    %176 = vector.broadcast %cst_90 : f32 to vector<8x288xf32>
    %177 = arith.cmpf oge, %175, %176 : vector<8x288xf32>
    %cst_91 = arith.constant 2.000000e-01 : f32
    %178 = vector.broadcast %cst_91 : f32 to vector<8x288xf32>
    %179 = arith.mulf %178, %175 : vector<8x288xf32>
    %180 = arith.select %177, %175, %179 : vector<8x288xi1>, vector<8x288xf32>
    %c0_92 = arith.constant 0 : index
    %c0_93 = arith.constant 0 : index
    %c0_94 = arith.constant 0 : index
    %c0_95 = arith.constant 0 : index
    %181 = vector.load %arg11[%c0_92, %c0_93, %c0_94, %c0_95] : memref<1x4x8x288xf32, #tpu.memory_space<vmem>>, vector<1x1x8x288xf32>
    %182 = vector.shape_cast %181 : vector<1x1x8x288xf32> to vector<8x288xf32>
    %183 = vector.shape_cast %180 : vector<8x288xf32> to vector<1x1x8x288xf32>
    tpu.vector_store %arg11[%c0_92, %c0_93, %c0_94, %c0_95], %183 {strides = array<i32>} : memref<1x4x8x288xf32, #tpu.memory_space<vmem>>, vector<1x1x8x288xf32>,
    %184 = vector.broadcast %130 : vector<8x1xf32> to vector<8x288xf32>
    %185 = arith.subf %66, %184 : vector<8x288xf32>
    %186 = vector.broadcast %169 : vector<8x1xf32> to vector<8x288xf32>
    %187 = arith.mulf %185, %186 : vector<8x288xf32>
    %188 = vector.broadcast %15 : vector<8x1xf32> to vector<8x288xf32>
    %189 = arith.addf %187, %188 : vector<8x288xf32>
    %cst_96 = arith.constant 0.000000e+00 : f32
    %190 = vector.broadcast %cst_96 : f32 to vector<8x288xf32>
    %191 = arith.cmpf oge, %189, %190 : vector<8x288xf32>
    %cst_97 = arith.constant 2.000000e-01 : f32
    %192 = vector.broadcast %cst_97 : f32 to vector<8x288xf32>
    %193 = arith.mulf %192, %189 : vector<8x288xf32>
    %194 = arith.select %191, %189, %193 : vector<8x288xi1>, vector<8x288xf32>
    %c0_98 = arith.constant 0 : index
    %c1_99 = arith.constant 1 : index
    %c0_100 = arith.constant 0 : index
    %c0_101 = arith.constant 0 : index
    %195 = vector.load %arg11[%c0_98, %c1_99, %c0_100, %c0_101] : memref<1x4x8x288xf32, #tpu.memory_space<vmem>>, vector<1x1x8x288xf32>
    %196 = vector.shape_cast %195 : vector<1x1x8x288xf32> to vector<8x288xf32>
    %197 = vector.shape_cast %194 : vector<8x288xf32> to vector<1x1x8x288xf32>
    tpu.vector_store %arg11[%c0_98, %c1_99, %c0_100, %c0_101], %197 {strides = array<i32>} : memref<1x4x8x288xf32, #tpu.memory_space<vmem>>, vector<1x1x8x288xf32>,
    %198 = vector.broadcast %130 : vector<8x1xf32> to vector<8x288xf32>
    %199 = arith.subf %86, %198 : vector<8x288xf32>
    %200 = vector.broadcast %169 : vector<8x1xf32> to vector<8x288xf32>
    %201 = arith.mulf %199, %200 : vector<8x288xf32>
    %202 = vector.broadcast %15 : vector<8x1xf32> to vector<8x288xf32>
    %203 = arith.addf %201, %202 : vector<8x288xf32>
    %cst_102 = arith.constant 0.000000e+00 : f32
    %204 = vector.broadcast %cst_102 : f32 to vector<8x288xf32>
    %205 = arith.cmpf oge, %203, %204 : vector<8x288xf32>
    %cst_103 = arith.constant 2.000000e-01 : f32
    %206 = vector.broadcast %cst_103 : f32 to vector<8x288xf32>
    %207 = arith.mulf %206, %203 : vector<8x288xf32>
    %208 = arith.select %205, %203, %207 : vector<8x288xi1>, vector<8x288xf32>
    %c0_104 = arith.constant 0 : index
    %c2_105 = arith.constant 2 : index
    %c0_106 = arith.constant 0 : index
    %c0_107 = arith.constant 0 : index
    %209 = vector.load %arg11[%c0_104, %c2_105, %c0_106, %c0_107] : memref<1x4x8x288xf32, #tpu.memory_space<vmem>>, vector<1x1x8x288xf32>
    %210 = vector.shape_cast %209 : vector<1x1x8x288xf32> to vector<8x288xf32>
    %211 = vector.shape_cast %208 : vector<8x288xf32> to vector<1x1x8x288xf32>
    tpu.vector_store %arg11[%c0_104, %c2_105, %c0_106, %c0_107], %211 {strides = array<i32>} : memref<1x4x8x288xf32, #tpu.memory_space<vmem>>, vector<1x1x8x288xf32>,
    %212 = vector.broadcast %130 : vector<8x1xf32> to vector<8x288xf32>
    %213 = arith.subf %106, %212 : vector<8x288xf32>
    %214 = vector.broadcast %169 : vector<8x1xf32> to vector<8x288xf32>
    %215 = arith.mulf %213, %214 : vector<8x288xf32>
    %216 = vector.broadcast %15 : vector<8x1xf32> to vector<8x288xf32>
    %217 = arith.addf %215, %216 : vector<8x288xf32>
    %cst_108 = arith.constant 0.000000e+00 : f32
    %218 = vector.broadcast %cst_108 : f32 to vector<8x288xf32>
    %219 = arith.cmpf oge, %217, %218 : vector<8x288xf32>
    %cst_109 = arith.constant 2.000000e-01 : f32
    %220 = vector.broadcast %cst_109 : f32 to vector<8x288xf32>
    %221 = arith.mulf %220, %217 : vector<8x288xf32>
    %222 = arith.select %219, %217, %221 : vector<8x288xi1>, vector<8x288xf32>
    %c0_110 = arith.constant 0 : index
    %c3_111 = arith.constant 3 : index
    %c0_112 = arith.constant 0 : index
    %c0_113 = arith.constant 0 : index
    %223 = vector.load %arg11[%c0_110, %c3_111, %c0_112, %c0_113] : memref<1x4x8x288xf32, #tpu.memory_space<vmem>>, vector<1x1x8x288xf32>
    %224 = vector.shape_cast %223 : vector<1x1x8x288xf32> to vector<8x288xf32>
    %225 = vector.shape_cast %222 : vector<8x288xf32> to vector<1x1x8x288xf32>
    tpu.vector_store %arg11[%c0_110, %c3_111, %c0_112, %c0_113], %225 {strides = array<i32>} : memref<1x4x8x288xf32, #tpu.memory_space<vmem>>, vector<1x1x8x288xf32>,
    return
  }
  func.func @transform_0(%arg0: i32, %arg1: i32) -> (i32, i32, i32) {
    %c0_i32 = arith.constant 0 : i32
    %c0_i32_0 = arith.constant 0 : i32
    %c0_i32_1 = arith.constant 0 : i32
    return %arg0, %c0_i32, %c0_i32_0 : i32, i32, i32
  }
  func.func @transform_1(%arg0: i32, %arg1: i32) -> (i32, i32) {
    %c0_i32 = arith.constant 0 : i32
    %c0_i32_0 = arith.constant 0 : i32
    return %arg1, %c0_i32 : i32, i32
  }
  func.func @transform_2(%arg0: i32, %arg1: i32) -> (i32, i32) {
    %c0_i32 = arith.constant 0 : i32
    %c0_i32_0 = arith.constant 0 : i32
    return %arg1, %c0_i32 : i32, i32
  }
  func.func @transform_3(%arg0: i32, %arg1: i32) -> (i32, i32) {
    %c0_i32 = arith.constant 0 : i32
    %c0_i32_0 = arith.constant 0 : i32
    return %arg1, %c0_i32 : i32, i32
  }
  func.func @transform_4(%arg0: i32, %arg1: i32) -> (i32, i32) {
    %c0_i32 = arith.constant 0 : i32
    %c0_i32_0 = arith.constant 0 : i32
    return %arg1, %c0_i32 : i32, i32
  }
  func.func @transform_5(%arg0: i32, %arg1: i32) -> (i32, i32, i32) {
    %c0_i32 = arith.constant 0 : i32
    %c0_i32_0 = arith.constant 0 : i32
    %c0_i32_1 = arith.constant 0 : i32
    return %c0_i32, %arg1, %c0_i32_0 : i32, i32, i32
  }
  func.func @transform_6(%arg0: i32, %arg1: i32) -> (i32, i32) {
    %c0_i32 = arith.constant 0 : i32
    %c0_i32_0 = arith.constant 0 : i32
    return %arg1, %c0_i32 : i32, i32
  }
  func.func @transform_7(%arg0: i32, %arg1: i32) -> (i32, i32) {
    %c0_i32 = arith.constant 0 : i32
    %c0_i32_0 = arith.constant 0 : i32
    %c0_i32_1 = arith.constant 0 : i32
    return %c0_i32, %c0_i32_0 : i32, i32
  }
  func.func @transform_8(%arg0: i32, %arg1: i32) -> (i32, i32, i32) {
    %c0_i32 = arith.constant 0 : i32
    %c0_i32_0 = arith.constant 0 : i32
    %c0_i32_1 = arith.constant 0 : i32
    return %arg0, %c0_i32, %c0_i32_0 : i32, i32, i32
  }
  func.func @transform_9(%arg0: i32, %arg1: i32) -> (i32, i32, i32, i32) {
    %c0_i32 = arith.constant 0 : i32
    %c0_i32_0 = arith.constant 0 : i32
    %c0_i32_1 = arith.constant 0 : i32
    return %arg0, %c0_i32, %arg1, %c0_i32_0 : i32, i32, i32, i32
  }
}

</mosaic_0001>

<llo_original>
// kernel: tile.8
$region0: #{tile.8}
  #allocation0 [shape = 's32[1]{0}', space=sflag, size = 0x4, scoped, tag = 'scoped memory for tile.8']
  %s0 = inlined_call_operand.vmem [shape: f32[18], index: 0, kind: input, shape index: {}]
  %s1 = inlined_call_operand.vmem [shape: f32[16,18], index: 1, kind: output, shape index: {}]
  // Predicated region
  $region2: #{tile.8} parent=0 // pred_check
    _
  $region3: #{tile.8} parent=0 // pred_check_branch
    %3 = sbr.rel (0) target = $region5
  $region4: #{tile.8} parent=0 // pred_region
    _
  $region5: #{tile.8} parent=0 // pred_fallthru
    _
  %v4 = vld [vmem:[%s0] ss:$0 sm:$0xff]
  %5 = vst [vmem:[%s1] sm:$0xff] %v4
  %s6 = scalar_lea.vmem %s1, 8
  %7 = vst [vmem:[%s6] sm:$0xff] %v4

// kernel: tile.9
$region0: #{tile.9}
  %s0 = inlined_call_operand.vmem [shape: f32[16,18], index: 0, kind: input, shape index: {}]
  %s1 = inlined_call_operand.hbm [shape: f32[1,288], index: 1, kind: output, shape index: {}]
  $region1: #{tile.9} parent=0
    #allocation0 [shape = 'u8[1536]{0}', space=vmem, size = 0x800, scoped, tag = 'operand span for operand 1']
    #allocation1 [shape = 's32[1]{0}', space=sflag, size = 0x4, scoped, tag = 'scoped memory for tile.9']
    #allocation2 [shape = 'u8[12288]{0}', space=vmem, size = 0x3000, scoped, tag = 'scoped mem for output reshape']
    %2 = vsyncpa [#allocation1], 0
    %v3 = vld [vmem:[%s0] sm:$0x1]
    %vm4 = vcmask 146432
    %5 = vst.msk [vmem:[#allocation2] sm:$0x1] %vm4, %v3
    %s6 = scalar_lea.vmem %s0, 7
    %v7 = vld [vmem:[%s6] sm:$0x1]
    %s8 = scalar_lea.vmem %s0, 7
    %v9 = vld [vmem:[%s8] sm:$0x1]
    %vm10 = vcmask 15360
    %v11 = vsel %vm10, %v9, %v7
    %12 = vrot.lane.b32.xlu0 %v11, 126
    %v13 = vpop.permute.xlu0 %12
    %vm14 = vcmask 130048
    %s15 = scalar_lea.vmem [#allocation2], 8
    %16 = vst.msk [vmem:[%s15] sm:$0x1] %vm14, %v13
    %vm17 = vcmask 1048560
    %18 = vst.msk [vmem:[#allocation2] sm:$0x1] %vm17, %v13
    %s19 = scalar_lea.vmem %s0, 14
    %v20 = vld [vmem:[%s19] sm:$0x1]
    %s21 = scalar_lea.vmem %s0, 14
    %v22 = vld [vmem:[%s21] sm:$0x1]
    %vm23 = vcmask 31744
    %v24 = vsel %vm23, %v22, %v20
    %25 = vrot.lane.b32.xlu0 %v24, 124
    %v26 = vpop.permute.xlu0 %25
    %vm27 = vcmask 113664
    %s28 = scalar_lea.vmem [#allocation2], 16
    %29 = vst.msk [vmem:[%s28] sm:$0x1] %vm27, %v26
    %vm30 = vcmask 1048544
    %s31 = scalar_lea.vmem [#allocation2], 8
    %32 = vst.msk [vmem:[%s31] sm:$0x1] %vm30, %v26
    %s33 = scalar_lea.vmem %s0, 6
    %v34 = vld [vmem:[%s33] sm:$0x1]
    %35 = vrot.lane.b32.xlu0 %v34, 108
    %v36 = vpop.permute.xlu0 %35
    %vm37 = vcmask 1032032
    %38 = vst.msk [vmem:[#allocation2] sm:$0x1] %vm37, %v36
    %s39 = scalar_lea.vmem %s0, 13
    %v40 = vld [vmem:[%s39] sm:$0x1]
    %41 = vrot.lane.b32.xlu0 %v40, 106
    %v42 = vpop.permute.xlu0 %41
    %vm43 = vcmask 1015632
    %s44 = scalar_lea.vmem [#allocation2], 8
    %45 = vst.msk [vmem:[%s44] sm:$0x1] %vm43, %v42
    %s46 = scalar_lea.vmem %s0, 5
    %v47 = vld [vmem:[%s46] sm:$0x1]
    %48 = vrot.lane.b32.xlu0 %v47, 90
    %v49 = vpop.permute.xlu0 %48
    %vm50 = vcmask 884432
    %51 = vst.msk [vmem:[#allocation2] sm:$0x1] %vm50, %v49
    %s52 = scalar_lea.vmem %s0, 12
    %v53 = vld [vmem:[%s52] sm:$0x1]
    %54 = vrot.lane.b32.xlu0 %v53, 88
    %v55 = vpop.permute.xlu0 %54
    %vm56 = vcmask 868032
    %s57 = scalar_lea.vmem [#allocation2], 8
    %58 = vst.msk [vmem:[%s57] sm:$0x1] %vm56, %v55
    %s59 = scalar_lea.vmem %s0, 4
    %v60 = vld [vmem:[%s59] sm:$0x1]
    %61 = vrot.lane.b32.xlu0 %v60, 72
    %v62 = vpop.permute.xlu0 %61
    %vm63 = vcmask 736832
    %64 = vst.msk [vmem:[#allocation2] sm:$0x1] %vm63, %v62
    %s65 = scalar_lea.vmem %s0, 11
    %v66 = vld [vmem:[%s65] sm:$0x1]
    %67 = vrot.lane.b32.xlu0 %v66, 70
    %v68 = vpop.permute.xlu0 %67
    %vm69 = vcmask 720432
    %s70 = scalar_lea.vmem [#allocation2], 8
    %71 = vst.msk [vmem:[%s70] sm:$0x1] %vm69, %v68
    %s72 = scalar_lea.vmem %s0, 3
    %v73 = vld [vmem:[%s72] sm:$0x1]
    %74 = vrot.lane.b32.xlu0 %v73, 54
    %v75 = vpop.permute.xlu0 %74
    %vm76 = vcmask 589232
    %77 = vst.msk [vmem:[#allocation2] sm:$0x1] %vm76, %v75
    %s78 = scalar_lea.vmem %s0, 10
    %v79 = vld [vmem:[%s78] sm:$0x1]
    %80 = vrot.lane.b32.xlu0 %v79, 52
    %v81 = vpop.permute.xlu0 %80
    %vm82 = vcmask 572832
    %s83 = scalar_lea.vmem [#allocation2], 8
    %84 = vst.msk [vmem:[%s83] sm:$0x1] %vm82, %v81
    %s85 = scalar_lea.vmem %s0, 2
    %v86 = vld [vmem:[%s85] sm:$0x1]
    %87 = vrot.lane.b32.xlu0 %v86, 36
    %v88 = vpop.permute.xlu0 %87
    %vm89 = vcmask 441632
    %90 = vst.msk [vmem:[#allocation2] sm:$0x1] %vm89, %v88
    %s91 = scalar_lea.vmem %s0, 9
    %v92 = vld [vmem:[%s91] sm:$0x1]
    %93 = vrot.lane.b32.xlu0 %v92, 34
    %v94 = vpop.permute.xlu0 %93
    %vm95 = vcmask 425232
    %s96 = scalar_lea.vmem [#allocation2], 8
    %97 = vst.msk [vmem:[%s96] sm:$0x1] %vm95, %v94
    %s98 = scalar_lea.vmem %s0, 1
    %v99 = vld [vmem:[%s98] sm:$0x1]
    %100 = vrot.lane.b32.xlu0 %v99, 18
    %v101 = vpop.permute.xlu0 %100
    %vm102 = vcmask 294032
    %103 = vst.msk [vmem:[#allocation2] sm:$0x1] %vm102, %v101
    %s104 = scalar_lea.vmem %s0, 8
    %v105 = vld [vmem:[%s104] sm:$0x1]
    %106 = vrot.lane.b32.xlu0 %v105, 16
    %v107 = vpop.permute.xlu0 %106
    %vm108 = vcmask 277632
    %s109 = scalar_lea.vmem [#allocation2], 8
    %110 = vst.msk [vmem:[%s109] sm:$0x1] %vm108, %v107
    %s111 = scalar_lea.vmem %s0, 15
    %v112 = vld [vmem:[%s111] sm:$0x1]
    %113 = vrot.lane.b32.xlu0 %v112, 14
    %v114 = vpop.permute.xlu0 %113
    %vm115 = vcmask 261232
    %s116 = scalar_lea.vmem [#allocation2], 16
    %117 = vst.msk [vmem:[%s116] sm:$0x1] %vm115, %v114
    %s119 = sshllo.u32 0, 1
    %v121 = vld [vmem:[#allocation2] sm:%s119]
    %s122 = sshllo.u32 0, 1
    %123 = vst [vmem:[#allocation0] sm:%s122] %v121
    %s124 = scalar_lea.vmem [#allocation2], 8
    %v125 = vld [vmem:[%s124] sm:%s119]
    %s126 = sshllo.u32 0, 1
    %s127 = scalar_lea.vmem [#allocation0], 1
    %128 = vst [vmem:[%s127] sm:%s126] %v125
    %s129 = scalar_lea.vmem [#allocation2], 16
    %v130 = vld [vmem:[%s129] sm:%s119]
    %s131 = sshllo.u32 0, 1
    %s132 = smul.addr 1, 2
    %s133 = scalar_lea.vmem [#allocation0], %s132
    %134 = vst [vmem:[%s133] sm:%s131] %v130
    %s136 = ssub.s32 48, 48
    %137 = vsyncadd [#allocation1], %s136
    %s139 = sshll.u32 [#allocation0], 4
    %s140 = int_to_ptr.vmem [resolvable:$true] %s139
    %142 = dma.vmem_to_hbm [thread:$0]  %s140, 48, %s1, [#allocation1]
    %143 = dma.done [#allocation1], 48
    %144 = vsyncpa [#allocation1], 1

// kernel: up_block.1
$region0: #{up_block.1}
  #allocation0 [shape = 'u32[]', space=smem, size = 0x4, offset = 0x4, fixed_abs, tag = 'smem constant byte address 0x4 - core index']
  #allocation1 [shape = 'u32[144,128]{1,0:T(1,128)}', space=vmem, size = 0x12000, scoped, tag = 'internal scratch']
  %s0 = inlined_call_operand.hbm [shape: f32[2,1,16], index: 0, kind: input, shape index: {}]
  %s1 = inlined_call_operand.hbm [shape: f32[8,16], index: 1, kind: input, shape index: {}]
  %s2 = inlined_call_operand.hbm [shape: f32[8,1], index: 2, kind: input, shape index: {}]
  %s3 = inlined_call_operand.hbm [shape: f32[8,16], index: 3, kind: input, shape index: {}]
  %s4 = inlined_call_operand.hbm [shape: f32[8,1], index: 4, kind: input, shape index: {}]
  %s5 = inlined_call_operand.hbm [shape: bf16[16,8,4], index: 5, kind: input, shape index: {}]
  %s6 = inlined_call_operand.hbm [shape: f32[8,1], index: 6, kind: input, shape index: {}]
  %s7 = inlined_call_operand.hbm [shape: f32[1,288], index: 7, kind: input, shape index: {}]
  %s8 = inlined_call_operand.hbm [shape: bf16[2,4,326], index: 8, kind: input, shape index: {}]
  %s9 = inlined_call_operand.hbm [shape: f32[2,4,8,288], index: 9, kind: output, shape index: {}]
  %s10 = sld [smem:[#allocation0]]
  $region105: #{up_block.1} parent=0
    _
  %s12 = ssub.s32 1, %s10
  %s13 = scalar_select 0, %s12, %s10
  $region1: #{up_block.1} parent=0
    #allocation2 [shape = 'u8[1024]{0}', space=vmem, size = 0x400, scoped, tag = 'input window, operand 0']
    #allocation3 [shape = 's32[2]{0}', space=sflag, size = 0x8, scoped, tag = 'scoped memory for up_block.1']
    #allocation4 [shape = 's32[2]{0}', space=sflag, size = 0x8, scoped, tag = 'scoped memory for up_block.1']
    #allocation5 [shape = 'u8[4096]{0}', space=vmem, size = 0x1000, scoped, tag = 'input window, operand 1, single buffered']
    #allocation6 [shape = 's32[1]{0}', space=sflag, size = 0x4, scoped, tag = 'scoped memory for up_block.1']
    #allocation7 [shape = 'u8[4096]{0}', space=vmem, size = 0x1000, scoped, tag = 'input window, operand 2, single buffered']
    #allocation8 [shape = 'u8[4096]{0}', space=vmem, size = 0x1000, scoped, tag = 'input window, operand 3, single buffered']
    #allocation9 [shape = 's32[1]{0}', space=sflag, size = 0x4, scoped, tag = 'scoped memory for up_block.1']
    #allocation10 [shape = 'u8[4096]{0}', space=vmem, size = 0x1000, scoped, tag = 'input window, operand 4, single buffered']
    #allocation11 [shape = 'u8[32768]{0}', space=vmem, size = 0x8000, scoped, tag = 'input window, operand 5, single buffered']
    #allocation12 [shape = 's32[1]{0}', space=sflag, size = 0x4, scoped, tag = 'scoped memory for up_block.1']
    #allocation13 [shape = 'u8[4096]{0}', space=vmem, size = 0x1000, scoped, tag = 'input window, operand 6, single buffered']
    #allocation14 [shape = 'u8[1536]{0}', space=vmem, size = 0x800, scoped, tag = 'input window, operand 7, single buffered']
    #allocation15 [shape = 's32[1]{0}', space=sflag, size = 0x4, scoped, tag = 'scoped memory for up_block.1']
    #allocation16 [shape = 'u8[6144]{0}', space=vmem, size = 0x1800, scoped, tag = 'input window, operand 8']
    #allocation17 [shape = 'u8[98304]{0}', space=vmem, size = 0x18000, scoped, tag = 'output window, operand 0']
    %14 = vsyncpa [#allocation3], 0
    %s15 = scalar_lea.sflag [#allocation3], 1
    %16 = vsyncpa %s15, 0
    %17 = vsyncpa [#allocation6], 0
    %18 = vsyncpa [#allocation9], 0
    %19 = vsyncpa [#allocation12], 0
    %20 = vsyncpa [#allocation15], 0
    %21 = vsyncpa [#allocation4], 0
    %s22 = scalar_lea.sflag [#allocation4], 1
    %23 = vsyncpa %s22, 0
    loop: start=0, step=1, limit=4
    $region2: #{up_block.1} parent=1 // loop_pre_header
      _
    $region3: #{up_block.1} parent=1 // loop_header
      %s25 = sphi 0, %s29
      %p26 = scmp.ge.s32.totalorder %s25, 4
      %s32 = sphi 0, %s44
      %s33 = sphi 0, %s40
      %s34 = sphi 0, %s32
      %s35 = sphi 0, %s33
      %s36 = sphi 0, %s34
      %s37 = sphi 0, %s35
      %s47 = sphi 0, %s49
      %s50 = sphi 0, %s47
      %s51 = sphi 0, %s50
      %s67 = sphi 0, %s51
      %s73 = sphi 0, %s75
      %s76 = sphi 0, %s73
      %s77 = sphi 0, %s76
      %s93 = sphi 0, %s77
      %s99 = sphi 0, %s101
      %s102 = sphi 0, %s99
      %s103 = sphi 0, %s102
      %s119 = sphi 0, %s103
      %s125 = sphi 0, %s127
      %s128 = sphi 0, %s125
      %s129 = sphi 0, %s128
      %s145 = sphi 0, %s129
      %s151 = sphi 0, %s153
      %s154 = sphi 0, %s151
      %s155 = sphi 0, %s154
      %s171 = sphi 0, %s155
      %s177 = sphi 0, %s179
      %s180 = sphi 0, %s177
      %s181 = sphi 0, %s180
      %s197 = sphi 0, %s181
      %s203 = sphi 0, %s205
      %s206 = sphi 0, %s203
      %s207 = sphi 0, %s206
      %s223 = sphi 0, %s207
      %s227 = sphi 0, %s227
      %s229 = sphi 0, %s227
      %s230 = sphi 0, %s229
      %s244 = sphi 0, %s230
      %s250 = sphi 0, %s252
      %s253 = sphi 0, %s250
      %s254 = sphi 0, %s253
      %s270 = sphi 0, %s254
      %s278 = sphi 0, %s280
      %s281 = sphi 0, %s278
      %s282 = sphi 0, %s281
      %s298 = sphi 0, %s282
    $region4: #{up_block.1} parent=1 // loop_header_branch
      %28 = sbr.rel (%p26) target = $region8
    $region5: #{up_block.1} parent=1 // loop_body
      %s30 = ssub.s32 %s25, 1
      %s31 = ssub.s32 %s25, 2
      %s38 = sadd.s32 1, %s33
      %p39 = scmp.ge.s32.totalorder %s38, 1
      %s40 = scalar_select %p39, 0, %s38
      %s41 = sadd.s32 1, %s32
      %s42 = scalar_select %p39, %s41, %s32
      %p43 = scmp.ge.s32.totalorder %s42, 2
      %s44 = scalar_select %p43, 0, %s42
      %s45 = ssub.s32 %s32, %s44
      %p46 = scmp.eq.s32.totalorder %s45, 0
      %s48 = sadd.s32 %s47, 1
      %s49 = scalar_select %p46, %s47, %s48
      %p52 = pneg %p46
      %p53 = scmp.eq.s32.totalorder %s25, 1
      %p54 = por %p52, %p53
      %p55 = scmp.ne.s32.totalorder %s47, %s50
      %p56 = scmp.eq.s32.totalorder %s25, 0
      %p57 = por %p55, %p56
      %p58 = scmp.ne.s32.totalorder %s47, %s50
      %p59 = scmp.eq.s32.totalorder %s30, 1
      %p60 = por %p58, %p59
      %p61 = scmp.ne.s32.totalorder %s50, %s51
      %p62 = scmp.eq.s32.totalorder %s30, 0
      %p63 = por %p61, %p62
      %p64 = scmp.ne.s32.totalorder %s50, %s51
      %p65 = scmp.eq.s32.totalorder %s31, 1
      %p66 = por %p64, %p65
      %p68 = scmp.ne.s32.totalorder %s51, %s67
      %p69 = scmp.eq.s32.totalorder %s31, 0
      %p70 = por %p68, %p69
      %s71 = ssub.s32 %s33, %s40
      %p72 = scmp.eq.s32.totalorder %s71, 0
      %s74 = sadd.s32 %s73, 1
      %s75 = scalar_select %p72, %s73, %s74
      %p78 = pneg %p72
      %p79 = scmp.eq.s32.totalorder %s25, 1
      %p80 = por %p78, %p79
      %p81 = scmp.ne.s32.totalorder %s73, %s76
      %p82 = scmp.eq.s32.totalorder %s25, 0
      %p83 = por %p81, %p82
      %p84 = scmp.ne.s32.totalorder %s73, %s76
      %p85 = scmp.eq.s32.totalorder %s30, 1
      %p86 = por %p84, %p85
      %p87 = scmp.ne.s32.totalorder %s76, %s77
      %p88 = scmp.eq.s32.totalorder %s30, 0
      %p89 = por %p87, %p88
      %p90 = scmp.ne.s32.totalorder %s76, %s77
      %p91 = scmp.eq.s32.totalorder %s31, 1
      %p92 = por %p90, %p91
      %p94 = scmp.ne.s32.totalorder %s77, %s93
      %p95 = scmp.eq.s32.totalorder %s31, 0
      %p96 = por %p94, %p95
      %s97 = ssub.s32 %s33, %s40
      %p98 = scmp.eq.s32.totalorder %s97, 0
      %s100 = sadd.s32 %s99, 1
      %s101 = scalar_select %p98, %s99, %s100
      %p104 = pneg %p98
      %p105 = scmp.eq.s32.totalorder %s25, 1
      %p106 = por %p104, %p105
      %p107 = scmp.ne.s32.totalorder %s99, %s102
      %p108 = scmp.eq.s32.totalorder %s25, 0
      %p109 = por %p107, %p108
      %p110 = scmp.ne.s32.totalorder %s99, %s102
      %p111 = scmp.eq.s32.totalorder %s30, 1
      %p112 = por %p110, %p111
      %p113 = scmp.ne.s32.totalorder %s102, %s103
      %p114 = scmp.eq.s32.totalorder %s30, 0
      %p115 = por %p113, %p114
      %p116 = scmp.ne.s32.totalorder %s102, %s103
      %p117 = scmp.eq.s32.totalorder %s31, 1
      %p118 = por %p116, %p117
      %p120 = scmp.ne.s32.totalorder %s103, %s119
      %p121 = scmp.eq.s32.totalorder %s31, 0
      %p122 = por %p120, %p121
      %s123 = ssub.s32 %s33, %s40
      %p124 = scmp.eq.s32.totalorder %s123, 0
      %s126 = sadd.s32 %s125, 1
      %s127 = scalar_select %p124, %s125, %s126
      %p130 = pneg %p124
      %p131 = scmp.eq.s32.totalorder %s25, 1
      %p132 = por %p130, %p131
      %p133 = scmp.ne.s32.totalorder %s125, %s128
      %p134 = scmp.eq.s32.totalorder %s25, 0
      %p135 = por %p133, %p134
      %p136 = scmp.ne.s32.totalorder %s125, %s128
      %p137 = scmp.eq.s32.totalorder %s30, 1
      %p138 = por %p136, %p137
      %p139 = scmp.ne.s32.totalorder %s128, %s129
      %p140 = scmp.eq.s32.totalorder %s30, 0
      %p141 = por %p139, %p140
      %p142 = scmp.ne.s32.totalorder %s128, %s129
      %p143 = scmp.eq.s32.totalorder %s31, 1
      %p144 = por %p142, %p143
      %p146 = scmp.ne.s32.totalorder %s129, %s145
      %p147 = scmp.eq.s32.totalorder %s31, 0
      %p148 = por %p146, %p147
      %s149 = ssub.s32 %s33, %s40
      %p150 = scmp.eq.s32.totalorder %s149, 0
      %s152 = sadd.s32 %s151, 1
      %s153 = scalar_select %p150, %s151, %s152
      %p156 = pneg %p150
      %p157 = scmp.eq.s32.totalorder %s25, 1
      %p158 = por %p156, %p157
      %p159 = scmp.ne.s32.totalorder %s151, %s154
      %p160 = scmp.eq.s32.totalorder %s25, 0
      %p161 = por %p159, %p160
      %p162 = scmp.ne.s32.totalorder %s151, %s154
      %p163 = scmp.eq.s32.totalorder %s30, 1
      %p164 = por %p162, %p163
      %p165 = scmp.ne.s32.totalorder %s154, %s155
      %p166 = scmp.eq.s32.totalorder %s30, 0
      %p167 = por %p165, %p166
      %p168 = scmp.ne.s32.totalorder %s154, %s155
      %p169 = scmp.eq.s32.totalorder %s31, 1
      %p170 = por %p168, %p169
      %p172 = scmp.ne.s32.totalorder %s155, %s171
      %p173 = scmp.eq.s32.totalorder %s31, 0
      %p174 = por %p172, %p173
      %s175 = ssub.s32 %s33, %s40
      %p176 = scmp.eq.s32.totalorder %s175, 0
      %s178 = sadd.s32 %s177, 1
      %s179 = scalar_select %p176, %s177, %s178
      %p182 = pneg %p176
      %p183 = scmp.eq.s32.totalorder %s25, 1
      %p184 = por %p182, %p183
      %p185 = scmp.ne.s32.totalorder %s177, %s180
      %p186 = scmp.eq.s32.totalorder %s25, 0
      %p187 = por %p185, %p186
      %p188 = scmp.ne.s32.totalorder %s177, %s180
      %p189 = scmp.eq.s32.totalorder %s30, 1
      %p190 = por %p188, %p189
      %p191 = scmp.ne.s32.totalorder %s180, %s181
      %p192 = scmp.eq.s32.totalorder %s30, 0
      %p193 = por %p191, %p192
      %p194 = scmp.ne.s32.totalorder %s180, %s181
      %p195 = scmp.eq.s32.totalorder %s31, 1
      %p196 = por %p194, %p195
      %p198 = scmp.ne.s32.totalorder %s181, %s197
      %p199 = scmp.eq.s32.totalorder %s31, 0
      %p200 = por %p198, %p199
      %s201 = ssub.s32 %s33, %s40
      %p202 = scmp.eq.s32.totalorder %s201, 0
      %s204 = sadd.s32 %s203, 1
      %s205 = scalar_select %p202, %s203, %s204
      %p208 = pneg %p202
      %p209 = scmp.eq.s32.totalorder %s25, 1
      %p210 = por %p208, %p209
      %p211 = scmp.ne.s32.totalorder %s203, %s206
      %p212 = scmp.eq.s32.totalorder %s25, 0
      %p213 = por %p211, %p212
      %p214 = scmp.ne.s32.totalorder %s203, %s206
      %p215 = scmp.eq.s32.totalorder %s30, 1
      %p216 = por %p214, %p215
      %p217 = scmp.ne.s32.totalorder %s206, %s207
      %p218 = scmp.eq.s32.totalorder %s30, 0
      %p219 = por %p217, %p218
      %p220 = scmp.ne.s32.totalorder %s206, %s207
      %p221 = scmp.eq.s32.totalorder %s31, 1
      %p222 = por %p220, %p221
      %p224 = scmp.ne.s32.totalorder %s207, %s223
      %p225 = scmp.eq.s32.totalorder %s31, 0
      %p226 = por %p224, %p225
      %s228 = sadd.s32 %s227, 1
      %p231 = scmp.eq.s32.totalorder %s25, 1
      %p232 = scmp.ne.s32.totalorder %s227, %s229
      %p233 = scmp.eq.s32.totalorder %s25, 0
      %p234 = por %p232, %p233
      %p235 = scmp.ne.s32.totalorder %s227, %s229
      %p236 = scmp.eq.s32.totalorder %s30, 1
      %p237 = por %p235, %p236
      %p238 = scmp.ne.s32.totalorder %s229, %s230
      %p239 = scmp.eq.s32.totalorder %s30, 0
      %p240 = por %p238, %p239
      %p241 = scmp.ne.s32.totalorder %s229, %s230
      %p242 = scmp.eq.s32.totalorder %s31, 1
      %p243 = por %p241, %p242
      %p245 = scmp.ne.s32.totalorder %s230, %s244
      %p246 = scmp.eq.s32.totalorder %s31, 0
      %p247 = por %p245, %p246
      %s248 = ssub.s32 %s32, %s44
      %p249 = scmp.eq.s32.totalorder %s248, 0
      %s251 = sadd.s32 %s250, 1
      %s252 = scalar_select %p249, %s250, %s251
      %p255 = pneg %p249
      %p256 = scmp.eq.s32.totalorder %s25, 1
      %p257 = por %p255, %p256
      %p258 = scmp.ne.s32.totalorder %s250, %s253
      %p259 = scmp.eq.s32.totalorder %s25, 0
      %p260 = por %p258, %p259
      %p261 = scmp.ne.s32.totalorder %s250, %s253
      %p262 = scmp.eq.s32.totalorder %s30, 1
      %p263 = por %p261, %p262
      %p264 = scmp.ne.s32.totalorder %s253, %s254
      %p265 = scmp.eq.s32.totalorder %s30, 0
      %p266 = por %p264, %p265
      %p267 = scmp.ne.s32.totalorder %s253, %s254
      %p268 = scmp.eq.s32.totalorder %s31, 1
      %p269 = por %p267, %p268
      %p271 = scmp.ne.s32.totalorder %s254, %s270
      %p272 = scmp.eq.s32.totalorder %s31, 0
      %p273 = por %p271, %p272
      %s274 = ssub.s32 %s32, %s44
      %s275 = ssub.s32 %s33, %s40
      %s276 = sor.u32 %s274, %s275
      %p277 = scmp.eq.s32.totalorder %s276, 0
      %s279 = sadd.s32 %s278, 1
      %s280 = scalar_select %p277, %s278, %s279
      %p283 = pneg %p277
      %p284 = scmp.eq.s32.totalorder %s25, 1
      %p285 = por %p283, %p284
      %p286 = scmp.ne.s32.totalorder %s278, %s281
      %p287 = scmp.eq.s32.totalorder %s25, 0
      %p288 = por %p286, %p287
      %p289 = scmp.ne.s32.totalorder %s278, %s281
      %p290 = scmp.eq.s32.totalorder %s30, 1
      %p291 = por %p289, %p290
      %p292 = scmp.ne.s32.totalorder %s281, %s282
      %p293 = scmp.eq.s32.totalorder %s30, 0
      %p294 = por %p292, %p293
      %p295 = scmp.ne.s32.totalorder %s281, %s282
      %p296 = scmp.eq.s32.totalorder %s31, 1
      %p297 = por %p295, %p296
      %p299 = scmp.ne.s32.totalorder %s282, %s298
      %p300 = scmp.eq.s32.totalorder %s31, 0
      %p301 = por %p299, %p300
      %p302 = scmp.le.s32.totalorder 1, %s25
      %p303 = scmp.lt.s32.totalorder %s25, 3
      %p304 = pnand %p302, %p303
      %p305 = pneg %p304
      // Predicated region
      $region9: #{up_block.1} parent=5 // pred_check
        _
      $region10: #{up_block.1} parent=5 // pred_check_branch
        %307 = sbr.rel (%p304) target = $region12
      $region11: #{up_block.1} parent=5 // pred_region
        %s308 = ssub.s32 %s25, 1
        // Predicated region
        $region13: #{up_block.1} parent=11 // pred_check
          %p309 = pneg %p89
        $region14: #{up_block.1} parent=11 // pred_check_branch
          %311 = sbr.rel (%p309) target = $region16
        $region15: #{up_block.1} parent=11 // pred_region
          %s313 = ssub.s32 128, 128
          %314 = vsyncadd [#allocation6], %s313
          %s315 = smul.addr %s35, 128
          %s316 = scalar_lea.hbm %s1, %s315
          %s318 = sshll.u32 [#allocation5], 4
          %s319 = int_to_ptr.vmem [resolvable:$true] %s318
          %321 = dma.hbm_to_vmem [thread:$0]  %s316, 128, %s319, [#allocation6]
        $region16: #{up_block.1} parent=11 // pred_fallthru
          _
        // Predicated region
        $region17: #{up_block.1} parent=11 // pred_check
          %p322 = pneg %p115
        $region18: #{up_block.1} parent=11 // pred_check_branch
          %324 = sbr.rel (%p322) target = $region20
        $region19: #{up_block.1} parent=11 // pred_region
          %s326 = ssub.s32 128, 128
          %327 = vsyncadd [#allocation6], %s326
          %s328 = smul.addr %s35, 128
          %s329 = scalar_lea.hbm %s2, %s328
          %s331 = sshll.u32 [#allocation7], 4
          %s332 = int_to_ptr.vmem [resolvable:$true] %s331
          %334 = dma.hbm_to_vmem [thread:$0]  %s329, 128, %s332, [#allocation6]
        $region20: #{up_block.1} parent=11 // pred_fallthru
          _
        // Predicated region
        $region21: #{up_block.1} parent=11 // pred_check
          %p335 = pneg %p141
        $region22: #{up_block.1} parent=11 // pred_check_branch
          %337 = sbr.rel (%p335) target = $region24
        $region23: #{up_block.1} parent=11 // pred_region
          %s339 = ssub.s32 128, 128
          %340 = vsyncadd [#allocation9], %s339
          %s341 = smul.addr %s35, 128
          %s342 = scalar_lea.hbm %s3, %s341
          %s344 = sshll.u32 [#allocation8], 4
          %s345 = int_to_ptr.vmem [resolvable:$true] %s344
          %347 = dma.hbm_to_vmem [thread:$0]  %s342, 128, %s345, [#allocation9]
        $region24: #{up_block.1} parent=11 // pred_fallthru
          _
        // Predicated region
        $region25: #{up_block.1} parent=11 // pred_check
          %p348 = pneg %p167
        $region26: #{up_block.1} parent=11 // pred_check_branch
          %350 = sbr.rel (%p348) target = $region28
        $region27: #{up_block.1} parent=11 // pred_region
          %s352 = ssub.s32 128, 128
          %353 = vsyncadd [#allocation9], %s352
          %s354 = smul.addr %s35, 128
          %s355 = scalar_lea.hbm %s4, %s354
          %s357 = sshll.u32 [#allocation10], 4
          %s358 = int_to_ptr.vmem [resolvable:$true] %s357
          %360 = dma.hbm_to_vmem [thread:$0]  %s355, 128, %s358, [#allocation9]
        $region28: #{up_block.1} parent=11 // pred_fallthru
          _
        // Predicated region
        $region29: #{up_block.1} parent=11 // pred_check
          %p361 = pneg %p193
        $region30: #{up_block.1} parent=11 // pred_check_branch
          %363 = sbr.rel (%p361) target = $region32
        $region31: #{up_block.1} parent=11 // pred_region
          %s365 = ssub.s32 1024, 1024
          %366 = vsyncadd [#allocation12], %s365
          %s367 = smul.addr %s35, 64
          %s368 = scalar_lea.hbm %s5, %s367
          %s369 = sshll.u32 [#allocation11], 4
          %s370 = int_to_ptr.vmem [resolvable:$true] %s369
          %375 = dma.hbm_to_vmem [thread:$0]  %s368, 1024, %s370, [#allocation12], 64, 64, 4
        $region32: #{up_block.1} parent=11 // pred_fallthru
          _
        // Predicated region
        $region33: #{up_block.1} parent=11 // pred_check
          %p376 = pneg %p219
        $region34: #{up_block.1} parent=11 // pred_check_branch
          %378 = sbr.rel (%p376) target = $region36
        $region35: #{up_block.1} parent=11 // pred_region
          %s380 = ssub.s32 128, 128
          %381 = vsyncadd [#allocation12], %s380
          %s382 = smul.addr %s35, 128
          %s383 = scalar_lea.hbm %s6, %s382
          %s385 = sshll.u32 [#allocation13], 4
          %s386 = int_to_ptr.vmem [resolvable:$true] %s385
          %388 = dma.hbm_to_vmem [thread:$0]  %s383, 128, %s386, [#allocation12]
        $region36: #{up_block.1} parent=11 // pred_fallthru
          _
        // Predicated region
        $region37: #{up_block.1} parent=11 // pred_check
          %p389 = pneg %p240
        $region38: #{up_block.1} parent=11 // pred_check_branch
          %391 = sbr.rel (%p389) target = $region40
        $region39: #{up_block.1} parent=11 // pred_region
          %s393 = ssub.s32 48, 48
          %394 = vsyncadd [#allocation15], %s393
          %s396 = sshll.u32 [#allocation14], 4
          %s397 = int_to_ptr.vmem [resolvable:$true] %s396
          %399 = dma.hbm_to_vmem [thread:$0]  %s7, 48, %s397, [#allocation15]
        $region40: #{up_block.1} parent=11 // pred_fallthru
          _
      $region12: #{up_block.1} parent=5 // pred_fallthru
        _
      %p400 = scmp.lt.s32.totalorder %s25, 2
      // Predicated region
      $region41: #{up_block.1} parent=5 // pred_check
        %p401 = pneg %p400
      $region42: #{up_block.1} parent=5 // pred_check_branch
        %403 = sbr.rel (%p401) target = $region44
      $region43: #{up_block.1} parent=5 // pred_region
        // Predicated region
        $region45: #{up_block.1} parent=43 // pred_check
          %p404 = pneg %p57
        $region46: #{up_block.1} parent=43 // pred_check_branch
          %406 = sbr.rel (%p404) target = $region48
        $region47: #{up_block.1} parent=43 // pred_region
          %s407 = sand.u32 %s25, 1
          %s408 = scalar_lea.sflag [#allocation3], %s407
          %s409 = sand.u32 %s47, 1
          %s410 = scalar_lea.vmem [#allocation2], %s409
          %s412 = ssub.s32 16, 16
          %413 = vsyncadd %s408, %s412
          %s414 = smul.addr %s32, 16
          %s415 = scalar_lea.hbm %s0, %s414
          %s417 = sshll.u32 %s410, 4
          %s418 = int_to_ptr.vmem [resolvable:$true] %s417
          %420 = dma.hbm_to_vmem [thread:$0]  %s415, 16, %s418, %s408
        $region48: #{up_block.1} parent=43 // pred_fallthru
          _
        // Predicated region
        $region49: #{up_block.1} parent=43 // pred_check
          %p421 = pneg %p260
        $region50: #{up_block.1} parent=43 // pred_check_branch
          %423 = sbr.rel (%p421) target = $region52
        $region51: #{up_block.1} parent=43 // pred_region
          %s424 = sand.u32 %s25, 1
          %s425 = scalar_lea.sflag [#allocation3], %s424
          %s426 = sand.u32 %s250, 1
          %s427 = smul.addr %s426, 6
          %s428 = scalar_lea.vmem [#allocation16], %s427
          %s430 = ssub.s32 96, 96
          %431 = vsyncadd %s425, %s430
          %s432 = smul.addr %s32, 3
          %s433 = smul.addr %s432, 32
          %s434 = scalar_lea.hbm %s8, %s433
          %s436 = sshll.u32 %s428, 4
          %s437 = int_to_ptr.vmem [resolvable:$true] %s436
          %439 = dma.hbm_to_vmem [thread:$0]  %s434, 96, %s437, %s425
        $region52: #{up_block.1} parent=43 // pred_fallthru
          _
      $region44: #{up_block.1} parent=5 // pred_fallthru
        _
      %p440 = scmp.le.s32.totalorder 1, %s25
      %p441 = scmp.lt.s32.totalorder %s25, 3
      %p442 = pnand %p440, %p441
      %p443 = pneg %p442
      // Predicated region
      $region53: #{up_block.1} parent=5 // pred_check
        _
      $region54: #{up_block.1} parent=5 // pred_check_branch
        %445 = sbr.rel (%p442) target = $region56
      $region55: #{up_block.1} parent=5 // pred_region
        %s446 = ssub.s32 %s25, 1
        %s447 = sand.u32 %s30, 1
        %s448 = scalar_lea.sflag [#allocation3], %s447
        %s449 = sand.u32 %s50, 1
        %s450 = scalar_lea.vmem [#allocation2], %s449
        // Predicated region
        $region57: #{up_block.1} parent=55 // pred_check
          %p451 = pneg %p63
        $region58: #{up_block.1} parent=55 // pred_check_branch
          %453 = sbr.rel (%p451) target = $region60
        $region59: #{up_block.1} parent=55 // pred_region
          %454 = dma.done %s448, 16
        $region60: #{up_block.1} parent=55 // pred_fallthru
          _
        // Predicated region
        $region61: #{up_block.1} parent=55 // pred_check
          %p455 = pneg %p89
        $region62: #{up_block.1} parent=55 // pred_check_branch
          %457 = sbr.rel (%p455) target = $region64
        $region63: #{up_block.1} parent=55 // pred_region
          %458 = dma.done [#allocation6], 128
        $region64: #{up_block.1} parent=55 // pred_fallthru
          _
        // Predicated region
        $region65: #{up_block.1} parent=55 // pred_check
          %p459 = pneg %p115
        $region66: #{up_block.1} parent=55 // pred_check_branch
          %461 = sbr.rel (%p459) target = $region68
        $region67: #{up_block.1} parent=55 // pred_region
          %462 = dma.done [#allocation6], 128
        $region68: #{up_block.1} parent=55 // pred_fallthru
          _
        // Predicated region
        $region69: #{up_block.1} parent=55 // pred_check
          %p463 = pneg %p141
        $region70: #{up_block.1} parent=55 // pred_check_branch
          %465 = sbr.rel (%p463) target = $region72
        $region71: #{up_block.1} parent=55 // pred_region
          %466 = dma.done [#allocation9], 128
        $region72: #{up_block.1} parent=55 // pred_fallthru
          _
        // Predicated region
        $region73: #{up_block.1} parent=55 // pred_check
          %p467 = pneg %p167
        $region74: #{up_block.1} parent=55 // pred_check_branch
          %469 = sbr.rel (%p467) target = $region76
        $region75: #{up_block.1} parent=55 // pred_region
          %470 = dma.done [#allocation9], 128
        $region76: #{up_block.1} parent=55 // pred_fallthru
          _
        // Predicated region
        $region77: #{up_block.1} parent=55 // pred_check
          %p471 = pneg %p193
        $region78: #{up_block.1} parent=55 // pred_check_branch
          %473 = sbr.rel (%p471) target = $region80
        $region79: #{up_block.1} parent=55 // pred_region
          %474 = dma.done [#allocation12], 1024
        $region80: #{up_block.1} parent=55 // pred_fallthru
          _
        // Predicated region
        $region81: #{up_block.1} parent=55 // pred_check
          %p475 = pneg %p219
        $region82: #{up_block.1} parent=55 // pred_check_branch
          %477 = sbr.rel (%p475) target = $region84
        $region83: #{up_block.1} parent=55 // pred_region
          %478 = dma.done [#allocation12], 128
        $region84: #{up_block.1} parent=55 // pred_fallthru
          _
        // Predicated region
        $region85: #{up_block.1} parent=55 // pred_check
          %p479 = pneg %p240
        $region86: #{up_block.1} parent=55 // pred_check_branch
          %481 = sbr.rel (%p479) target = $region88
        $region87: #{up_block.1} parent=55 // pred_region
          %482 = dma.done [#allocation15], 48
        $region88: #{up_block.1} parent=55 // pred_fallthru
          _
        %s483 = sand.u32 %s30, 1
        %s484 = scalar_lea.sflag [#allocation3], %s483
        %s485 = sand.u32 %s253, 1
        %s486 = smul.addr %s485, 6
        %s487 = scalar_lea.vmem [#allocation16], %s486
        // Predicated region
        $region89: #{up_block.1} parent=55 // pred_check
          %p488 = pneg %p266
        $region90: #{up_block.1} parent=55 // pred_check_branch
          %490 = sbr.rel (%p488) target = $region92
        $region91: #{up_block.1} parent=55 // pred_region
          %491 = dma.done %s484, 96
        $region92: #{up_block.1} parent=55 // pred_fallthru
          _
        %s492 = sand.u32 %s30, 1
        %s493 = scalar_lea.sflag [#allocation3], %s492
        %s494 = sand.u32 %s50, 1
        %s495 = scalar_lea.vmem [#allocation2], %s494
        %p496 = pneg %p63
        %p497 = pneg %p60
        %p498 = pneg %p89
        %p499 = pneg %p86
        %p500 = pneg %p115
        %p501 = pneg %p112
        %p502 = pneg %p141
        %p503 = pneg %p138
        %p504 = pneg %p167
        %p505 = pneg %p164
        %p506 = pneg %p193
        %p507 = pneg %p190
        %p508 = pneg %p219
        %p509 = pneg %p216
        %p510 = pneg %p240
        %p511 = pneg %p237
        %s512 = sand.u32 %s30, 1
        %s513 = scalar_lea.sflag [#allocation3], %s512
        %s514 = sand.u32 %s253, 1
        %s515 = smul.addr %s514, 6
        %s516 = scalar_lea.vmem [#allocation16], %s515
        %p517 = pneg %p266
        %p518 = pneg %p263
        %p519 = pneg %p294
        %p520 = pneg %p291
        %s521 = sand.u32 %s281, 1
        %s522 = scalar_lea.sflag [#allocation4], %s521
        %s523 = sand.u32 %s281, 1
        %s524 = smul.addr %s523, 96
        %s525 = scalar_lea.vmem [#allocation17], %s524
        %v527 = vld [vmem:[%s450] sm:$0x1]
        %v528 = vld [vmem:[#allocation5] sm:$0xff]
        %v530 = vlaneseq
        %v531 = vshrl.u32 %v530, 7
        %v532 = vsub.s32 0, %v531
        %v533 = vrot.slane %v527, %v532
        %v535 = vmul.f32 %v528, %v533
        %vm536 = vcmask 130048
        %v537 = vsel %vm536, %v535, 0.0
        %538 = vadd.xlane.f32.xlu0 %v537
        %v539 = vpop.xlane.xlu0 %538
        %v540 = vld [vmem:[#allocation7] sm:$0xff]
        %v541 = vadd.f32 %v539, %v540
        %v542 = vld [vmem:[#allocation8] sm:$0xff]
        %v543 = vmul.f32 %v542, %v533
        %v544 = vsel %vm536, %v543, 0.0
        %545 = vadd.xlane.f32.xlu0 %v544
        %v546 = vpop.xlane.xlu0 %545
        %v547 = vld [vmem:[#allocation10] sm:$0xff]
        %v548 = vadd.f32 %v546, %v547
        %v549 = vld [vmem:[%s487] sm:$0x3f]
        %v550 = vld [vmem:[#allocation11] sm:$0xf]
        %s551 = scalar_lea.vmem [#allocation11], 4
        %v552 = vld [vmem:[%s551] sm:$0xf]
        %v554 = vcombine.high %v549, %v549
        %v556 = vunpack.c.l.s4 1983009808
        %v557 = vunpack.c.0.s8 %v556
        %v558 = vlaneseq
        %v559 = vshrl.u32 %v558, 7
        %v560 = vsub.s32 %v557, %v559
        %v561 = vrot.slane %v549, %v560
        %v563 = vunpack.c.l.s4 1983009808
        %v564 = vunpack.c.0.s8 %v563
        %v565 = vlaneseq
        %v566 = vshrl.u32 %v565, 7
        %v567 = vsub.s32 %v564, %v566
        %v568 = vrot.slane %v554, %v567
        %v569 = vcombine.high %v561, %v561
        %570 = vrot.lane.b32.xlu0 %v561, 127
        %v571 = vpop.permute.xlu0 %570
        %572 = vrot.lane.b32.xlu0 %v569, 127
        %v573 = vpop.permute.xlu0 %572
        %574 = vrot.lane.b32.xlu0 %v568, 127
        %v575 = vpop.permute.xlu0 %574
        %vm576 = vcmask 1039360
        %v577 = vsel %vm576, %v571, %v573
        %v578 = vsel %vm576, %v573, %v575
        %vm579 = vcmask 31744
        %v581 = vsel %vm579, %v552, 0
        %vm583 = vcmask 1041408
        %v585 = vsel %vm583, %v577, 0
        %v588 = vsel %vm583, %v578, 0
        %v591 = vsel %vm583, %v575, 0
        %593 = vmatprep.subr.bf16.mxu0 %v588
        %594 = vmatpush1.bf16.msra.mxu0 %v585
        %595 = vmatprep.subr.bf16.mxu0 0
        %596 = vmatpush1.bf16.msra.mxu0 0
        %597 = vmatprep.subr.bf16.mxu0 0
        %598 = vmatpush1.bf16.msra.mxu0 0
        %599 = vmatprep.subr.bf16.mxu0 0
        %600 = vmatpush1.bf16.msra.mxu0 0
        %601 = vmatprep.subr.bf16.mxu0 0
        %602 = vmatpush1.bf16.msra.mxu0 0
        %603 = vmatprep.subr.bf16.mxu0 0
        %604 = vmatpush1.bf16.msra.mxu0 0
        %605 = vmatprep.subr.bf16.mxu0 0
        %606 = vmatpush1.bf16.msra.mxu0 0
        %607 = vmatprep.subr.bf16.mxu0 0
        %608 = vmatpush1.bf16.msra.mxu0 0
        %609 = vmatprep.subr.bf16.mxu0 0
        %610 = vmatpush1.bf16.msra.mxu0 0
        %611 = vmatprep.subr.bf16.mxu0 0
        %612 = vmatpush1.bf16.msra.mxu0 0
        %613 = vmatprep.subr.bf16.mxu0 0
        %614 = vmatpush1.bf16.msra.mxu0 0
        %615 = vmatprep.subr.bf16.mxu0 0
        %616 = vmatpush1.bf16.msra.mxu0 0
        %617 = vmatprep.subr.bf16.mxu0 0
        %618 = vmatpush1.bf16.msra.mxu0 0
        %619 = vmatprep.subr.bf16.mxu0 0
        %620 = vmatpush1.bf16.msra.mxu0 0
        %621 = vmatprep.subr.bf16.mxu0 0
        %622 = vmatpush1.bf16.msra.mxu0 0
        %623 = vmatprep.subr.bf16.mxu0 0
        %624 = vmatpush1.bf16.msra.mxu0 0
        %625 = vmatprep.mubr.bf16.mxu0 0
        %626 = vmatmul.mubr.bf16.gmra.mrb[0].mxu0 %v581
        %v627 = vpop.f32.mrb[0].mxu0
        %v628 = vadd.f32 0.0, %v627
        %v629 = vpop.f32.mrb[0].mxu0
        %v630 = vadd.f32 0.0, %v629
        %v631 = vpop.f32.mrb[0].mxu0
        %v632 = vpop.f32.mrb[0].mxu0
        %633 = vdwg.mxu0
        %634 = vmatprep.subr.bf16.mxu0 0
        %635 = vmatpush1.bf16.msra.mxu0 %v591
        %636 = vmatprep.subr.bf16.mxu0 0
        %637 = vmatpush1.bf16.msra.mxu0 0
        %638 = vmatprep.subr.bf16.mxu0 0
        %639 = vmatpush1.bf16.msra.mxu0 0
        %640 = vmatprep.subr.bf16.mxu0 0
        %641 = vmatpush1.bf16.msra.mxu0 0
        %642 = vmatprep.subr.bf16.mxu0 0
        %643 = vmatpush1.bf16.msra.mxu0 0
        %644 = vmatprep.subr.bf16.mxu0 0
        %645 = vmatpush1.bf16.msra.mxu0 0
        %646 = vmatprep.subr.bf16.mxu0 0
        %647 = vmatpush1.bf16.msra.mxu0 0
        %648 = vmatprep.subr.bf16.mxu0 0
        %649 = vmatpush1.bf16.msra.mxu0 0
        %650 = vmatprep.subr.bf16.mxu0 0
        %651 = vmatpush1.bf16.msra.mxu0 0
        %652 = vmatprep.subr.bf16.mxu0 0
        %653 = vmatpush1.bf16.msra.mxu0 0
        %654 = vmatprep.subr.bf16.mxu0 0
        %655 = vmatpush1.bf16.msra.mxu0 0
        %656 = vmatprep.subr.bf16.mxu0 0
        %657 = vmatpush1.bf16.msra.mxu0 0
        %658 = vmatprep.subr.bf16.mxu0 0
        %659 = vmatpush1.bf16.msra.mxu0 0
        %660 = vmatprep.subr.bf16.mxu0 0
        %661 = vmatpush1.bf16.msra.mxu0 0
        %662 = vmatprep.subr.bf16.mxu0 0
        %663 = vmatpush1.bf16.msra.mxu0 0
        %664 = vmatprep.subr.bf16.mxu0 0
        %665 = vmatpush1.bf16.msra.mxu0 0
        %666 = vmatprep.mubr.bf16.mxu0 0
        %667 = vmatmul.mubr.bf16.gmra.mrb[0].mxu0 %v581
        %v668 = vpop.f32.mrb[0].mxu0
        %v669 = vadd.f32 0.0, %v668
        %v670 = vpop.f32.mrb[0].mxu0
        %v671 = vpop.f32.mrb[0].mxu0
        %v672 = vpop.f32.mrb[0].mxu0
        %673 = vdwg.mxu0
        %v675 = vsel %vm579, %v550, 0
        %v678 = vsel %vm583, %v561, 0
        %v681 = vsel %vm583, %v569, 0
        %v684 = vsel %vm583, %v568, 0
        %686 = vmatprep.subr.bf16.mxu0 %v681
        %687 = vmatpush1.bf16.msra.mxu0 %v678
        %688 = vmatprep.subr.bf16.mxu0 0
        %689 = vmatpush1.bf16.msra.mxu0 0
        %690 = vmatprep.subr.bf16.mxu0 0
        %691 = vmatpush1.bf16.msra.mxu0 0
        %692 = vmatprep.subr.bf16.mxu0 0
        %693 = vmatpush1.bf16.msra.mxu0 0
        %694 = vmatprep.subr.bf16.mxu0 0
        %695 = vmatpush1.bf16.msra.mxu0 0
        %696 = vmatprep.subr.bf16.mxu0 0
        %697 = vmatpush1.bf16.msra.mxu0 0
        %698 = vmatprep.subr.bf16.mxu0 0
        %699 = vmatpush1.bf16.msra.mxu0 0
        %700 = vmatprep.subr.bf16.mxu0 0
        %701 = vmatpush1.bf16.msra.mxu0 0
        %702 = vmatprep.subr.bf16.mxu0 0
        %703 = vmatpush1.bf16.msra.mxu0 0
        %704 = vmatprep.subr.bf16.mxu0 0
        %705 = vmatpush1.bf16.msra.mxu0 0
        %706 = vmatprep.subr.bf16.mxu0 0
        %707 = vmatpush1.bf16.msra.mxu0 0
        %708 = vmatprep.subr.bf16.mxu0 0
        %709 = vmatpush1.bf16.msra.mxu0 0
        %710 = vmatprep.subr.bf16.mxu0 0
        %711 = vmatpush1.bf16.msra.mxu0 0
        %712 = vmatprep.subr.bf16.mxu0 0
        %713 = vmatpush1.bf16.msra.mxu0 0
        %714 = vmatprep.subr.bf16.mxu0 0
        %715 = vmatpush1.bf16.msra.mxu0 0
        %716 = vmatprep.subr.bf16.mxu0 0
        %717 = vmatpush1.bf16.msra.mxu0 0
        %718 = vmatprep.mubr.bf16.mxu0 0
        %719 = vmatmul.mubr.bf16.gmra.mrb[0].mxu0 %v675
        %v720 = vpop.f32.mrb[0].mxu0
        %v721 = vadd.f32 %v628, %v720
        %v722 = vpop.f32.mrb[0].mxu0
        %v723 = vadd.f32 %v630, %v722
        %v724 = vpop.f32.mrb[0].mxu0
        %v725 = vpop.f32.mrb[0].mxu0
        %726 = vdwg.mxu0
        %727 = vmatprep.subr.bf16.mxu0 0
        %728 = vmatpush1.bf16.msra.mxu0 %v684
        %729 = vmatprep.subr.bf16.mxu0 0
        %730 = vmatpush1.bf16.msra.mxu0 0
        %731 = vmatprep.subr.bf16.mxu0 0
        %732 = vmatpush1.bf16.msra.mxu0 0
        %733 = vmatprep.subr.bf16.mxu0 0
        %734 = vmatpush1.bf16.msra.mxu0 0
        %735 = vmatprep.subr.bf16.mxu0 0
        %736 = vmatpush1.bf16.msra.mxu0 0
        %737 = vmatprep.subr.bf16.mxu0 0
        %738 = vmatpush1.bf16.msra.mxu0 0
        %739 = vmatprep.subr.bf16.mxu0 0
        %740 = vmatpush1.bf16.msra.mxu0 0
        %741 = vmatprep.subr.bf16.mxu0 0
        %742 = vmatpush1.bf16.msra.mxu0 0
        %743 = vmatprep.subr.bf16.mxu0 0
        %744 = vmatpush1.bf16.msra.mxu0 0
        %745 = vmatprep.subr.bf16.mxu0 0
        %746 = vmatpush1.bf16.msra.mxu0 0
        %747 = vmatprep.subr.bf16.mxu0 0
        %748 = vmatpush1.bf16.msra.mxu0 0
        %749 = vmatprep.subr.bf16.mxu0 0
        %750 = vmatpush1.bf16.msra.mxu0 0
        %751 = vmatprep.subr.bf16.mxu0 0
        %752 = vmatpush1.bf16.msra.mxu0 0
        %753 = vmatprep.subr.bf16.mxu0 0
        %754 = vmatpush1.bf16.msra.mxu0 0
        %755 = vmatprep.subr.bf16.mxu0 0
        %756 = vmatpush1.bf16.msra.mxu0 0
        %757 = vmatprep.subr.bf16.mxu0 0
        %758 = vmatpush1.bf16.msra.mxu0 0
        %759 = vmatprep.mubr.bf16.mxu0 0
        %760 = vmatmul.mubr.bf16.gmra.mrb[0].mxu0 %v675
        %v761 = vpop.f32.mrb[0].mxu0
        %v762 = vadd.f32 %v669, %v761
        %v763 = vpop.f32.mrb[0].mxu0
        %v764 = vpop.f32.mrb[0].mxu0
        %v765 = vpop.f32.mrb[0].mxu0
        %766 = vdwg.mxu0
        %s767 = scalar_lea.vmem [#allocation11], 8
        %v768 = vld [vmem:[%s767] sm:$0xf]
        %769 = vrot.lane.b32.xlu0 %v561, 110
        %v770 = vpop.permute.xlu0 %769
        %771 = vrot.lane.b32.xlu0 %v569, 110
        %v772 = vpop.permute.xlu0 %771
        %773 = vrot.lane.b32.xlu0 %v568, 110
        %v774 = vpop.permute.xlu0 %773
        %vm775 = vcmask 900096
        %v776 = vsel %vm775, %v770, %v772
        %v777 = vsel %vm775, %v772, %v774
        %v779 = vsel %vm579, %v768, 0
        %v782 = vsel %vm583, %v776, 0
        %v785 = vsel %vm583, %v777, 0
        %v788 = vsel %vm583, %v774, 0
        %790 = vmatprep.subr.bf16.mxu0 %v785
        %791 = vmatpush1.bf16.msra.mxu0 %v782
        %792 = vmatprep.subr.bf16.mxu0 0
        %793 = vmatpush1.bf16.msra.mxu0 0
        %794 = vmatprep.subr.bf16.mxu0 0
        %795 = vmatpush1.bf16.msra.mxu0 0
        %796 = vmatprep.subr.bf16.mxu0 0
        %797 = vmatpush1.bf16.msra.mxu0 0
        %798 = vmatprep.subr.bf16.mxu0 0
        %799 = vmatpush1.bf16.msra.mxu0 0
        %800 = vmatprep.subr.bf16.mxu0 0
        %801 = vmatpush1.bf16.msra.mxu0 0
        %802 = vmatprep.subr.bf16.mxu0 0
        %803 = vmatpush1.bf16.msra.mxu0 0
        %804 = vmatprep.subr.bf16.mxu0 0
        %805 = vmatpush1.bf16.msra.mxu0 0
        %806 = vmatprep.subr.bf16.mxu0 0
        %807 = vmatpush1.bf16.msra.mxu0 0
        %808 = vmatprep.subr.bf16.mxu0 0
        %809 = vmatpush1.bf16.msra.mxu0 0
        %810 = vmatprep.subr.bf16.mxu0 0
        %811 = vmatpush1.bf16.msra.mxu0 0
        %812 = vmatprep.subr.bf16.mxu0 0
        %813 = vmatpush1.bf16.msra.mxu0 0
        %814 = vmatprep.subr.bf16.mxu0 0
        %815 = vmatpush1.bf16.msra.mxu0 0
        %816 = vmatprep.subr.bf16.mxu0 0
        %817 = vmatpush1.bf16.msra.mxu0 0
        %818 = vmatprep.subr.bf16.mxu0 0
        %819 = vmatpush1.bf16.msra.mxu0 0
        %820 = vmatprep.subr.bf16.mxu0 0
        %821 = vmatpush1.bf16.msra.mxu0 0
        %822 = vmatprep.mubr.bf16.mxu0 0
        %823 = vmatmul.mubr.bf16.gmra.mrb[0].mxu0 %v779
        %v824 = vpop.f32.mrb[0].mxu0
        %v825 = vadd.f32 0.0, %v824
        %v826 = vpop.f32.mrb[0].mxu0
        %v827 = vadd.f32 0.0, %v826
        %v828 = vpop.f32.mrb[0].mxu0
        %v829 = vpop.f32.mrb[0].mxu0
        %830 = vdwg.mxu0
        %831 = vmatprep.subr.bf16.mxu0 0
        %832 = vmatpush1.bf16.msra.mxu0 %v788
        %833 = vmatprep.subr.bf16.mxu0 0
        %834 = vmatpush1.bf16.msra.mxu0 0
        %835 = vmatprep.subr.bf16.mxu0 0
        %836 = vmatpush1.bf16.msra.mxu0 0
        %837 = vmatprep.subr.bf16.mxu0 0
        %838 = vmatpush1.bf16.msra.mxu0 0
        %839 = vmatprep.subr.bf16.mxu0 0
        %840 = vmatpush1.bf16.msra.mxu0 0
        %841 = vmatprep.subr.bf16.mxu0 0
        %842 = vmatpush1.bf16.msra.mxu0 0
        %843 = vmatprep.subr.bf16.mxu0 0
        %844 = vmatpush1.bf16.msra.mxu0 0
        %845 = vmatprep.subr.bf16.mxu0 0
        %846 = vmatpush1.bf16.msra.mxu0 0
        %847 = vmatprep.subr.bf16.mxu0 0
        %848 = vmatpush1.bf16.msra.mxu0 0
        %849 = vmatprep.subr.bf16.mxu0 0
        %850 = vmatpush1.bf16.msra.mxu0 0
        %851 = vmatprep.subr.bf16.mxu0 0
        %852 = vmatpush1.bf16.msra.mxu0 0
        %853 = vmatprep.subr.bf16.mxu0 0
        %854 = vmatpush1.bf16.msra.mxu0 0
        %855 = vmatprep.subr.bf16.mxu0 0
        %856 = vmatpush1.bf16.msra.mxu0 0
        %857 = vmatprep.subr.bf16.mxu0 0
        %858 = vmatpush1.bf16.msra.mxu0 0
        %859 = vmatprep.subr.bf16.mxu0 0
        %860 = vmatpush1.bf16.msra.mxu0 0
        %861 = vmatprep.subr.bf16.mxu0 0
        %862 = vmatpush1.bf16.msra.mxu0 0
        %863 = vmatprep.mubr.bf16.mxu0 0
        %864 = vmatmul.mubr.bf16.gmra.mrb[0].mxu0 %v779
        %v865 = vpop.f32.mrb[0].mxu0
        %v866 = vadd.f32 0.0, %v865
        %v867 = vpop.f32.mrb[0].mxu0
        %v868 = vpop.f32.mrb[0].mxu0
        %v869 = vpop.f32.mrb[0].mxu0
        %870 = vdwg.mxu0
        %v871 = vadd.f32 %v721, %v825
        %v872 = vadd.f32 %v723, %v827
        %v873 = vadd.f32 %v762, %v866
        %s874 = scalar_lea.vmem [#allocation11], 12
        %v875 = vld [vmem:[%s874] sm:$0xf]
        %876 = vrot.lane.b32.xlu0 %v561, 109
        %v877 = vpop.permute.xlu0 %876
        %878 = vrot.lane.b32.xlu0 %v569, 109
        %v879 = vpop.permute.xlu0 %878
        %880 = vrot.lane.b32.xlu0 %v568, 109
        %v881 = vpop.permute.xlu0 %880
        %vm882 = vcmask 891904
        %v883 = vsel %vm882, %v877, %v879
        %v884 = vsel %vm882, %v879, %v881
        %v886 = vsel %vm579, %v875, 0
        %v889 = vsel %vm583, %v883, 0
        %v892 = vsel %vm583, %v884, 0
        %v895 = vsel %vm583, %v881, 0
        %897 = vmatprep.subr.bf16.mxu0 %v892
        %898 = vmatpush1.bf16.msra.mxu0 %v889
        %899 = vmatprep.subr.bf16.mxu0 0
        %900 = vmatpush1.bf16.msra.mxu0 0
        %901 = vmatprep.subr.bf16.mxu0 0
        %902 = vmatpush1.bf16.msra.mxu0 0
        %903 = vmatprep.subr.bf16.mxu0 0
        %904 = vmatpush1.bf16.msra.mxu0 0
        %905 = vmatprep.subr.bf16.mxu0 0
        %906 = vmatpush1.bf16.msra.mxu0 0
        %907 = vmatprep.subr.bf16.mxu0 0
        %908 = vmatpush1.bf16.msra.mxu0 0
        %909 = vmatprep.subr.bf16.mxu0 0
        %910 = vmatpush1.bf16.msra.mxu0 0
        %911 = vmatprep.subr.bf16.mxu0 0
        %912 = vmatpush1.bf16.msra.mxu0 0
        %913 = vmatprep.subr.bf16.mxu0 0
        %914 = vmatpush1.bf16.msra.mxu0 0
        %915 = vmatprep.subr.bf16.mxu0 0
        %916 = vmatpush1.bf16.msra.mxu0 0
        %917 = vmatprep.subr.bf16.mxu0 0
        %918 = vmatpush1.bf16.msra.mxu0 0
        %919 = vmatprep.subr.bf16.mxu0 0
        %920 = vmatpush1.bf16.msra.mxu0 0
        %921 = vmatprep.subr.bf16.mxu0 0
        %922 = vmatpush1.bf16.msra.mxu0 0
        %923 = vmatprep.subr.bf16.mxu0 0
        %924 = vmatpush1.bf16.msra.mxu0 0
        %925 = vmatprep.subr.bf16.mxu0 0
        %926 = vmatpush1.bf16.msra.mxu0 0
        %927 = vmatprep.subr.bf16.mxu0 0
        %928 = vmatpush1.bf16.msra.mxu0 0
        %929 = vmatprep.mubr.bf16.mxu0 0
        %930 = vmatmul.mubr.bf16.gmra.mrb[0].mxu0 %v886
        %v931 = vpop.f32.mrb[0].mxu0
        %v932 = vadd.f32 0.0, %v931
        %v933 = vpop.f32.mrb[0].mxu0
        %v934 = vadd.f32 0.0, %v933
        %v935 = vpop.f32.mrb[0].mxu0
        %v936 = vpop.f32.mrb[0].mxu0
        %937 = vdwg.mxu0
        %938 = vmatprep.subr.bf16.mxu0 0
        %939 = vmatpush1.bf16.msra.mxu0 %v895
        %940 = vmatprep.subr.bf16.mxu0 0
        %941 = vmatpush1.bf16.msra.mxu0 0
        %942 = vmatprep.subr.bf16.mxu0 0
        %943 = vmatpush1.bf16.msra.mxu0 0
        %944 = vmatprep.subr.bf16.mxu0 0
        %945 = vmatpush1.bf16.msra.mxu0 0
        %946 = vmatprep.subr.bf16.mxu0 0
        %947 = vmatpush1.bf16.msra.mxu0 0
        %948 = vmatprep.subr.bf16.mxu0 0
        %949 = vmatpush1.bf16.msra.mxu0 0
        %950 = vmatprep.subr.bf16.mxu0 0
        %951 = vmatpush1.bf16.msra.mxu0 0
        %952 = vmatprep.subr.bf16.mxu0 0
        %953 = vmatpush1.bf16.msra.mxu0 0
        %954 = vmatprep.subr.bf16.mxu0 0
        %955 = vmatpush1.bf16.msra.mxu0 0
        %956 = vmatprep.subr.bf16.mxu0 0
        %957 = vmatpush1.bf16.msra.mxu0 0
        %958 = vmatprep.subr.bf16.mxu0 0
        %959 = vmatpush1.bf16.msra.mxu0 0
        %960 = vmatprep.subr.bf16.mxu0 0
        %961 = vmatpush1.bf16.msra.mxu0 0
        %962 = vmatprep.subr.bf16.mxu0 0
        %963 = vmatpush1.bf16.msra.mxu0 0
        %964 = vmatprep.subr.bf16.mxu0 0
        %965 = vmatpush1.bf16.msra.mxu0 0
        %966 = vmatprep.subr.bf16.mxu0 0
        %967 = vmatpush1.bf16.msra.mxu0 0
        %968 = vmatprep.subr.bf16.mxu0 0
        %969 = vmatpush1.bf16.msra.mxu0 0
        %970 = vmatprep.mubr.bf16.mxu0 0
        %971 = vmatmul.mubr.bf16.gmra.mrb[0].mxu0 %v886
        %v972 = vpop.f32.mrb[0].mxu0
        %v973 = vadd.f32 0.0, %v972
        %v974 = vpop.f32.mrb[0].mxu0
        %v975 = vpop.f32.mrb[0].mxu0
        %v976 = vpop.f32.mrb[0].mxu0
        %977 = vdwg.mxu0
        %v978 = vadd.f32 %v871, %v932
        %v979 = vadd.f32 %v872, %v934
        %v980 = vadd.f32 %v873, %v973
        %v981 = vld [vmem:[#allocation13] sm:$0xff]
        %983 = vset.pattern.permute.xlu0 0
        %984 = vperm.xlu0 %983, %v981
        %v985 = vpop.permute.xlu0 %984
        %v987 = vadd.f32 %v978, %v985
        %v988 = vadd.f32 %v979, %v985
        %v989 = vadd.f32 %v980, %v985
        %s990 = scalar_lea.vmem [#allocation11], 16
        %v991 = vld [vmem:[%s990] sm:$0xf]
        %s992 = scalar_lea.vmem [#allocation11], 20
        %v993 = vld [vmem:[%s992] sm:$0xf]
        %994 = vrot.lane.b32.xlu0 %v561, 126
        %v995 = vpop.permute.xlu0 %994
        %996 = vrot.lane.b32.xlu0 %v569, 126
        %v997 = vpop.permute.xlu0 %996
        %998 = vrot.lane.b32.xlu0 %v568, 126
        %v999 = vpop.permute.xlu0 %998
        %vm1000 = vcmask 1031168
        %v1001 = vsel %vm1000, %v995, %v997
        %v1002 = vsel %vm1000, %v997, %v999
        %v1004 = vsel %vm579, %v993, 0
        %v1007 = vsel %vm583, %v1001, 0
        %v1010 = vsel %vm583, %v1002, 0
        %v1013 = vsel %vm583, %v999, 0
        %1015 = vmatprep.subr.bf16.mxu0 %v1010
        %1016 = vmatpush1.bf16.msra.mxu0 %v1007
        %1017 = vmatprep.subr.bf16.mxu0 0
        %1018 = vmatpush1.bf16.msra.mxu0 0
        %1019 = vmatprep.subr.bf16.mxu0 0
        %1020 = vmatpush1.bf16.msra.mxu0 0
        %1021 = vmatprep.subr.bf16.mxu0 0
        %1022 = vmatpush1.bf16.msra.mxu0 0
        %1023 = vmatprep.subr.bf16.mxu0 0
        %1024 = vmatpush1.bf16.msra.mxu0 0
        %1025 = vmatprep.subr.bf16.mxu0 0
        %1026 = vmatpush1.bf16.msra.mxu0 0
        %1027 = vmatprep.subr.bf16.mxu0 0
        %1028 = vmatpush1.bf16.msra.mxu0 0
        %1029 = vmatprep.subr.bf16.mxu0 0
        %1030 = vmatpush1.bf16.msra.mxu0 0
        %1031 = vmatprep.subr.bf16.mxu0 0
        %1032 = vmatpush1.bf16.msra.mxu0 0
        %1033 = vmatprep.subr.bf16.mxu0 0
        %1034 = vmatpush1.bf16.msra.mxu0 0
        %1035 = vmatprep.subr.bf16.mxu0 0
        %1036 = vmatpush1.bf16.msra.mxu0 0
        %1037 = vmatprep.subr.bf16.mxu0 0
        %1038 = vmatpush1.bf16.msra.mxu0 0
        %1039 = vmatprep.subr.bf16.mxu0 0
        %1040 = vmatpush1.bf16.msra.mxu0 0
        %1041 = vmatprep.subr.bf16.mxu0 0
        %1042 = vmatpush1.bf16.msra.mxu0 0
        %1043 = vmatprep.subr.bf16.mxu0 0
        %1044 = vmatpush1.bf16.msra.mxu0 0
        %1045 = vmatprep.subr.bf16.mxu0 0
        %1046 = vmatpush1.bf16.msra.mxu0 0
        %1047 = vmatprep.mubr.bf16.mxu0 0
        %1048 = vmatmul.mubr.bf16.gmra.mrb[0].mxu0 %v1004
        %v1049 = vpop.f32.mrb[0].mxu0
        %v1050 = vadd.f32 0.0, %v1049
        %v1051 = vpop.f32.mrb[0].mxu0
        %v1052 = vadd.f32 0.0, %v1051
        %v1053 = vpop.f32.mrb[0].mxu0
        %v1054 = vpop.f32.mrb[0].mxu0
        %1055 = vdwg.mxu0
        %1056 = vmatprep.subr.bf16.mxu0 0
        %1057 = vmatpush1.bf16.msra.mxu0 %v1013
        %1058 = vmatprep.subr.bf16.mxu0 0
        %1059 = vmatpush1.bf16.msra.mxu0 0
        %1060 = vmatprep.subr.bf16.mxu0 0
        %1061 = vmatpush1.bf16.msra.mxu0 0
        %1062 = vmatprep.subr.bf16.mxu0 0
        %1063 = vmatpush1.bf16.msra.mxu0 0
        %1064 = vmatprep.subr.bf16.mxu0 0
        %1065 = vmatpush1.bf16.msra.mxu0 0
        %1066 = vmatprep.subr.bf16.mxu0 0
        %1067 = vmatpush1.bf16.msra.mxu0 0
        %1068 = vmatprep.subr.bf16.mxu0 0
        %1069 = vmatpush1.bf16.msra.mxu0 0
        %1070 = vmatprep.subr.bf16.mxu0 0
        %1071 = vmatpush1.bf16.msra.mxu0 0
        %1072 = vmatprep.subr.bf16.mxu0 0
        %1073 = vmatpush1.bf16.msra.mxu0 0
        %1074 = vmatprep.subr.bf16.mxu0 0
        %1075 = vmatpush1.bf16.msra.mxu0 0
        %1076 = vmatprep.subr.bf16.mxu0 0
        %1077 = vmatpush1.bf16.msra.mxu0 0
        %1078 = vmatprep.subr.bf16.mxu0 0
        %1079 = vmatpush1.bf16.msra.mxu0 0
        %1080 = vmatprep.subr.bf16.mxu0 0
        %1081 = vmatpush1.bf16.msra.mxu0 0
        %1082 = vmatprep.subr.bf16.mxu0 0
        %1083 = vmatpush1.bf16.msra.mxu0 0
        %1084 = vmatprep.subr.bf16.mxu0 0
        %1085 = vmatpush1.bf16.msra.mxu0 0
        %1086 = vmatprep.subr.bf16.mxu0 0
        %1087 = vmatpush1.bf16.msra.mxu0 0
        %1088 = vmatprep.mubr.bf16.mxu0 0
        %1089 = vmatmul.mubr.bf16.gmra.mrb[0].mxu0 %v1004
        %v1090 = vpop.f32.mrb[0].mxu0
        %v1091 = vadd.f32 0.0, %v1090
        %v1092 = vpop.f32.mrb[0].mxu0
        %v1093 = vpop.f32.mrb[0].mxu0
        %v1094 = vpop.f32.mrb[0].mxu0
        %1095 = vdwg.mxu0
        %v1097 = vsel %vm579, %v991, 0
        %1099 = vmatprep.subr.bf16.mxu0 %v588
        %1100 = vmatpush1.bf16.msra.mxu0 %v585
        %1101 = vmatprep.subr.bf16.mxu0 0
        %1102 = vmatpush1.bf16.msra.mxu0 0
        %1103 = vmatprep.subr.bf16.mxu0 0
        %1104 = vmatpush1.bf16.msra.mxu0 0
        %1105 = vmatprep.subr.bf16.mxu0 0
        %1106 = vmatpush1.bf16.msra.mxu0 0
        %1107 = vmatprep.subr.bf16.mxu0 0
        %1108 = vmatpush1.bf16.msra.mxu0 0
        %1109 = vmatprep.subr.bf16.mxu0 0
        %1110 = vmatpush1.bf16.msra.mxu0 0
        %1111 = vmatprep.subr.bf16.mxu0 0
        %1112 = vmatpush1.bf16.msra.mxu0 0
        %1113 = vmatprep.subr.bf16.mxu0 0
        %1114 = vmatpush1.bf16.msra.mxu0 0
        %1115 = vmatprep.subr.bf16.mxu0 0
        %1116 = vmatpush1.bf16.msra.mxu0 0
        %1117 = vmatprep.subr.bf16.mxu0 0
        %1118 = vmatpush1.bf16.msra.mxu0 0
        %1119 = vmatprep.subr.bf16.mxu0 0
        %1120 = vmatpush1.bf16.msra.mxu0 0
        %1121 = vmatprep.subr.bf16.mxu0 0
        %1122 = vmatpush1.bf16.msra.mxu0 0
        %1123 = vmatprep.subr.bf16.mxu0 0
        %1124 = vmatpush1.bf16.msra.mxu0 0
        %1125 = vmatprep.subr.bf16.mxu0 0
        %1126 = vmatpush1.bf16.msra.mxu0 0
        %1127 = vmatprep.subr.bf16.mxu0 0
        %1128 = vmatpush1.bf16.msra.mxu0 0
        %1129 = vmatprep.subr.bf16.mxu0 0
        %1130 = vmatpush1.bf16.msra.mxu0 0
        %1131 = vmatprep.mubr.bf16.mxu0 0
        %1132 = vmatmul.mubr.bf16.gmra.mrb[0].mxu0 %v1097
        %v1133 = vpop.f32.mrb[0].mxu0
        %v1134 = vadd.f32 %v1050, %v1133
        %v1135 = vpop.f32.mrb[0].mxu0
        %v1136 = vadd.f32 %v1052, %v1135
        %v1137 = vpop.f32.mrb[0].mxu0
        %v1138 = vpop.f32.mrb[0].mxu0
        %1139 = vdwg.mxu0
        %1140 = vmatprep.subr.bf16.mxu0 0
        %1141 = vmatpush1.bf16.msra.mxu0 %v591
        %1142 = vmatprep.subr.bf16.mxu0 0
        %1143 = vmatpush1.bf16.msra.mxu0 0
        %1144 = vmatprep.subr.bf16.mxu0 0
        %1145 = vmatpush1.bf16.msra.mxu0 0
        %1146 = vmatprep.subr.bf16.mxu0 0
        %1147 = vmatpush1.bf16.msra.mxu0 0
        %1148 = vmatprep.subr.bf16.mxu0 0
        %1149 = vmatpush1.bf16.msra.mxu0 0
        %1150 = vmatprep.subr.bf16.mxu0 0
        %1151 = vmatpush1.bf16.msra.mxu0 0
        %1152 = vmatprep.subr.bf16.mxu0 0
        %1153 = vmatpush1.bf16.msra.mxu0 0
        %1154 = vmatprep.subr.bf16.mxu0 0
        %1155 = vmatpush1.bf16.msra.mxu0 0
        %1156 = vmatprep.subr.bf16.mxu0 0
        %1157 = vmatpush1.bf16.msra.mxu0 0
        %1158 = vmatprep.subr.bf16.mxu0 0
        %1159 = vmatpush1.bf16.msra.mxu0 0
        %1160 = vmatprep.subr.bf16.mxu0 0
        %1161 = vmatpush1.bf16.msra.mxu0 0
        %1162 = vmatprep.subr.bf16.mxu0 0
        %1163 = vmatpush1.bf16.msra.mxu0 0
        %1164 = vmatprep.subr.bf16.mxu0 0
        %1165 = vmatpush1.bf16.msra.mxu0 0
        %1166 = vmatprep.subr.bf16.mxu0 0
        %1167 = vmatpush1.bf16.msra.mxu0 0
        %1168 = vmatprep.subr.bf16.mxu0 0
        %1169 = vmatpush1.bf16.msra.mxu0 0
        %1170 = vmatprep.subr.bf16.mxu0 0
        %1171 = vmatpush1.bf16.msra.mxu0 0
        %1172 = vmatprep.mubr.bf16.mxu0 0
        %1173 = vmatmul.mubr.bf16.gmra.mrb[0].mxu0 %v1097
        %v1174 = vpop.f32.mrb[0].mxu0
        %v1175 = vadd.f32 %v1091, %v1174
        %v1176 = vpop.f32.mrb[0].mxu0
        %v1177 = vpop.f32.mrb[0].mxu0
        %v1178 = vpop.f32.mrb[0].mxu0
        %1179 = vdwg.mxu0
        %s1180 = scalar_lea.vmem [#allocation11], 24
        %v1181 = vld [vmem:[%s1180] sm:$0xf]
        %v1183 = vsel %vm579, %v1181, 0
        %1185 = vmatprep.subr.bf16.mxu0 %v892
        %1186 = vmatpush1.bf16.msra.mxu0 %v889
        %1187 = vmatprep.subr.bf16.mxu0 0
        %1188 = vmatpush1.bf16.msra.mxu0 0
        %1189 = vmatprep.subr.bf16.mxu0 0
        %1190 = vmatpush1.bf16.msra.mxu0 0
        %1191 = vmatprep.subr.bf16.mxu0 0
        %1192 = vmatpush1.bf16.msra.mxu0 0
        %1193 = vmatprep.subr.bf16.mxu0 0
        %1194 = vmatpush1.bf16.msra.mxu0 0
        %1195 = vmatprep.subr.bf16.mxu0 0
        %1196 = vmatpush1.bf16.msra.mxu0 0
        %1197 = vmatprep.subr.bf16.mxu0 0
        %1198 = vmatpush1.bf16.msra.mxu0 0
        %1199 = vmatprep.subr.bf16.mxu0 0
        %1200 = vmatpush1.bf16.msra.mxu0 0
        %1201 = vmatprep.subr.bf16.mxu0 0
        %1202 = vmatpush1.bf16.msra.mxu0 0
        %1203 = vmatprep.subr.bf16.mxu0 0
        %1204 = vmatpush1.bf16.msra.mxu0 0
        %1205 = vmatprep.subr.bf16.mxu0 0
        %1206 = vmatpush1.bf16.msra.mxu0 0
        %1207 = vmatprep.subr.bf16.mxu0 0
        %1208 = vmatpush1.bf16.msra.mxu0 0
        %1209 = vmatprep.subr.bf16.mxu0 0
        %1210 = vmatpush1.bf16.msra.mxu0 0
        %1211 = vmatprep.subr.bf16.mxu0 0
        %1212 = vmatpush1.bf16.msra.mxu0 0
        %1213 = vmatprep.subr.bf16.mxu0 0
        %1214 = vmatpush1.bf16.msra.mxu0 0
        %1215 = vmatprep.subr.bf16.mxu0 0
        %1216 = vmatpush1.bf16.msra.mxu0 0
        %1217 = vmatprep.mubr.bf16.mxu0 0
        %1218 = vmatmul.mubr.bf16.gmra.mrb[0].mxu0 %v1183
        %v1219 = vpop.f32.mrb[0].mxu0
        %v1220 = vadd.f32 0.0, %v1219
        %v1221 = vpop.f32.mrb[0].mxu0
        %v1222 = vadd.f32 0.0, %v1221
        %v1223 = vpop.f32.mrb[0].mxu0
        %v1224 = vpop.f32.mrb[0].mxu0
        %1225 = vdwg.mxu0
        %1226 = vmatprep.subr.bf16.mxu0 0
        %1227 = vmatpush1.bf16.msra.mxu0 %v895
        %1228 = vmatprep.subr.bf16.mxu0 0
        %1229 = vmatpush1.bf16.msra.mxu0 0
        %1230 = vmatprep.subr.bf16.mxu0 0
        %1231 = vmatpush1.bf16.msra.mxu0 0
        %1232 = vmatprep.subr.bf16.mxu0 0
        %1233 = vmatpush1.bf16.msra.mxu0 0
        %1234 = vmatprep.subr.bf16.mxu0 0
        %1235 = vmatpush1.bf16.msra.mxu0 0
        %1236 = vmatprep.subr.bf16.mxu0 0
        %1237 = vmatpush1.bf16.msra.mxu0 0
        %1238 = vmatprep.subr.bf16.mxu0 0
        %1239 = vmatpush1.bf16.msra.mxu0 0
        %1240 = vmatprep.subr.bf16.mxu0 0
        %1241 = vmatpush1.bf16.msra.mxu0 0
        %1242 = vmatprep.subr.bf16.mxu0 0
        %1243 = vmatpush1.bf16.msra.mxu0 0
        %1244 = vmatprep.subr.bf16.mxu0 0
        %1245 = vmatpush1.bf16.msra.mxu0 0
        %1246 = vmatprep.subr.bf16.mxu0 0
        %1247 = vmatpush1.bf16.msra.mxu0 0
        %1248 = vmatprep.subr.bf16.mxu0 0
        %1249 = vmatpush1.bf16.msra.mxu0 0
        %1250 = vmatprep.subr.bf16.mxu0 0
        %1251 = vmatpush1.bf16.msra.mxu0 0
        %1252 = vmatprep.subr.bf16.mxu0 0
        %1253 = vmatpush1.bf16.msra.mxu0 0
        %1254 = vmatprep.subr.bf16.mxu0 0
        %1255 = vmatpush1.bf16.msra.mxu0 0
        %1256 = vmatprep.subr.bf16.mxu0 0
        %1257 = vmatpush1.bf16.msra.mxu0 0
        %1258 = vmatprep.mubr.bf16.mxu0 0
        %1259 = vmatmul.mubr.bf16.gmra.mrb[0].mxu0 %v1183
        %v1260 = vpop.f32.mrb[0].mxu0
        %v1261 = vadd.f32 0.0, %v1260
        %v1262 = vpop.f32.mrb[0].mxu0
        %v1263 = vpop.f32.mrb[0].mxu0
        %v1264 = vpop.f32.mrb[0].mxu0
        %1265 = vdwg.mxu0
        %v1266 = vadd.f32 %v1134, %v1220
        %v1267 = vadd.f32 %v1136, %v1222
        %v1268 = vadd.f32 %v1175, %v1261
        %s1269 = scalar_lea.vmem [#allocation11], 28
        %v1270 = vld [vmem:[%s1269] sm:$0xf]
        %1271 = vrot.lane.b32.xlu0 %v561, 108
        %v1272 = vpop.permute.xlu0 %1271
        %1273 = vrot.lane.b32.xlu0 %v569, 108
        %v1274 = vpop.permute.xlu0 %1273
        %1275 = vrot.lane.b32.xlu0 %v568, 108
        %v1276 = vpop.permute.xlu0 %1275
        %vm1277 = vcmask 883712
        %v1278 = vsel %vm1277, %v1272, %v1274
        %v1279 = vsel %vm1277, %v1274, %v1276
        %v1281 = vsel %vm579, %v1270, 0
        %v1284 = vsel %vm583, %v1278, 0
        %v1287 = vsel %vm583, %v1279, 0
        %v1290 = vsel %vm583, %v1276, 0
        %1292 = vmatprep.subr.bf16.mxu0 %v1287
        %1293 = vmatpush1.bf16.msra.mxu0 %v1284
        %1294 = vmatprep.subr.bf16.mxu0 0
        %1295 = vmatpush1.bf16.msra.mxu0 0
        %1296 = vmatprep.subr.bf16.mxu0 0
        %1297 = vmatpush1.bf16.msra.mxu0 0
        %1298 = vmatprep.subr.bf16.mxu0 0
        %1299 = vmatpush1.bf16.msra.mxu0 0
        %1300 = vmatprep.subr.bf16.mxu0 0
        %1301 = vmatpush1.bf16.msra.mxu0 0
        %1302 = vmatprep.subr.bf16.mxu0 0
        %1303 = vmatpush1.bf16.msra.mxu0 0
        %1304 = vmatprep.subr.bf16.mxu0 0
        %1305 = vmatpush1.bf16.msra.mxu0 0
        %1306 = vmatprep.subr.bf16.mxu0 0
        %1307 = vmatpush1.bf16.msra.mxu0 0
        %1308 = vmatprep.subr.bf16.mxu0 0
        %1309 = vmatpush1.bf16.msra.mxu0 0
        %1310 = vmatprep.subr.bf16.mxu0 0
        %1311 = vmatpush1.bf16.msra.mxu0 0
        %1312 = vmatprep.subr.bf16.mxu0 0
        %1313 = vmatpush1.bf16.msra.mxu0 0
        %1314 = vmatprep.subr.bf16.mxu0 0
        %1315 = vmatpush1.bf16.msra.mxu0 0
        %1316 = vmatprep.subr.bf16.mxu0 0
        %1317 = vmatpush1.bf16.msra.mxu0 0
        %1318 = vmatprep.subr.bf16.mxu0 0
        %1319 = vmatpush1.bf16.msra.mxu0 0
        %1320 = vmatprep.subr.bf16.mxu0 0
        %1321 = vmatpush1.bf16.msra.mxu0 0
        %1322 = vmatprep.subr.bf16.mxu0 0
        %1323 = vmatpush1.bf16.msra.mxu0 0
        %1324 = vmatprep.mubr.bf16.mxu0 0
        %1325 = vmatmul.mubr.bf16.gmra.mrb[0].mxu0 %v1281
        %v1326 = vpop.f32.mrb[0].mxu0
        %v1327 = vadd.f32 0.0, %v1326
        %v1328 = vpop.f32.mrb[0].mxu0
        %v1329 = vadd.f32 0.0, %v1328
        %v1330 = vpop.f32.mrb[0].mxu0
        %v1331 = vpop.f32.mrb[0].mxu0
        %1332 = vdwg.mxu0
        %1333 = vmatprep.subr.bf16.mxu0 0
        %1334 = vmatpush1.bf16.msra.mxu0 %v1290
        %1335 = vmatprep.subr.bf16.mxu0 0
        %1336 = vmatpush1.bf16.msra.mxu0 0
        %1337 = vmatprep.subr.bf16.mxu0 0
        %1338 = vmatpush1.bf16.msra.mxu0 0
        %1339 = vmatprep.subr.bf16.mxu0 0
        %1340 = vmatpush1.bf16.msra.mxu0 0
        %1341 = vmatprep.subr.bf16.mxu0 0
        %1342 = vmatpush1.bf16.msra.mxu0 0
        %1343 = vmatprep.subr.bf16.mxu0 0
        %1344 = vmatpush1.bf16.msra.mxu0 0
        %1345 = vmatprep.subr.bf16.mxu0 0
        %1346 = vmatpush1.bf16.msra.mxu0 0
        %1347 = vmatprep.subr.bf16.mxu0 0
        %1348 = vmatpush1.bf16.msra.mxu0 0
        %1349 = vmatprep.subr.bf16.mxu0 0
        %1350 = vmatpush1.bf16.msra.mxu0 0
        %1351 = vmatprep.subr.bf16.mxu0 0
        %1352 = vmatpush1.bf16.msra.mxu0 0
        %1353 = vmatprep.subr.bf16.mxu0 0
        %1354 = vmatpush1.bf16.msra.mxu0 0
        %1355 = vmatprep.subr.bf16.mxu0 0
        %1356 = vmatpush1.bf16.msra.mxu0 0
        %1357 = vmatprep.subr.bf16.mxu0 0
        %1358 = vmatpush1.bf16.msra.mxu0 0
        %1359 = vmatprep.subr.bf16.mxu0 0
        %1360 = vmatpush1.bf16.msra.mxu0 0
        %1361 = vmatprep.subr.bf16.mxu0 0
        %1362 = vmatpush1.bf16.msra.mxu0 0
        %1363 = vmatprep.subr.bf16.mxu0 0
        %1364 = vmatpush1.bf16.msra.mxu0 0
        %1365 = vmatprep.mubr.bf16.mxu0 0
        %1366 = vmatmul.mubr.bf16.gmra.mrb[0].mxu0 %v1281
        %v1367 = vpop.f32.mrb[0].mxu0
        %v1368 = vadd.f32 0.0, %v1367
        %v1369 = vpop.f32.mrb[0].mxu0
        %v1370 = vpop.f32.mrb[0].mxu0
        %v1371 = vpop.f32.mrb[0].mxu0
        %1372 = vdwg.mxu0
        %v1373 = vadd.f32 %v1266, %v1327
        %v1374 = vadd.f32 %v1267, %v1329
        %v1375 = vadd.f32 %v1268, %v1368
        %v1376 = vadd.f32 %v1373, %v985
        %v1377 = vadd.f32 %v1374, %v985
        %v1378 = vadd.f32 %v1375, %v985
        %s1379 = scalar_lea.vmem [#allocation11], 32
        %v1380 = vld [vmem:[%s1379] sm:$0xf]
        %s1381 = scalar_lea.vmem [#allocation11], 36
        %v1382 = vld [vmem:[%s1381] sm:$0xf]
        %v1384 = vsel %vm579, %v1382, 0
        %1386 = vmatprep.subr.bf16.mxu0 %v892
        %1387 = vmatpush1.bf16.msra.mxu0 %v889
        %1388 = vmatprep.subr.bf16.mxu0 0
        %1389 = vmatpush1.bf16.msra.mxu0 0
        %1390 = vmatprep.subr.bf16.mxu0 0
        %1391 = vmatpush1.bf16.msra.mxu0 0
        %1392 = vmatprep.subr.bf16.mxu0 0
        %1393 = vmatpush1.bf16.msra.mxu0 0
        %1394 = vmatprep.subr.bf16.mxu0 0
        %1395 = vmatpush1.bf16.msra.mxu0 0
        %1396 = vmatprep.subr.bf16.mxu0 0
        %1397 = vmatpush1.bf16.msra.mxu0 0
        %1398 = vmatprep.subr.bf16.mxu0 0
        %1399 = vmatpush1.bf16.msra.mxu0 0
        %1400 = vmatprep.subr.bf16.mxu0 0
        %1401 = vmatpush1.bf16.msra.mxu0 0
        %1402 = vmatprep.subr.bf16.mxu0 0
        %1403 = vmatpush1.bf16.msra.mxu0 0
        %1404 = vmatprep.subr.bf16.mxu0 0
        %1405 = vmatpush1.bf16.msra.mxu0 0
        %1406 = vmatprep.subr.bf16.mxu0 0
        %1407 = vmatpush1.bf16.msra.mxu0 0
        %1408 = vmatprep.subr.bf16.mxu0 0
        %1409 = vmatpush1.bf16.msra.mxu0 0
        %1410 = vmatprep.subr.bf16.mxu0 0
        %1411 = vmatpush1.bf16.msra.mxu0 0
        %1412 = vmatprep.subr.bf16.mxu0 0
        %1413 = vmatpush1.bf16.msra.mxu0 0
        %1414 = vmatprep.subr.bf16.mxu0 0
        %1415 = vmatpush1.bf16.msra.mxu0 0
        %1416 = vmatprep.subr.bf16.mxu0 0
        %1417 = vmatpush1.bf16.msra.mxu0 0
        %1418 = vmatprep.mubr.bf16.mxu0 0
        %1419 = vmatmul.mubr.bf16.gmra.mrb[0].mxu0 %v1384
        %v1420 = vpop.f32.mrb[0].mxu0
        %v1421 = vadd.f32 0.0, %v1420
        %v1422 = vpop.f32.mrb[0].mxu0
        %v1423 = vadd.f32 0.0, %v1422
        %v1424 = vpop.f32.mrb[0].mxu0
        %v1425 = vpop.f32.mrb[0].mxu0
        %1426 = vdwg.mxu0
        %1427 = vmatprep.subr.bf16.mxu0 0
        %1428 = vmatpush1.bf16.msra.mxu0 %v895
        %1429 = vmatprep.subr.bf16.mxu0 0
        %1430 = vmatpush1.bf16.msra.mxu0 0
        %1431 = vmatprep.subr.bf16.mxu0 0
        %1432 = vmatpush1.bf16.msra.mxu0 0
        %1433 = vmatprep.subr.bf16.mxu0 0
        %1434 = vmatpush1.bf16.msra.mxu0 0
        %1435 = vmatprep.subr.bf16.mxu0 0
        %1436 = vmatpush1.bf16.msra.mxu0 0
        %1437 = vmatprep.subr.bf16.mxu0 0
        %1438 = vmatpush1.bf16.msra.mxu0 0
        %1439 = vmatprep.subr.bf16.mxu0 0
        %1440 = vmatpush1.bf16.msra.mxu0 0
        %1441 = vmatprep.subr.bf16.mxu0 0
        %1442 = vmatpush1.bf16.msra.mxu0 0
        %1443 = vmatprep.subr.bf16.mxu0 0
        %1444 = vmatpush1.bf16.msra.mxu0 0
        %1445 = vmatprep.subr.bf16.mxu0 0
        %1446 = vmatpush1.bf16.msra.mxu0 0
        %1447 = vmatprep.subr.bf16.mxu0 0
        %1448 = vmatpush1.bf16.msra.mxu0 0
        %1449 = vmatprep.subr.bf16.mxu0 0
        %1450 = vmatpush1.bf16.msra.mxu0 0
        %1451 = vmatprep.subr.bf16.mxu0 0
        %1452 = vmatpush1.bf16.msra.mxu0 0
        %1453 = vmatprep.subr.bf16.mxu0 0
        %1454 = vmatpush1.bf16.msra.mxu0 0
        %1455 = vmatprep.subr.bf16.mxu0 0
        %1456 = vmatpush1.bf16.msra.mxu0 0
        %1457 = vmatprep.subr.bf16.mxu0 0
        %1458 = vmatpush1.bf16.msra.mxu0 0
        %1459 = vmatprep.mubr.bf16.mxu0 0
        %1460 = vmatmul.mubr.bf16.gmra.mrb[0].mxu0 %v1384
        %v1461 = vpop.f32.mrb[0].mxu0
        %v1462 = vadd.f32 0.0, %v1461
        %v1463 = vpop.f32.mrb[0].mxu0
        %v1464 = vpop.f32.mrb[0].mxu0
        %v1465 = vpop.f32.mrb[0].mxu0
        %1466 = vdwg.mxu0
        %v1468 = vsel %vm579, %v1380, 0
        %1470 = vmatprep.subr.bf16.mxu0 %v785
        %1471 = vmatpush1.bf16.msra.mxu0 %v782
        %1472 = vmatprep.subr.bf16.mxu0 0
        %1473 = vmatpush1.bf16.msra.mxu0 0
        %1474 = vmatprep.subr.bf16.mxu0 0
        %1475 = vmatpush1.bf16.msra.mxu0 0
        %1476 = vmatprep.subr.bf16.mxu0 0
        %1477 = vmatpush1.bf16.msra.mxu0 0
        %1478 = vmatprep.subr.bf16.mxu0 0
        %1479 = vmatpush1.bf16.msra.mxu0 0
        %1480 = vmatprep.subr.bf16.mxu0 0
        %1481 = vmatpush1.bf16.msra.mxu0 0
        %1482 = vmatprep.subr.bf16.mxu0 0
        %1483 = vmatpush1.bf16.msra.mxu0 0
        %1484 = vmatprep.subr.bf16.mxu0 0
        %1485 = vmatpush1.bf16.msra.mxu0 0
        %1486 = vmatprep.subr.bf16.mxu0 0
        %1487 = vmatpush1.bf16.msra.mxu0 0
        %1488 = vmatprep.subr.bf16.mxu0 0
        %1489 = vmatpush1.bf16.msra.mxu0 0
        %1490 = vmatprep.subr.bf16.mxu0 0
        %1491 = vmatpush1.bf16.msra.mxu0 0
        %1492 = vmatprep.subr.bf16.mxu0 0
        %1493 = vmatpush1.bf16.msra.mxu0 0
        %1494 = vmatprep.subr.bf16.mxu0 0
        %1495 = vmatpush1.bf16.msra.mxu0 0
        %1496 = vmatprep.subr.bf16.mxu0 0
        %1497 = vmatpush1.bf16.msra.mxu0 0
        %1498 = vmatprep.subr.bf16.mxu0 0
        %1499 = vmatpush1.bf16.msra.mxu0 0
        %1500 = vmatprep.subr.bf16.mxu0 0
        %1501 = vmatpush1.bf16.msra.mxu0 0
        %1502 = vmatprep.mubr.bf16.mxu0 0
        %1503 = vmatmul.mubr.bf16.gmra.mrb[0].mxu0 %v1468
        %v1504 = vpop.f32.mrb[0].mxu0
        %v1505 = vadd.f32 %v1421, %v1504
        %v1506 = vpop.f32.mrb[0].mxu0
        %v1507 = vadd.f32 %v1423, %v1506
        %v1508 = vpop.f32.mrb[0].mxu0
        %v1509 = vpop.f32.mrb[0].mxu0
        %1510 = vdwg.mxu0
        %1511 = vmatprep.subr.bf16.mxu0 0
        %1512 = vmatpush1.bf16.msra.mxu0 %v788
        %1513 = vmatprep.subr.bf16.mxu0 0
        %1514 = vmatpush1.bf16.msra.mxu0 0
        %1515 = vmatprep.subr.bf16.mxu0 0
        %1516 = vmatpush1.bf16.msra.mxu0 0
        %1517 = vmatprep.subr.bf16.mxu0 0
        %1518 = vmatpush1.bf16.msra.mxu0 0
        %1519 = vmatprep.subr.bf16.mxu0 0
        %1520 = vmatpush1.bf16.msra.mxu0 0
        %1521 = vmatprep.subr.bf16.mxu0 0
        %1522 = vmatpush1.bf16.msra.mxu0 0
        %1523 = vmatprep.subr.bf16.mxu0 0
        %1524 = vmatpush1.bf16.msra.mxu0 0
        %1525 = vmatprep.subr.bf16.mxu0 0
        %1526 = vmatpush1.bf16.msra.mxu0 0
        %1527 = vmatprep.subr.bf16.mxu0 0
        %1528 = vmatpush1.bf16.msra.mxu0 0
        %1529 = vmatprep.subr.bf16.mxu0 0
        %1530 = vmatpush1.bf16.msra.mxu0 0
        %1531 = vmatprep.subr.bf16.mxu0 0
        %1532 = vmatpush1.bf16.msra.mxu0 0
        %1533 = vmatprep.subr.bf16.mxu0 0
        %1534 = vmatpush1.bf16.msra.mxu0 0
        %1535 = vmatprep.subr.bf16.mxu0 0
        %1536 = vmatpush1.bf16.msra.mxu0 0
        %1537 = vmatprep.subr.bf16.mxu0 0
        %1538 = vmatpush1.bf16.msra.mxu0 0
        %1539 = vmatprep.subr.bf16.mxu0 0
        %1540 = vmatpush1.bf16.msra.mxu0 0
        %1541 = vmatprep.subr.bf16.mxu0 0
        %1542 = vmatpush1.bf16.msra.mxu0 0
        %1543 = vmatprep.mubr.bf16.mxu0 0
        %1544 = vmatmul.mubr.bf16.gmra.mrb[0].mxu0 %v1468
        %v1545 = vpop.f32.mrb[0].mxu0
        %v1546 = vadd.f32 %v1462, %v1545
        %v1547 = vpop.f32.mrb[0].mxu0
        %v1548 = vpop.f32.mrb[0].mxu0
        %v1549 = vpop.f32.mrb[0].mxu0
        %1550 = vdwg.mxu0
        %s1551 = scalar_lea.vmem [#allocation11], 40
        %v1552 = vld [vmem:[%s1551] sm:$0xf]
        %1553 = vrot.lane.b32.xlu0 %v561, 92
        %v1554 = vpop.permute.xlu0 %1553
        %1555 = vrot.lane.b32.xlu0 %v569, 92
        %v1556 = vpop.permute.xlu0 %1555
        %1557 = vrot.lane.b32.xlu0 %v568, 92
        %v1558 = vpop.permute.xlu0 %1557
        %vm1559 = vcmask 752640
        %v1560 = vsel %vm1559, %v1554, %v1556
        %v1561 = vsel %vm1559, %v1556, %v1558
        %v1563 = vsel %vm579, %v1552, 0
        %v1566 = vsel %vm583, %v1560, 0
        %v1569 = vsel %vm583, %v1561, 0
        %v1572 = vsel %vm583, %v1558, 0
        %1574 = vmatprep.subr.bf16.mxu0 %v1569
        %1575 = vmatpush1.bf16.msra.mxu0 %v1566
        %1576 = vmatprep.subr.bf16.mxu0 0
        %1577 = vmatpush1.bf16.msra.mxu0 0
        %1578 = vmatprep.subr.bf16.mxu0 0
        %1579 = vmatpush1.bf16.msra.mxu0 0
        %1580 = vmatprep.subr.bf16.mxu0 0
        %1581 = vmatpush1.bf16.msra.mxu0 0
        %1582 = vmatprep.subr.bf16.mxu0 0
        %1583 = vmatpush1.bf16.msra.mxu0 0
        %1584 = vmatprep.subr.bf16.mxu0 0
        %1585 = vmatpush1.bf16.msra.mxu0 0
        %1586 = vmatprep.subr.bf16.mxu0 0
        %1587 = vmatpush1.bf16.msra.mxu0 0
        %1588 = vmatprep.subr.bf16.mxu0 0
        %1589 = vmatpush1.bf16.msra.mxu0 0
        %1590 = vmatprep.subr.bf16.mxu0 0
        %1591 = vmatpush1.bf16.msra.mxu0 0
        %1592 = vmatprep.subr.bf16.mxu0 0
        %1593 = vmatpush1.bf16.msra.mxu0 0
        %1594 = vmatprep.subr.bf16.mxu0 0
        %1595 = vmatpush1.bf16.msra.mxu0 0
        %1596 = vmatprep.subr.bf16.mxu0 0
        %1597 = vmatpush1.bf16.msra.mxu0 0
        %1598 = vmatprep.subr.bf16.mxu0 0
        %1599 = vmatpush1.bf16.msra.mxu0 0
        %1600 = vmatprep.subr.bf16.mxu0 0
        %1601 = vmatpush1.bf16.msra.mxu0 0
        %1602 = vmatprep.subr.bf16.mxu0 0
        %1603 = vmatpush1.bf16.msra.mxu0 0
        %1604 = vmatprep.subr.bf16.mxu0 0
        %1605 = vmatpush1.bf16.msra.mxu0 0
        %1606 = vmatprep.mubr.bf16.mxu0 0
        %1607 = vmatmul.mubr.bf16.gmra.mrb[0].mxu0 %v1563
        %v1608 = vpop.f32.mrb[0].mxu0
        %v1609 = vadd.f32 0.0, %v1608
        %v1610 = vpop.f32.mrb[0].mxu0
        %v1611 = vadd.f32 0.0, %v1610
        %v1612 = vpop.f32.mrb[0].mxu0
        %v1613 = vpop.f32.mrb[0].mxu0
        %1614 = vdwg.mxu0
        %1615 = vmatprep.subr.bf16.mxu0 0
        %1616 = vmatpush1.bf16.msra.mxu0 %v1572
        %1617 = vmatprep.subr.bf16.mxu0 0
        %1618 = vmatpush1.bf16.msra.mxu0 0
        %1619 = vmatprep.subr.bf16.mxu0 0
        %1620 = vmatpush1.bf16.msra.mxu0 0
        %1621 = vmatprep.subr.bf16.mxu0 0
        %1622 = vmatpush1.bf16.msra.mxu0 0
        %1623 = vmatprep.subr.bf16.mxu0 0
        %1624 = vmatpush1.bf16.msra.mxu0 0
        %1625 = vmatprep.subr.bf16.mxu0 0
        %1626 = vmatpush1.bf16.msra.mxu0 0
        %1627 = vmatprep.subr.bf16.mxu0 0
        %1628 = vmatpush1.bf16.msra.mxu0 0
        %1629 = vmatprep.subr.bf16.mxu0 0
        %1630 = vmatpush1.bf16.msra.mxu0 0
        %1631 = vmatprep.subr.bf16.mxu0 0
        %1632 = vmatpush1.bf16.msra.mxu0 0
        %1633 = vmatprep.subr.bf16.mxu0 0
        %1634 = vmatpush1.bf16.msra.mxu0 0
        %1635 = vmatprep.subr.bf16.mxu0 0
        %1636 = vmatpush1.bf16.msra.mxu0 0
        %1637 = vmatprep.subr.bf16.mxu0 0
        %1638 = vmatpush1.bf16.msra.mxu0 0
        %1639 = vmatprep.subr.bf16.mxu0 0
        %1640 = vmatpush1.bf16.msra.mxu0 0
        %1641 = vmatprep.subr.bf16.mxu0 0
        %1642 = vmatpush1.bf16.msra.mxu0 0
        %1643 = vmatprep.subr.bf16.mxu0 0
        %1644 = vmatpush1.bf16.msra.mxu0 0
        %1645 = vmatprep.subr.bf16.mxu0 0
        %1646 = vmatpush1.bf16.msra.mxu0 0
        %1647 = vmatprep.mubr.bf16.mxu0 0
        %1648 = vmatmul.mubr.bf16.gmra.mrb[0].mxu0 %v1563
        %v1649 = vpop.f32.mrb[0].mxu0
        %v1650 = vadd.f32 0.0, %v1649
        %v1651 = vpop.f32.mrb[0].mxu0
        %v1652 = vpop.f32.mrb[0].mxu0
        %v1653 = vpop.f32.mrb[0].mxu0
        %1654 = vdwg.mxu0
        %v1655 = vadd.f32 %v1505, %v1609
        %v1656 = vadd.f32 %v1507, %v1611
        %v1657 = vadd.f32 %v1546, %v1650
        %s1658 = scalar_lea.vmem [#allocation11], 44
        %v1659 = vld [vmem:[%s1658] sm:$0xf]
        %1660 = vrot.lane.b32.xlu0 %v561, 91
        %v1661 = vpop.permute.xlu0 %1660
        %1662 = vrot.lane.b32.xlu0 %v569, 91
        %v1663 = vpop.permute.xlu0 %1662
        %1664 = vrot.lane.b32.xlu0 %v568, 91
        %v1665 = vpop.permute.xlu0 %1664
        %vm1666 = vcmask 744448
        %v1667 = vsel %vm1666, %v1661, %v1663
        %v1668 = vsel %vm1666, %v1663, %v1665
        %v1670 = vsel %vm579, %v1659, 0
        %v1673 = vsel %vm583, %v1667, 0
        %v1676 = vsel %vm583, %v1668, 0
        %v1679 = vsel %vm583, %v1665, 0
        %1681 = vmatprep.subr.bf16.mxu0 %v1676
        %1682 = vmatpush1.bf16.msra.mxu0 %v1673
        %1683 = vmatprep.subr.bf16.mxu0 0
        %1684 = vmatpush1.bf16.msra.mxu0 0
        %1685 = vmatprep.subr.bf16.mxu0 0
        %1686 = vmatpush1.bf16.msra.mxu0 0
        %1687 = vmatprep.subr.bf16.mxu0 0
        %1688 = vmatpush1.bf16.msra.mxu0 0
        %1689 = vmatprep.subr.bf16.mxu0 0
        %1690 = vmatpush1.bf16.msra.mxu0 0
        %1691 = vmatprep.subr.bf16.mxu0 0
        %1692 = vmatpush1.bf16.msra.mxu0 0
        %1693 = vmatprep.subr.bf16.mxu0 0
        %1694 = vmatpush1.bf16.msra.mxu0 0
        %1695 = vmatprep.subr.bf16.mxu0 0
        %1696 = vmatpush1.bf16.msra.mxu0 0
        %1697 = vmatprep.subr.bf16.mxu0 0
        %1698 = vmatpush1.bf16.msra.mxu0 0
        %1699 = vmatprep.subr.bf16.mxu0 0
        %1700 = vmatpush1.bf16.msra.mxu0 0
        %1701 = vmatprep.subr.bf16.mxu0 0
        %1702 = vmatpush1.bf16.msra.mxu0 0
        %1703 = vmatprep.subr.bf16.mxu0 0
        %1704 = vmatpush1.bf16.msra.mxu0 0
        %1705 = vmatprep.subr.bf16.mxu0 0
        %1706 = vmatpush1.bf16.msra.mxu0 0
        %1707 = vmatprep.subr.bf16.mxu0 0
        %1708 = vmatpush1.bf16.msra.mxu0 0
        %1709 = vmatprep.subr.bf16.mxu0 0
        %1710 = vmatpush1.bf16.msra.mxu0 0
        %1711 = vmatprep.subr.bf16.mxu0 0
        %1712 = vmatpush1.bf16.msra.mxu0 0
        %1713 = vmatprep.mubr.bf16.mxu0 0
        %1714 = vmatmul.mubr.bf16.gmra.mrb[0].mxu0 %v1670
        %v1715 = vpop.f32.mrb[0].mxu0
        %v1716 = vadd.f32 0.0, %v1715
        %v1717 = vpop.f32.mrb[0].mxu0
        %v1718 = vadd.f32 0.0, %v1717
        %v1719 = vpop.f32.mrb[0].mxu0
        %v1720 = vpop.f32.mrb[0].mxu0
        %1721 = vdwg.mxu0
        %1722 = vmatprep.subr.bf16.mxu0 0
        %1723 = vmatpush1.bf16.msra.mxu0 %v1679
        %1724 = vmatprep.subr.bf16.mxu0 0
        %1725 = vmatpush1.bf16.msra.mxu0 0
        %1726 = vmatprep.subr.bf16.mxu0 0
        %1727 = vmatpush1.bf16.msra.mxu0 0
        %1728 = vmatprep.subr.bf16.mxu0 0
        %1729 = vmatpush1.bf16.msra.mxu0 0
        %1730 = vmatprep.subr.bf16.mxu0 0
        %1731 = vmatpush1.bf16.msra.mxu0 0
        %1732 = vmatprep.subr.bf16.mxu0 0
        %1733 = vmatpush1.bf16.msra.mxu0 0
        %1734 = vmatprep.subr.bf16.mxu0 0
        %1735 = vmatpush1.bf16.msra.mxu0 0
        %1736 = vmatprep.subr.bf16.mxu0 0
        %1737 = vmatpush1.bf16.msra.mxu0 0
        %1738 = vmatprep.subr.bf16.mxu0 0
        %1739 = vmatpush1.bf16.msra.mxu0 0
        %1740 = vmatprep.subr.bf16.mxu0 0
        %1741 = vmatpush1.bf16.msra.mxu0 0
        %1742 = vmatprep.subr.bf16.mxu0 0
        %1743 = vmatpush1.bf16.msra.mxu0 0
        %1744 = vmatprep.subr.bf16.mxu0 0
        %1745 = vmatpush1.bf16.msra.mxu0 0
        %1746 = vmatprep.subr.bf16.mxu0 0
        %1747 = vmatpush1.bf16.msra.mxu0 0
        %1748 = vmatprep.subr.bf16.mxu0 0
        %1749 = vmatpush1.bf16.msra.mxu0 0
        %1750 = vmatprep.subr.bf16.mxu0 0
        %1751 = vmatpush1.bf16.msra.mxu0 0
        %1752 = vmatprep.subr.bf16.mxu0 0
        %1753 = vmatpush1.bf16.msra.mxu0 0
        %1754 = vmatprep.mubr.bf16.mxu0 0
        %1755 = vmatmul.mubr.bf16.gmra.mrb[0].mxu0 %v1670
        %v1756 = vpop.f32.mrb[0].mxu0
        %v1757 = vadd.f32 0.0, %v1756
        %v1758 = vpop.f32.mrb[0].mxu0
        %v1759 = vpop.f32.mrb[0].mxu0
        %v1760 = vpop.f32.mrb[0].mxu0
        %1761 = vdwg.mxu0
        %v1762 = vadd.f32 %v1655, %v1716
        %v1763 = vadd.f32 %v1656, %v1718
        %v1764 = vadd.f32 %v1657, %v1757
        %v1765 = vadd.f32 %v1762, %v985
        %v1766 = vadd.f32 %v1763, %v985
        %v1767 = vadd.f32 %v1764, %v985
        %s1768 = scalar_lea.vmem [#allocation11], 48
        %v1769 = vld [vmem:[%s1768] sm:$0xf]
        %s1770 = scalar_lea.vmem [#allocation11], 52
        %v1771 = vld [vmem:[%s1770] sm:$0xf]
        %v1773 = vsel %vm579, %v1771, 0
        %1775 = vmatprep.subr.bf16.mxu0 %v1287
        %1776 = vmatpush1.bf16.msra.mxu0 %v1284
        %1777 = vmatprep.subr.bf16.mxu0 0
        %1778 = vmatpush1.bf16.msra.mxu0 0
        %1779 = vmatprep.subr.bf16.mxu0 0
        %1780 = vmatpush1.bf16.msra.mxu0 0
        %1781 = vmatprep.subr.bf16.mxu0 0
        %1782 = vmatpush1.bf16.msra.mxu0 0
        %1783 = vmatprep.subr.bf16.mxu0 0
        %1784 = vmatpush1.bf16.msra.mxu0 0
        %1785 = vmatprep.subr.bf16.mxu0 0
        %1786 = vmatpush1.bf16.msra.mxu0 0
        %1787 = vmatprep.subr.bf16.mxu0 0
        %1788 = vmatpush1.bf16.msra.mxu0 0
        %1789 = vmatprep.subr.bf16.mxu0 0
        %1790 = vmatpush1.bf16.msra.mxu0 0
        %1791 = vmatprep.subr.bf16.mxu0 0
        %1792 = vmatpush1.bf16.msra.mxu0 0
        %1793 = vmatprep.subr.bf16.mxu0 0
        %1794 = vmatpush1.bf16.msra.mxu0 0
        %1795 = vmatprep.subr.bf16.mxu0 0
        %1796 = vmatpush1.bf16.msra.mxu0 0
        %1797 = vmatprep.subr.bf16.mxu0 0
        %1798 = vmatpush1.bf16.msra.mxu0 0
        %1799 = vmatprep.subr.bf16.mxu0 0
        %1800 = vmatpush1.bf16.msra.mxu0 0
        %1801 = vmatprep.subr.bf16.mxu0 0
        %1802 = vmatpush1.bf16.msra.mxu0 0
        %1803 = vmatprep.subr.bf16.mxu0 0
        %1804 = vmatpush1.bf16.msra.mxu0 0
        %1805 = vmatprep.subr.bf16.mxu0 0
        %1806 = vmatpush1.bf16.msra.mxu0 0
        %1807 = vmatprep.mubr.bf16.mxu0 0
        %1808 = vmatmul.mubr.bf16.gmra.mrb[0].mxu0 %v1773
        %v1809 = vpop.f32.mrb[0].mxu0
        %v1810 = vadd.f32 0.0, %v1809
        %v1811 = vpop.f32.mrb[0].mxu0
        %v1812 = vadd.f32 0.0, %v1811
        %v1813 = vpop.f32.mrb[0].mxu0
        %v1814 = vpop.f32.mrb[0].mxu0
        %1815 = vdwg.mxu0
        %1816 = vmatprep.subr.bf16.mxu0 0
        %1817 = vmatpush1.bf16.msra.mxu0 %v1290
        %1818 = vmatprep.subr.bf16.mxu0 0
        %1819 = vmatpush1.bf16.msra.mxu0 0
        %1820 = vmatprep.subr.bf16.mxu0 0
        %1821 = vmatpush1.bf16.msra.mxu0 0
        %1822 = vmatprep.subr.bf16.mxu0 0
        %1823 = vmatpush1.bf16.msra.mxu0 0
        %1824 = vmatprep.subr.bf16.mxu0 0
        %1825 = vmatpush1.bf16.msra.mxu0 0
        %1826 = vmatprep.subr.bf16.mxu0 0
        %1827 = vmatpush1.bf16.msra.mxu0 0
        %1828 = vmatprep.subr.bf16.mxu0 0
        %1829 = vmatpush1.bf16.msra.mxu0 0
        %1830 = vmatprep.subr.bf16.mxu0 0
        %1831 = vmatpush1.bf16.msra.mxu0 0
        %1832 = vmatprep.subr.bf16.mxu0 0
        %1833 = vmatpush1.bf16.msra.mxu0 0
        %1834 = vmatprep.subr.bf16.mxu0 0
        %1835 = vmatpush1.bf16.msra.mxu0 0
        %1836 = vmatprep.subr.bf16.mxu0 0
        %1837 = vmatpush1.bf16.msra.mxu0 0
        %1838 = vmatprep.subr.bf16.mxu0 0
        %1839 = vmatpush1.bf16.msra.mxu0 0
        %1840 = vmatprep.subr.bf16.mxu0 0
        %1841 = vmatpush1.bf16.msra.mxu0 0
        %1842 = vmatprep.subr.bf16.mxu0 0
        %1843 = vmatpush1.bf16.msra.mxu0 0
        %1844 = vmatprep.subr.bf16.mxu0 0
        %1845 = vmatpush1.bf16.msra.mxu0 0
        %1846 = vmatprep.subr.bf16.mxu0 0
        %1847 = vmatpush1.bf16.msra.mxu0 0
        %1848 = vmatprep.mubr.bf16.mxu0 0
        %1849 = vmatmul.mubr.bf16.gmra.mrb[0].mxu0 %v1773
        %v1850 = vpop.f32.mrb[0].mxu0
        %v1851 = vadd.f32 0.0, %v1850
        %v1852 = vpop.f32.mrb[0].mxu0
        %v1853 = vpop.f32.mrb[0].mxu0
        %v1854 = vpop.f32.mrb[0].mxu0
        %1855 = vdwg.mxu0
        %v1857 = vsel %vm579, %v1769, 0
        %1859 = vmatprep.subr.bf16.mxu0 %v892
        %1860 = vmatpush1.bf16.msra.mxu0 %v889
        %1861 = vmatprep.subr.bf16.mxu0 0
        %1862 = vmatpush1.bf16.msra.mxu0 0
        %1863 = vmatprep.subr.bf16.mxu0 0
        %1864 = vmatpush1.bf16.msra.mxu0 0
        %1865 = vmatprep.subr.bf16.mxu0 0
        %1866 = vmatpush1.bf16.msra.mxu0 0
        %1867 = vmatprep.subr.bf16.mxu0 0
        %1868 = vmatpush1.bf16.msra.mxu0 0
        %1869 = vmatprep.subr.bf16.mxu0 0
        %1870 = vmatpush1.bf16.msra.mxu0 0
        %1871 = vmatprep.subr.bf16.mxu0 0
        %1872 = vmatpush1.bf16.msra.mxu0 0
        %1873 = vmatprep.subr.bf16.mxu0 0
        %1874 = vmatpush1.bf16.msra.mxu0 0
        %1875 = vmatprep.subr.bf16.mxu0 0
        %1876 = vmatpush1.bf16.msra.mxu0 0
        %1877 = vmatprep.subr.bf16.mxu0 0
        %1878 = vmatpush1.bf16.msra.mxu0 0
        %1879 = vmatprep.subr.bf16.mxu0 0
        %1880 = vmatpush1.bf16.msra.mxu0 0
        %1881 = vmatprep.subr.bf16.mxu0 0
        %1882 = vmatpush1.bf16.msra.mxu0 0
        %1883 = vmatprep.subr.bf16.mxu0 0
        %1884 = vmatpush1.bf16.msra.mxu0 0
        %1885 = vmatprep.subr.bf16.mxu0 0
        %1886 = vmatpush1.bf16.msra.mxu0 0
        %1887 = vmatprep.subr.bf16.mxu0 0
        %1888 = vmatpush1.bf16.msra.mxu0 0
        %1889 = vmatprep.subr.bf16.mxu0 0
        %1890 = vmatpush1.bf16.msra.mxu0 0
        %1891 = vmatprep.mubr.bf16.mxu0 0
        %1892 = vmatmul.mubr.bf16.gmra.mrb[0].mxu0 %v1857
        %v1893 = vpop.f32.mrb[0].mxu0
        %v1894 = vadd.f32 %v1810, %v1893
        %v1895 = vpop.f32.mrb[0].mxu0
        %v1896 = vadd.f32 %v1812, %v1895
        %v1897 = vpop.f32.mrb[0].mxu0
        %v1898 = vpop.f32.mrb[0].mxu0
        %1899 = vdwg.mxu0
        %1900 = vmatprep.subr.bf16.mxu0 0
        %1901 = vmatpush1.bf16.msra.mxu0 %v895
        %1902 = vmatprep.subr.bf16.mxu0 0
        %1903 = vmatpush1.bf16.msra.mxu0 0
        %1904 = vmatprep.subr.bf16.mxu0 0
        %1905 = vmatpush1.bf16.msra.mxu0 0
        %1906 = vmatprep.subr.bf16.mxu0 0
        %1907 = vmatpush1.bf16.msra.mxu0 0
        %1908 = vmatprep.subr.bf16.mxu0 0
        %1909 = vmatpush1.bf16.msra.mxu0 0
        %1910 = vmatprep.subr.bf16.mxu0 0
        %1911 = vmatpush1.bf16.msra.mxu0 0
        %1912 = vmatprep.subr.bf16.mxu0 0
        %1913 = vmatpush1.bf16.msra.mxu0 0
        %1914 = vmatprep.subr.bf16.mxu0 0
        %1915 = vmatpush1.bf16.msra.mxu0 0
        %1916 = vmatprep.subr.bf16.mxu0 0
        %1917 = vmatpush1.bf16.msra.mxu0 0
        %1918 = vmatprep.subr.bf16.mxu0 0
        %1919 = vmatpush1.bf16.msra.mxu0 0
        %1920 = vmatprep.subr.bf16.mxu0 0
        %1921 = vmatpush1.bf16.msra.mxu0 0
        %1922 = vmatprep.subr.bf16.mxu0 0
        %1923 = vmatpush1.bf16.msra.mxu0 0
        %1924 = vmatprep.subr.bf16.mxu0 0
        %1925 = vmatpush1.bf16.msra.mxu0 0
        %1926 = vmatprep.subr.bf16.mxu0 0
        %1927 = vmatpush1.bf16.msra.mxu0 0
        %1928 = vmatprep.subr.bf16.mxu0 0
        %1929 = vmatpush1.bf16.msra.mxu0 0
        %1930 = vmatprep.subr.bf16.mxu0 0
        %1931 = vmatpush1.bf16.msra.mxu0 0
        %1932 = vmatprep.mubr.bf16.mxu0 0
        %1933 = vmatmul.mubr.bf16.gmra.mrb[0].mxu0 %v1857
        %v1934 = vpop.f32.mrb[0].mxu0
        %v1935 = vadd.f32 %v1851, %v1934
        %v1936 = vpop.f32.mrb[0].mxu0
        %v1937 = vpop.f32.mrb[0].mxu0
        %v1938 = vpop.f32.mrb[0].mxu0
        %1939 = vdwg.mxu0
        %s1940 = scalar_lea.vmem [#allocation11], 56
        %v1941 = vld [vmem:[%s1940] sm:$0xf]
        %v1943 = vsel %vm579, %v1941, 0
        %1945 = vmatprep.subr.bf16.mxu0 %v1676
        %1946 = vmatpush1.bf16.msra.mxu0 %v1673
        %1947 = vmatprep.subr.bf16.mxu0 0
        %1948 = vmatpush1.bf16.msra.mxu0 0
        %1949 = vmatprep.subr.bf16.mxu0 0
        %1950 = vmatpush1.bf16.msra.mxu0 0
        %1951 = vmatprep.subr.bf16.mxu0 0
        %1952 = vmatpush1.bf16.msra.mxu0 0
        %1953 = vmatprep.subr.bf16.mxu0 0
        %1954 = vmatpush1.bf16.msra.mxu0 0
        %1955 = vmatprep.subr.bf16.mxu0 0
        %1956 = vmatpush1.bf16.msra.mxu0 0
        %1957 = vmatprep.subr.bf16.mxu0 0
        %1958 = vmatpush1.bf16.msra.mxu0 0
        %1959 = vmatprep.subr.bf16.mxu0 0
        %1960 = vmatpush1.bf16.msra.mxu0 0
        %1961 = vmatprep.subr.bf16.mxu0 0
        %1962 = vmatpush1.bf16.msra.mxu0 0
        %1963 = vmatprep.subr.bf16.mxu0 0
        %1964 = vmatpush1.bf16.msra.mxu0 0
        %1965 = vmatprep.subr.bf16.mxu0 0
        %1966 = vmatpush1.bf16.msra.mxu0 0
        %1967 = vmatprep.subr.bf16.mxu0 0
        %1968 = vmatpush1.bf16.msra.mxu0 0
        %1969 = vmatprep.subr.bf16.mxu0 0
        %1970 = vmatpush1.bf16.msra.mxu0 0
        %1971 = vmatprep.subr.bf16.mxu0 0
        %1972 = vmatpush1.bf16.msra.mxu0 0
        %1973 = vmatprep.subr.bf16.mxu0 0
        %1974 = vmatpush1.bf16.msra.mxu0 0
        %1975 = vmatprep.subr.bf16.mxu0 0
        %1976 = vmatpush1.bf16.msra.mxu0 0
        %1977 = vmatprep.mubr.bf16.mxu0 0
        %1978 = vmatmul.mubr.bf16.gmra.mrb[0].mxu0 %v1943
        %v1979 = vpop.f32.mrb[0].mxu0
        %v1980 = vadd.f32 0.0, %v1979
        %v1981 = vpop.f32.mrb[0].mxu0
        %v1982 = vadd.f32 0.0, %v1981
        %v1983 = vpop.f32.mrb[0].mxu0
        %v1984 = vpop.f32.mrb[0].mxu0
        %1985 = vdwg.mxu0
        %1986 = vmatprep.subr.bf16.mxu0 0
        %1987 = vmatpush1.bf16.msra.mxu0 %v1679
        %1988 = vmatprep.subr.bf16.mxu0 0
        %1989 = vmatpush1.bf16.msra.mxu0 0
        %1990 = vmatprep.subr.bf16.mxu0 0
        %1991 = vmatpush1.bf16.msra.mxu0 0
        %1992 = vmatprep.subr.bf16.mxu0 0
        %1993 = vmatpush1.bf16.msra.mxu0 0
        %1994 = vmatprep.subr.bf16.mxu0 0
        %1995 = vmatpush1.bf16.msra.mxu0 0
        %1996 = vmatprep.subr.bf16.mxu0 0
        %1997 = vmatpush1.bf16.msra.mxu0 0
        %1998 = vmatprep.subr.bf16.mxu0 0
        %1999 = vmatpush1.bf16.msra.mxu0 0
        %2000 = vmatprep.subr.bf16.mxu0 0
        %2001 = vmatpush1.bf16.msra.mxu0 0
        %2002 = vmatprep.subr.bf16.mxu0 0
        %2003 = vmatpush1.bf16.msra.mxu0 0
        %2004 = vmatprep.subr.bf16.mxu0 0
        %2005 = vmatpush1.bf16.msra.mxu0 0
        %2006 = vmatprep.subr.bf16.mxu0 0
        %2007 = vmatpush1.bf16.msra.mxu0 0
        %2008 = vmatprep.subr.bf16.mxu0 0
        %2009 = vmatpush1.bf16.msra.mxu0 0
        %2010 = vmatprep.subr.bf16.mxu0 0
        %2011 = vmatpush1.bf16.msra.mxu0 0
        %2012 = vmatprep.subr.bf16.mxu0 0
        %2013 = vmatpush1.bf16.msra.mxu0 0
        %2014 = vmatprep.subr.bf16.mxu0 0
        %2015 = vmatpush1.bf16.msra.mxu0 0
        %2016 = vmatprep.subr.bf16.mxu0 0
        %2017 = vmatpush1.bf16.msra.mxu0 0
        %2018 = vmatprep.mubr.bf16.mxu0 0
        %2019 = vmatmul.mubr.bf16.gmra.mrb[0].mxu0 %v1943
        %v2020 = vpop.f32.mrb[0].mxu0
        %v2021 = vadd.f32 0.0, %v2020
        %v2022 = vpop.f32.mrb[0].mxu0
        %v2023 = vpop.f32.mrb[0].mxu0
        %v2024 = vpop.f32.mrb[0].mxu0
        %2025 = vdwg.mxu0
        %v2026 = vadd.f32 %v1894, %v1980
        %v2027 = vadd.f32 %v1896, %v1982
        %v2028 = vadd.f32 %v1935, %v2021
        %s2029 = scalar_lea.vmem [#allocation11], 60
        %v2030 = vld [vmem:[%s2029] sm:$0xf]
        %2031 = vrot.lane.b32.xlu0 %v561, 90
        %v2032 = vpop.permute.xlu0 %2031
        %2033 = vrot.lane.b32.xlu0 %v569, 90
        %v2034 = vpop.permute.xlu0 %2033
        %2035 = vrot.lane.b32.xlu0 %v568, 90
        %v2036 = vpop.permute.xlu0 %2035
        %vm2037 = vcmask 736256
        %v2038 = vsel %vm2037, %v2032, %v2034
        %v2039 = vsel %vm2037, %v2034, %v2036
        %v2041 = vsel %vm579, %v2030, 0
        %v2044 = vsel %vm583, %v2038, 0
        %v2047 = vsel %vm583, %v2039, 0
        %v2050 = vsel %vm583, %v2036, 0
        %2052 = vmatprep.subr.bf16.mxu0 %v2047
        %2053 = vmatpush1.bf16.msra.mxu0 %v2044
        %2054 = vmatprep.subr.bf16.mxu0 0
        %2055 = vmatpush1.bf16.msra.mxu0 0
        %2056 = vmatprep.subr.bf16.mxu0 0
        %2057 = vmatpush1.bf16.msra.mxu0 0
        %2058 = vmatprep.subr.bf16.mxu0 0
        %2059 = vmatpush1.bf16.msra.mxu0 0
        %2060 = vmatprep.subr.bf16.mxu0 0
        %2061 = vmatpush1.bf16.msra.mxu0 0
        %2062 = vmatprep.subr.bf16.mxu0 0
        %2063 = vmatpush1.bf16.msra.mxu0 0
        %2064 = vmatprep.subr.bf16.mxu0 0
        %2065 = vmatpush1.bf16.msra.mxu0 0
        %2066 = vmatprep.subr.bf16.mxu0 0
        %2067 = vmatpush1.bf16.msra.mxu0 0
        %2068 = vmatprep.subr.bf16.mxu0 0
        %2069 = vmatpush1.bf16.msra.mxu0 0
        %2070 = vmatprep.subr.bf16.mxu0 0
        %2071 = vmatpush1.bf16.msra.mxu0 0
        %2072 = vmatprep.subr.bf16.mxu0 0
        %2073 = vmatpush1.bf16.msra.mxu0 0
        %2074 = vmatprep.subr.bf16.mxu0 0
        %2075 = vmatpush1.bf16.msra.mxu0 0
        %2076 = vmatprep.subr.bf16.mxu0 0
        %2077 = vmatpush1.bf16.msra.mxu0 0
        %2078 = vmatprep.subr.bf16.mxu0 0
        %2079 = vmatpush1.bf16.msra.mxu0 0
        %2080 = vmatprep.subr.bf16.mxu0 0
        %2081 = vmatpush1.bf16.msra.mxu0 0
        %2082 = vmatprep.subr.bf16.mxu0 0
        %2083 = vmatpush1.bf16.msra.mxu0 0
        %2084 = vmatprep.mubr.bf16.mxu0 0
        %2085 = vmatmul.mubr.bf16.gmra.mrb[0].mxu0 %v2041
        %v2086 = vpop.f32.mrb[0].mxu0
        %v2087 = vadd.f32 0.0, %v2086
        %v2088 = vpop.f32.mrb[0].mxu0
        %v2089 = vadd.f32 0.0, %v2088
        %v2090 = vpop.f32.mrb[0].mxu0
        %v2091 = vpop.f32.mrb[0].mxu0
        %2092 = vdwg.mxu0
        %2093 = vmatprep.subr.bf16.mxu0 0
        %2094 = vmatpush1.bf16.msra.mxu0 %v2050
        %2095 = vmatprep.subr.bf16.mxu0 0
        %2096 = vmatpush1.bf16.msra.mxu0 0
        %2097 = vmatprep.subr.bf16.mxu0 0
        %2098 = vmatpush1.bf16.msra.mxu0 0
        %2099 = vmatprep.subr.bf16.mxu0 0
        %2100 = vmatpush1.bf16.msra.mxu0 0
        %2101 = vmatprep.subr.bf16.mxu0 0
        %2102 = vmatpush1.bf16.msra.mxu0 0
        %2103 = vmatprep.subr.bf16.mxu0 0
        %2104 = vmatpush1.bf16.msra.mxu0 0
        %2105 = vmatprep.subr.bf16.mxu0 0
        %2106 = vmatpush1.bf16.msra.mxu0 0
        %2107 = vmatprep.subr.bf16.mxu0 0
        %2108 = vmatpush1.bf16.msra.mxu0 0
        %2109 = vmatprep.subr.bf16.mxu0 0
        %2110 = vmatpush1.bf16.msra.mxu0 0
        %2111 = vmatprep.subr.bf16.mxu0 0
        %2112 = vmatpush1.bf16.msra.mxu0 0
        %2113 = vmatprep.subr.bf16.mxu0 0
        %2114 = vmatpush1.bf16.msra.mxu0 0
        %2115 = vmatprep.subr.bf16.mxu0 0
        %2116 = vmatpush1.bf16.msra.mxu0 0
        %2117 = vmatprep.subr.bf16.mxu0 0
        %2118 = vmatpush1.bf16.msra.mxu0 0
        %2119 = vmatprep.subr.bf16.mxu0 0
        %2120 = vmatpush1.bf16.msra.mxu0 0
        %2121 = vmatprep.subr.bf16.mxu0 0
        %2122 = vmatpush1.bf16.msra.mxu0 0
        %2123 = vmatprep.subr.bf16.mxu0 0
        %2124 = vmatpush1.bf16.msra.mxu0 0
        %2125 = vmatprep.mubr.bf16.mxu0 0
        %2126 = vmatmul.mubr.bf16.gmra.mrb[0].mxu0 %v2041
        %v2127 = vpop.f32.mrb[0].mxu0
        %v2128 = vadd.f32 0.0, %v2127
        %v2129 = vpop.f32.mrb[0].mxu0
        %v2130 = vpop.f32.mrb[0].mxu0
        %v2131 = vpop.f32.mrb[0].mxu0
        %2132 = vdwg.mxu0
        %v2133 = vadd.f32 %v2026, %v2087
        %v2134 = vadd.f32 %v2027, %v2089
        %v2135 = vadd.f32 %v2028, %v2128
        %v2136 = vadd.f32 %v2133, %v985
        %v2137 = vadd.f32 %v2134, %v985
        %v2138 = vadd.f32 %v2135, %v985
        %v2139 = vld [vmem:[#allocation14] sm:$0x7]
        %v2141 = vlaneseq
        %v2142 = vshrl.u32 %v2141, 7
        %v2143 = vsub.s32 0, %v2142
        %v2144 = vrot.slane %v2139, %v2143
        %v2145 = vlaneseq
        %v2146 = vshrl.u32 %v2145, 7
        %v2147 = vsub.s32 1, %v2146
        %v2148 = vrot.slane %v2139, %v2147
        %v2149 = vlaneseq
        %v2150 = vshrl.u32 %v2149, 7
        %v2151 = vsub.s32 2, %v2150
        %v2152 = vrot.slane %v2139, %v2151
        %v2156 = vmul.f32 %v987, %v2144
        %v2157 = vmul.f32 %v988, %v2148
        %v2158 = vmul.f32 %v989, %v2152
        %v2159 = vadd.f32 %v2156, %v2157
        %vm2160 = vcmask 261120
        %v2161 = vsel %vm2160, %v2158, 0.0
        %v2162 = vadd.f32 %v2159, %v2161
        %2163 = vadd.xlane.f32.xlu0 %v2162
        %v2164 = vpop.xlane.xlu0 %2163
        %v2165 = vadd.f32 %v2164, 0.0
        %v2166 = vmul.f32 %v1376, %v2144
        %v2167 = vmul.f32 %v1377, %v2148
        %v2168 = vmul.f32 %v1378, %v2152
        %v2169 = vadd.f32 %v2166, %v2167
        %v2170 = vsel %vm2160, %v2168, 0.0
        %v2171 = vadd.f32 %v2169, %v2170
        %2172 = vadd.xlane.f32.xlu0 %v2171
        %v2173 = vpop.xlane.xlu0 %2172
        %v2174 = vadd.f32 %v2165, %v2173
        %v2175 = vmul.f32 %v1765, %v2144
        %v2176 = vmul.f32 %v1766, %v2148
        %v2177 = vmul.f32 %v1767, %v2152
        %v2178 = vadd.f32 %v2175, %v2176
        %v2179 = vsel %vm2160, %v2177, 0.0
        %v2180 = vadd.f32 %v2178, %v2179
        %2181 = vadd.xlane.f32.xlu0 %v2180
        %v2182 = vpop.xlane.xlu0 %2181
        %v2183 = vadd.f32 %v2174, %v2182
        %v2184 = vmul.f32 %v2136, %v2144
        %v2185 = vmul.f32 %v2137, %v2148
        %v2186 = vmul.f32 %v2138, %v2152
        %v2187 = vadd.f32 %v2184, %v2185
        %v2188 = vsel %vm2160, %v2186, 0.0
        %v2189 = vadd.f32 %v2187, %v2188
        %2190 = vadd.xlane.f32.xlu0 %v2189
        %v2191 = vpop.xlane.xlu0 %2190
        %v2192 = vadd.f32 %v2183, %v2191
        %v2193 = vmul.f32 %v2192, 0.0009765625
        %v2194 = vsub.f32 %v987, %v2193
        %v2195 = vsub.f32 %v988, %v2193
        %v2196 = vsub.f32 %v989, %v2193
        %v2197 = vmul.f32 %v2194, %v2144
        %v2198 = vmul.f32 %v2195, %v2148
        %v2199 = vmul.f32 %v2196, %v2152
        %v2200 = vmul.f32 %v2197, %v2197
        %v2201 = vmul.f32 %v2198, %v2198
        %v2202 = vmul.f32 %v2199, %v2199
        %v2203 = vadd.f32 %v2200, %v2201
        %v2204 = vsel %vm2160, %v2202, 0.0
        %v2205 = vadd.f32 %v2203, %v2204
        %2206 = vadd.xlane.f32.xlu0 %v2205
        %v2207 = vpop.xlane.xlu0 %2206
        %v2208 = vadd.f32 %v2207, 0.0
        %v2209 = vsub.f32 %v1376, %v2193
        %v2210 = vsub.f32 %v1377, %v2193
        %v2211 = vsub.f32 %v1378, %v2193
        %v2212 = vmul.f32 %v2209, %v2144
        %v2213 = vmul.f32 %v2210, %v2148
        %v2214 = vmul.f32 %v2211, %v2152
        %v2215 = vmul.f32 %v2212, %v2212
        %v2216 = vmul.f32 %v2213, %v2213
        %v2217 = vmul.f32 %v2214, %v2214
        %v2218 = vadd.f32 %v2215, %v2216
        %v2219 = vsel %vm2160, %v2217, 0.0
        %v2220 = vadd.f32 %v2218, %v2219
        %2221 = vadd.xlane.f32.xlu0 %v2220
        %v2222 = vpop.xlane.xlu0 %2221
        %v2223 = vadd.f32 %v2208, %v2222
        %v2224 = vsub.f32 %v1765, %v2193
        %v2225 = vsub.f32 %v1766, %v2193
        %v2226 = vsub.f32 %v1767, %v2193
        %v2227 = vmul.f32 %v2224, %v2144
        %v2228 = vmul.f32 %v2225, %v2148
        %v2229 = vmul.f32 %v2226, %v2152
        %v2230 = vmul.f32 %v2227, %v2227
        %v2231 = vmul.f32 %v2228, %v2228
        %v2232 = vmul.f32 %v2229, %v2229
        %v2233 = vadd.f32 %v2230, %v2231
        %v2234 = vsel %vm2160, %v2232, 0.0
        %v2235 = vadd.f32 %v2233, %v2234
        %2236 = vadd.xlane.f32.xlu0 %v2235
        %v2237 = vpop.xlane.xlu0 %2236
        %v2238 = vadd.f32 %v2223, %v2237
        %v2239 = vsub.f32 %v2136, %v2193
        %v2240 = vsub.f32 %v2137, %v2193
        %v2241 = vsub.f32 %v2138, %v2193
        %v2242 = vmul.f32 %v2239, %v2144
        %v2243 = vmul.f32 %v2240, %v2148
        %v2244 = vmul.f32 %v2241, %v2152
        %v2245 = vmul.f32 %v2242, %v2242
        %v2246 = vmul.f32 %v2243, %v2243
        %v2247 = vmul.f32 %v2244, %v2244
        %v2248 = vadd.f32 %v2245, %v2246
        %v2249 = vsel %vm2160, %v2247, 0.0
        %v2250 = vadd.f32 %v2248, %v2249
        %2251 = vadd.xlane.f32.xlu0 %v2250
        %v2252 = vpop.xlane.xlu0 %2251
        %v2253 = vadd.f32 %v2238, %v2252
        %v2254 = vmul.f32 %v2253, 0.0009765625
        %v2255 = vadd.f32 %v2254, 1e-05
        %v2256 = vrsqrt.pop %v2255
        %v2257 = vmul.f32 %v541, %v2256
        %2259 = vset.pattern.permute.xlu0 0
        %2260 = vperm.xlu0 %2259, %v2257
        %v2261 = vpop.permute.xlu0 %2260
        %v2263 = vmul.f32 %v2194, %v2261
        %v2264 = vmul.f32 %v2195, %v2261
        %v2265 = vmul.f32 %v2196, %v2261
        %2267 = vset.pattern.permute.xlu0 0
        %2268 = vperm.xlu0 %2267, %v548
        %v2269 = vpop.permute.xlu0 %2268
        %v2271 = vadd.f32 %v2263, %v2269
        %v2272 = vadd.f32 %v2264, %v2269
        %v2273 = vadd.f32 %v2265, %v2269
        %vm2274 = vcmp.ge.f32.partialorder %v2271, 0.0
        %vm2275 = vcmp.ge.f32.partialorder %v2272, 0.0
        %vm2276 = vcmp.ge.f32.partialorder %v2273, 0.0
        %v2277 = vmul.f32 %v2271, 0.2
        %v2278 = vmul.f32 %v2272, 0.2
        %v2279 = vmul.f32 %v2273, 0.2
        %v2280 = vsel %vm2274, %v2271, %v2277
        %v2281 = vsel %vm2275, %v2272, %v2278
        %v2282 = vsel %vm2276, %v2273, %v2279
        %2283 = vst [vmem:[%s525] sm:$0xff] %v2280
        %2284 = vst [vmem:[%s525 + $0x8] sm:$0xff] %v2281
        %2285 = vst.msk [vmem:[%s525 + $0x10] sm:$0xff] %vm2160, %v2282
        %v2286 = vmul.f32 %v2209, %v2261
        %v2287 = vmul.f32 %v2210, %v2261
        %v2288 = vmul.f32 %v2211, %v2261
        %v2289 = vadd.f32 %v2286, %v2269
        %v2290 = vadd.f32 %v2287, %v2269
        %v2291 = vadd.f32 %v2288, %v2269
        %vm2292 = vcmp.ge.f32.partialorder %v2289, 0.0
        %vm2293 = vcmp.ge.f32.partialorder %v2290, 0.0
        %vm2294 = vcmp.ge.f32.partialorder %v2291, 0.0
        %v2295 = vmul.f32 %v2289, 0.2
        %v2296 = vmul.f32 %v2290, 0.2
        %v2297 = vmul.f32 %v2291, 0.2
        %v2298 = vsel %vm2292, %v2289, %v2295
        %v2299 = vsel %vm2293, %v2290, %v2296
        %v2300 = vsel %vm2294, %v2291, %v2297
        %s2301 = scalar_lea.vmem %s525, 24 [#allocation17]
        %2302 = vst [vmem:[%s2301] sm:$0xff] %v2298
        %2303 = vst [vmem:[%s2301 + $0x8] sm:$0xff] %v2299
        %2304 = vst.msk [vmem:[%s2301 + $0x10] sm:$0xff] %vm2160, %v2300
        %v2305 = vmul.f32 %v2224, %v2261
        %v2306 = vmul.f32 %v2225, %v2261
        %v2307 = vmul.f32 %v2226, %v2261
        %v2308 = vadd.f32 %v2305, %v2269
        %v2309 = vadd.f32 %v2306, %v2269
        %v2310 = vadd.f32 %v2307, %v2269
        %vm2311 = vcmp.ge.f32.partialorder %v2308, 0.0
        %vm2312 = vcmp.ge.f32.partialorder %v2309, 0.0
        %vm2313 = vcmp.ge.f32.partialorder %v2310, 0.0
        %v2314 = vmul.f32 %v2308, 0.2
        %v2315 = vmul.f32 %v2309, 0.2
        %v2316 = vmul.f32 %v2310, 0.2
        %v2317 = vsel %vm2311, %v2308, %v2314
        %v2318 = vsel %vm2312, %v2309, %v2315
        %v2319 = vsel %vm2313, %v2310, %v2316
        %s2320 = scalar_lea.vmem %s525, 48 [#allocation17]
        %2321 = vst [vmem:[%s2320] sm:$0xff] %v2317
        %2322 = vst [vmem:[%s2320 + $0x8] sm:$0xff] %v2318
        %2323 = vst.msk [vmem:[%s2320 + $0x10] sm:$0xff] %vm2160, %v2319
        %v2324 = vmul.f32 %v2239, %v2261
        %v2325 = vmul.f32 %v2240, %v2261
        %v2326 = vmul.f32 %v2241, %v2261
        %v2327 = vadd.f32 %v2324, %v2269
        %v2328 = vadd.f32 %v2325, %v2269
        %v2329 = vadd.f32 %v2326, %v2269
        %vm2330 = vcmp.ge.f32.partialorder %v2327, 0.0
        %vm2331 = vcmp.ge.f32.partialorder %v2328, 0.0
        %vm2332 = vcmp.ge.f32.partialorder %v2329, 0.0
        %v2333 = vmul.f32 %v2327, 0.2
        %v2334 = vmul.f32 %v2328, 0.2
        %v2335 = vmul.f32 %v2329, 0.2
        %v2336 = vsel %vm2330, %v2327, %v2333
        %v2337 = vsel %vm2331, %v2328, %v2334
        %v2338 = vsel %vm2332, %v2329, %v2335
        %s2339 = scalar_lea.vmem %s525, 72 [#allocation17]
        %2340 = vst [vmem:[%s2339] sm:$0xff] %v2336
        %2341 = vst [vmem:[%s2339 + $0x8] sm:$0xff] %v2337
        %2342 = vst.msk [vmem:[%s2339 + $0x10] sm:$0xff] %vm2160, %v2338
        %s2343 = sand.u32 %s281, 1
        %s2344 = scalar_lea.sflag [#allocation4], %s2343
        %s2345 = sand.u32 %s281, 1
        %s2346 = smul.addr %s2345, 96
        %s2347 = scalar_lea.vmem [#allocation17], %s2346
        // Predicated region
        $region93: #{up_block.1} parent=55 // pred_check
          %p2348 = pneg %p291
        $region94: #{up_block.1} parent=55 // pred_check_branch
          %2350 = sbr.rel (%p2348) target = $region96
        $region95: #{up_block.1} parent=55 // pred_region
          %s2352 = ssub.s32 1536, 1536
          %2353 = vsyncadd %s2344, %s2352
          %s2354 = smul.addr %s35, 3
          %s2355 = smul.addr %s34, 12
          %s2356 = sadd.s32 %s2354, %s2355
          %s2357 = smul.addr %s2356, 128
          %s2358 = scalar_lea.hbm %s9, %s2357
          %s2359 = sshll.u32 %s2347, 4
          %s2360 = int_to_ptr.vmem [resolvable:$true] %s2359
          %2365 = dma.vmem_to_hbm [thread:$0]  %s2360, 1536, %s2358, %s2344, 384, 384, 24
        $region96: #{up_block.1} parent=55 // pred_fallthru
          _
      $region56: #{up_block.1} parent=5 // pred_fallthru
        _
      %p2366 = scmp.le.s32.totalorder 2, %s25
      // Predicated region
      $region97: #{up_block.1} parent=5 // pred_check
        %p2367 = pneg %p2366
      $region98: #{up_block.1} parent=5 // pred_check_branch
        %2369 = sbr.rel (%p2367) target = $region100
      $region99: #{up_block.1} parent=5 // pred_region
        %s2370 = ssub.s32 %s25, 2
        // Predicated region
        $region101: #{up_block.1} parent=99 // pred_check
          %p2371 = pneg %p297
        $region102: #{up_block.1} parent=99 // pred_check_branch
          %2373 = sbr.rel (%p2371) target = $region104
        $region103: #{up_block.1} parent=99 // pred_region
          %s2374 = sand.u32 %s282, 1
          %s2375 = scalar_lea.sflag [#allocation4], %s2374
          %s2376 = sand.u32 %s282, 1
          %s2377 = smul.addr %s2376, 96
          %s2378 = scalar_lea.vmem [#allocation17], %s2377
          %2379 = dma.done %s2375, 1536
        $region104: #{up_block.1} parent=99 // pred_fallthru
          _
      $region100: #{up_block.1} parent=5 // pred_fallthru
        _
    $region6: #{up_block.1} parent=1 // loop_footer
      %s29 = sadd.s32 1, %s25
    $region7: #{up_block.1} parent=1 // loop_footer_branch
      %24 = sbr.rel target = $region3
    $region8: #{up_block.1} parent=1 // loop_exit
      _
    %2380 = vsyncpa [#allocation3], 1
    %s2381 = scalar_lea.sflag [#allocation3], 1
    %2382 = vsyncpa %s2381, 1
    %2383 = vsyncpa [#allocation6], 1
    %2384 = vsyncpa [#allocation9], 1
    %2385 = vsyncpa [#allocation12], 1
    %2386 = vsyncpa [#allocation15], 1
    %2387 = vsyncpa [#allocation4], 1
    %s2388 = scalar_lea.sflag [#allocation4], 1
    %2389 = vsyncpa %s2388, 1

</llo_original>
